<compile_context>
chip_gen: v7x
topology: tpu7x:2x2x1
jax: 0.10.0
libtpu: 0.0.40
codegen_flags: <defaults>
</compile_context>

<pallas_src>
import functools
import math

import jax
import jax.numpy as jnp
from jax import lax
from jax.experimental import pallas as pl
from jax.experimental.pallas import tpu as pltpu


def _round_up(x, m):
    return ((x + m - 1) // m) * m


def _pad_gate_cols(w_t, h, hp):
    """(in_dim, 4*h) -> (in_dim, 4*hp): zero-pad each i|f|g|o gate block to hp lanes."""
    in_dim = w_t.shape[0]
    w4 = w_t.reshape(in_dim, 4, h)
    w4 = jnp.pad(w4, ((0, 0), (0, 0), (0, hp - h)))
    return w4.reshape(in_dim, 4 * hp)


def _pad_gate_vec(b, h, hp):
    """(4*h,) -> (4*hp,): zero-pad each gate block."""
    return jnp.pad(b.reshape(4, h), ((0, 0), (0, hp - h))).reshape(4 * hp)


def init_params(key, input_dim, hidden_dim, output_dim):
    """PyTorch-layout parameters (nn.LSTM / nn.Linear shapes, gate order i|f|g|o)."""
    h = hidden_dim
    ks = jax.random.split(key, 10)
    s = 1.0 / math.sqrt(h)

    def u(k, shape):
        return jax.random.uniform(k, shape, jnp.float32, minval=-s, maxval=s)

    return {
        "W_ih_l0": u(ks[0], (4 * h, input_dim)),
        "W_hh_l0": u(ks[1], (4 * h, h)),
        "b_ih_l0": u(ks[2], (4 * h,)),
        "b_hh_l0": u(ks[3], (4 * h,)),
        "W_ih_l1": u(ks[4], (4 * h, h)),
        "W_hh_l1": u(ks[5], (4 * h, h)),
        "b_ih_l1": u(ks[6], (4 * h,)),
        "b_hh_l1": u(ks[7], (4 * h,)),
        "fc_w": u(ks[8], (output_dim, h)),
        "fc_b": u(ks[9], (output_dim,)),
    }


def prepare_params(raw, input_dim, hidden_dim, output_dim, matmul_dtype=jnp.bfloat16):
    """Pre-transpose / lane-pad / fuse / cast weights into kernel-friendly form."""
    h = hidden_dim
    hp = _round_up(h, 128)

    wx0 = _pad_gate_cols(raw["W_ih_l0"].T, h, hp)                                   # (D, 4*hp)
    wh0 = jnp.pad(_pad_gate_cols(raw["W_hh_l0"].T, h, hp), ((0, hp - h), (0, 0)))   # (hp, 4*hp)
    b0 = _pad_gate_vec(raw["b_ih_l0"] + raw["b_hh_l0"], h, hp).reshape(1, 4 * hp)

    wx1 = jnp.pad(_pad_gate_cols(raw["W_ih_l1"].T, h, hp), ((0, hp - h), (0, 0)))
    wh1 = jnp.pad(_pad_gate_cols(raw["W_hh_l1"].T, h, hp), ((0, hp - h), (0, 0)))
    w1 = jnp.concatenate([wx1, wh1], axis=0)                                        # (2*hp, 4*hp)
    b1 = _pad_gate_vec(raw["b_ih_l1"] + raw["b_hh_l1"], h, hp).reshape(1, 4 * hp)

    wfc = jnp.pad(raw["fc_w"].T, ((0, hp - h), (0, 0)))                             # (hp, out)
    bfc = raw["fc_b"].reshape(1, output_dim)

    return {
        "wx0": wx0.astype(matmul_dtype),
        "wh0": wh0.astype(matmul_dtype),
        "b0": b0.astype(jnp.float32),
        "w1": w1.astype(matmul_dtype),
        "b1": b1.astype(jnp.float32),
        "wfc": wfc.astype(matmul_dtype),
        "bfc": bfc.astype(jnp.float32),
    }


def _tsc_lstm_kernel(gp0_ref, wh0_ref, w1_ref, b1_ref, wfc_ref, bfc_ref,
                     out_ref, h1_ref, c1_ref, h2_ref, c2_ref,
                     *, hp, tt, tb, seq_len, mm_dtype, unroll):
    ch = pl.program_id(1)

    # h0 / c0 are zeros in the PyTorch module; re-init at the first time-chunk of each batch tile.
    @pl.when(ch == 0)
    def _init():
        h1_ref[...] = jnp.zeros_like(h1_ref)
        c1_ref[...] = jnp.zeros_like(c1_ref)
        h2_ref[...] = jnp.zeros_like(h2_ref)
        c2_ref[...] = jnp.zeros_like(c2_ref)

    wh0 = wh0_ref[...]                                    # (hp, 4*hp)      bf16
    w1 = w1_ref[...]                                      # (2*hp, 4*hp)    bf16
    b1 = jnp.broadcast_to(b1_ref[...], (tb, 4 * hp))      # hoisted out of the time loop (f32)

    needs_mask = (seq_len % tt) != 0                      # static Python bool

    def gate_split(pre):
        i_g = jax.nn.sigmoid(pre[:, 0 * hp:1 * hp])       # lane-aligned slices (hp % 128 == 0)
        f_g = jax.nn.sigmoid(pre[:, 1 * hp:2 * hp])
        g_g = jnp.tanh(pre[:, 2 * hp:3 * hp])
        o_g = jax.nn.sigmoid(pre[:, 3 * hp:4 * hp])
        return i_g, f_g, g_g, o_g

    def step(i, carry):
        h1, c1, h2, c2 = carry
        # Layer 0: x@Wx0 + b0 was precomputed outside the recurrence (gp0); only h1@Wh0 here.
        pre0 = jnp.dot(h1.astype(mm_dtype), wh0,
                       preferred_element_type=jnp.float32) + gp0_ref[i]
        i0, f0, g0, o0 = gate_split(pre0)
        c1n = f0 * c1 + i0 * g0
        h1n = o0 * jnp.tanh(c1n)

        # Layer 1 (eval mode => no dropout): fused [Wx1; Wh1] matmul on concat(h1, h2).
        hcat = jnp.concatenate([h1n.astype(mm_dtype), h2.astype(mm_dtype)], axis=-1)
        pre1 = jnp.dot(hcat, w1, preferred_element_type=jnp.float32) + b1
        i1, f1, g1, o1 = gate_split(pre1)
        c2n = f1 * c2 + i1 * g1
        h2n = o1 * jnp.tanh(c2n)

        if needs_mask:  # only traced when T is not a multiple of the time chunk
            valid = (ch * tt + i) < seq_len
            h1n = jnp.where(valid, h1n, h1)
            c1n = jnp.where(valid, c1n, c1)
            h2n = jnp.where(valid, h2n, h2)
            c2n = jnp.where(valid, c2n, c2)
        return h1n, c1n, h2n, c2n

    carry = (h1_ref[...], c1_ref[...], h2_ref[...], c2_ref[...])
    h1, c1, h2, c2 = lax.fori_loop(0, tt, step, carry, unroll=unroll)
    h1_ref[...] = h1
    c1_ref[...] = c1
    h2_ref[...] = h2
    c2_ref[...] = c2

    # Last chunk: fc(out[:, -1, :]) then sigmoid.
    @pl.when(ch == pl.num_programs(1) - 1)
    def _fc():
        logits = jnp.dot(h2.astype(mm_dtype), wfc_ref[...],
                         preferred_element_type=jnp.float32) + bfc_ref[...]
        out_ref[...] = jax.nn.sigmoid(logits).astype(out_ref.dtype)


def tsc_lstm_forward(x, kp, *, time_chunk=16, batch_tile=None):
    """x: [B, T, D] float32. Returns sigmoid(fc(lstm(x)[:, -1, :])) -> [B, output_dim] f32."""
    B, T, D = x.shape
    hp = kp["wh0"].shape[1] // 4
    out_dim = kp["wfc"].shape[1]
    mm_dtype = kp["wh0"].dtype

    bp = _round_up(B, 8)
    tb = batch_tile if batch_tile is not None else bp     # on v7x, pick tb = bp // 2 if bp >= 16
    assert bp % tb == 0 and tb % 8 == 0

    tt = min(time_chunk, T)
    n_ch = -(-T // tt)
    t_pad = n_ch * tt
    n_bt = bp // tb

    # --- Hoisted layer-0 input projection: one MXU-shaped matmul, bias folded in. ---
    x_tbd = jnp.transpose(x, (1, 0, 2))                                   # (T, B, D)
    x_tbd = jnp.pad(x_tbd, ((0, t_pad - T), (0, bp - B), (0, 0)))         # (t_pad, bp, D)
    gp0 = jnp.dot(x_tbd.reshape(t_pad * bp, D).astype(mm_dtype), kp["wx0"],
                  preferred_element_type=jnp.float32) + kp["b0"]
    gp0 = gp0.reshape(t_pad, bp, 4 * hp)                                  # f32 gate pre-acts

    kernel = functools.partial(
        _tsc_lstm_kernel, hp=hp, tt=tt, tb=tb, seq_len=T, mm_dtype=mm_dtype,
        unroll=True if tt <= 16 else 8)

    const = lambda b, ch: (0, 0)
    out = pl.pallas_call(
        kernel,
        out_shape=jax.ShapeDtypeStruct((bp, out_dim), jnp.float32),
        grid_spec=pltpu.PrefetchScalarGridSpec(
            num_scalar_prefetch=0,
            grid=(n_bt, n_ch),                                            # (batch tiles, time chunks)
            in_specs=[
                pl.BlockSpec((tt, tb, 4 * hp), lambda b, ch: (ch, b, 0)), # streamed pre-acts
                pl.BlockSpec(kp["wh0"].shape, const),                     # (hp, 4*hp)
                pl.BlockSpec(kp["w1"].shape, const),                      # (2*hp, 4*hp)
                pl.BlockSpec(kp["b1"].shape, const),                      # (1, 4*hp)
                pl.BlockSpec(kp["wfc"].shape, const),                     # (hp, out)
                pl.BlockSpec(kp["bfc"].shape, const),                     # (1, out)
            ],
            out_specs=pl.BlockSpec((tb, out_dim), lambda b, ch: (b, 0)),
            scratch_shapes=[pltpu.VMEM((tb, hp), jnp.float32)] * 4,       # h1, c1, h2, c2
        ),
        compiler_params=pltpu.CompilerParams(
            # batch tiles are independent (v7x megacore); recurrence over time is sequential.
            dimension_semantics=("parallel", "arbitrary"),
        ),
    )(gp0, kp["wh0"], kp["w1"], kp["b1"], kp["wfc"], kp["bfc"])
    return out[:B]


def reference_forward(x, raw, hidden_dim, matmul_dtype=jnp.float32):
    """Pure-JAX reference of the same eval-mode forward pass (un-padded weights)."""
    B, T, D = x.shape
    H = hidden_dim

    def mm(a, b):
        return jnp.dot(a.astype(matmul_dtype), b.astype(matmul_dtype),
                       preferred_element_type=jnp.float32)

    wx0, wh0 = raw["W_ih_l0"].T, raw["W_hh_l0"].T
    b0 = (raw["b_ih_l0"] + raw["b_hh_l0"])[None, :]
    wx1, wh1 = raw["W_ih_l1"].T, raw["W_hh_l1"].T
    b1 = (raw["b_ih_l1"] + raw["b_hh_l1"])[None, :]
    wfc, bfc = raw["fc_w"].T, raw["fc_b"][None, :]

    h1 = c1 = h2 = c2 = jnp.zeros((B, H), jnp.float32)

    def cell(x_in, h, c, wx, wh, b):
        g = mm(x_in, wx) + mm(h, wh) + b
        i = jax.nn.sigmoid(g[:, :H])
        f = jax.nn.sigmoid(g[:, H:2 * H])
        gg = jnp.tanh(g[:, 2 * H:3 * H])
        o = jax.nn.sigmoid(g[:, 3 * H:])
        c_new = f * c + i * gg
        return o * jnp.tanh(c_new), c_new

    for t in range(T):
        h1, c1 = cell(x[:, t, :], h1, c1, wx0, wh0, b0)
        h2, c2 = cell(h1, h2, c2, wx1, wh1, b1)
    return jax.nn.sigmoid(mm(h2, wfc) + bfc)


if __name__ == "__main__":
    B, T, D, H, OUT = 2, 8, 4, 32, 1

    key = jax.random.PRNGKey(0)
    k_x, k_p = jax.random.split(key)
    x = jax.random.normal(k_x, (B, T, D), jnp.float32)

    raw = init_params(k_p, D, H, OUT)
    kparams = prepare_params(raw, D, H, OUT, matmul_dtype=jnp.bfloat16)

    out = tsc_lstm_forward(x, kparams)
    out = jax.block_until_ready(out)
    assert out.shape == (B, OUT), out.shape

    # Matched-precision reference (same bf16-matmul / f32-accumulate split as the kernel).
    ref_bf16 = reference_forward(x, raw, H, matmul_dtype=jnp.bfloat16)
    assert jnp.allclose(out, ref_bf16, atol=2e-3, rtol=2e-3), (out, ref_bf16)

    # Module-semantics (pure f32) reference: agree to bf16 accuracy.
    ref_f32 = reference_forward(x, raw, H, matmul_dtype=jnp.float32)
    assert jnp.allclose(out, ref_f32, atol=2e-2, rtol=2e-2), (out, ref_f32)

    print("KERNEL_OK")
</pallas_src>

<mosaic_0001>
module attributes {stable_mosaic.version = 11 : i64} {
  func.func @_tsc_lstm_kernel(%arg0: i32, %arg1: i32, %arg2: memref<8x8x512xf32, #tpu.memory_space<vmem>>, %arg3: memref<128x512xbf16, #tpu.memory_space<vmem>>, %arg4: memref<256x512xbf16, #tpu.memory_space<vmem>>, %arg5: memref<1x512xf32, #tpu.memory_space<vmem>>, %arg6: memref<128x1xbf16, #tpu.memory_space<vmem>>, %arg7: memref<1x1xf32, #tpu.memory_space<vmem>>, %arg8: memref<8x1xf32, #tpu.memory_space<vmem>>, %arg9: memref<8x128xf32, #tpu.memory_space<vmem>>, %arg10: memref<8x128xf32, #tpu.memory_space<vmem>>, %arg11: memref<8x128xf32, #tpu.memory_space<vmem>>, %arg12: memref<8x128xf32, #tpu.memory_space<vmem>>) attributes {dimension_semantics = [#tpu.dimension_semantics<parallel>, #tpu.dimension_semantics<arbitrary>], iteration_bounds = array<i64: 1, 1>, scalar_prefetch = 0 : i64, scratch_operands = 4 : i64, tpu.core_type = #tpu.core_type<tc>, window_params = [{transform_indices = @transform_0, window_bounds = array<i64: 8, 8, 512>}, {pipeline_mode = #tpu.pipeline_mode<synchronous>, transform_indices = @transform_1, window_bounds = array<i64: 128, 512>}, {pipeline_mode = #tpu.pipeline_mode<synchronous>, transform_indices = @transform_2, window_bounds = array<i64: 256, 512>}, {pipeline_mode = #tpu.pipeline_mode<synchronous>, transform_indices = @transform_3, window_bounds = array<i64: 1, 512>}, {pipeline_mode = #tpu.pipeline_mode<synchronous>, transform_indices = @transform_4, window_bounds = array<i64: 128, 1>}, {pipeline_mode = #tpu.pipeline_mode<synchronous>, transform_indices = @transform_5, window_bounds = array<i64: 1, 1>}, {transform_indices = @transform_6, window_bounds = array<i64: 8, 1>}]} {
    %c0_i32 = arith.constant 0 : i32
    %0 = arith.cmpi eq, %arg1, %c0_i32 : i32
    %1 = arith.extui %0 : i1 to i32
    %c0_i32_0 = arith.constant 0 : i32
    %2 = arith.cmpi ne, %1, %c0_i32_0 : i32
    scf.if %2 {
      %cst_104 = arith.constant 0.000000e+00 : f32
      %507 = vector.broadcast %cst_104 : f32 to vector<8x128xf32>
      %c0_105 = arith.constant 0 : index
      %c0_106 = arith.constant 0 : index
      %508 = vector.load %arg9[%c0_105, %c0_106] : memref<8x128xf32, #tpu.memory_space<vmem>>, vector<8x128xf32>
      tpu.vector_store %arg9[%c0_105, %c0_106], %507 {strides = array<i32>} : memref<8x128xf32, #tpu.memory_space<vmem>>, vector<8x128xf32>,
      %cst_107 = arith.constant 0.000000e+00 : f32
      %509 = vector.broadcast %cst_107 : f32 to vector<8x128xf32>
      %c0_108 = arith.constant 0 : index
      %c0_109 = arith.constant 0 : index
      %510 = vector.load %arg10[%c0_108, %c0_109] : memref<8x128xf32, #tpu.memory_space<vmem>>, vector<8x128xf32>
      tpu.vector_store %arg10[%c0_108, %c0_109], %509 {strides = array<i32>} : memref<8x128xf32, #tpu.memory_space<vmem>>, vector<8x128xf32>,
      %cst_110 = arith.constant 0.000000e+00 : f32
      %511 = vector.broadcast %cst_110 : f32 to vector<8x128xf32>
      %c0_111 = arith.constant 0 : index
      %c0_112 = arith.constant 0 : index
      %512 = vector.load %arg11[%c0_111, %c0_112] : memref<8x128xf32, #tpu.memory_space<vmem>>, vector<8x128xf32>
      tpu.vector_store %arg11[%c0_111, %c0_112], %511 {strides = array<i32>} : memref<8x128xf32, #tpu.memory_space<vmem>>, vector<8x128xf32>,
      %cst_113 = arith.constant 0.000000e+00 : f32
      %513 = vector.broadcast %cst_113 : f32 to vector<8x128xf32>
      %c0_114 = arith.constant 0 : index
      %c0_115 = arith.constant 0 : index
      %514 = vector.load %arg12[%c0_114, %c0_115] : memref<8x128xf32, #tpu.memory_space<vmem>>, vector<8x128xf32>
      tpu.vector_store %arg12[%c0_114, %c0_115], %513 {strides = array<i32>} : memref<8x128xf32, #tpu.memory_space<vmem>>, vector<8x128xf32>,
    } else {
    }
    %c0 = arith.constant 0 : index
    %c0_1 = arith.constant 0 : index
    %3 = vector.load %arg3[%c0, %c0_1] : memref<128x512xbf16, #tpu.memory_space<vmem>>, vector<128x512xbf16>
    %c0_2 = arith.constant 0 : index
    %c0_3 = arith.constant 0 : index
    %4 = vector.load %arg4[%c0_2, %c0_3] : memref<256x512xbf16, #tpu.memory_space<vmem>>, vector<256x512xbf16>
    %c0_4 = arith.constant 0 : index
    %c0_5 = arith.constant 0 : index
    %5 = vector.load %arg5[%c0_4, %c0_5] : memref<1x512xf32, #tpu.memory_space<vmem>>, vector<1x512xf32>
    %6 = vector.shape_cast %5 : vector<1x512xf32> to vector<1x512xf32>
    %7 = vector.broadcast %6 : vector<1x512xf32> to vector<8x512xf32>
    %c0_6 = arith.constant 0 : index
    %c0_7 = arith.constant 0 : index
    %8 = vector.load %arg9[%c0_6, %c0_7] : memref<8x128xf32, #tpu.memory_space<vmem>>, vector<8x128xf32>
    %c0_8 = arith.constant 0 : index
    %c0_9 = arith.constant 0 : index
    %9 = vector.load %arg10[%c0_8, %c0_9] : memref<8x128xf32, #tpu.memory_space<vmem>>, vector<8x128xf32>
    %c0_10 = arith.constant 0 : index
    %c0_11 = arith.constant 0 : index
    %10 = vector.load %arg11[%c0_10, %c0_11] : memref<8x128xf32, #tpu.memory_space<vmem>>, vector<8x128xf32>
    %c0_12 = arith.constant 0 : index
    %c0_13 = arith.constant 0 : index
    %11 = vector.load %arg12[%c0_12, %c0_13] : memref<8x128xf32, #tpu.memory_space<vmem>>, vector<8x128xf32>
    %c0_i32_14 = arith.constant 0 : i32
    %12 = arith.truncf %8 : vector<8x128xf32> to vector<8x128xbf16>
    %cst = arith.constant dense<0.000000e+00> : vector<8x512xf32>
    %13 = tpu.matmul %12, %3, %cst {dimension_numbers = #tpu.dot_dimension_numbers<[1], [0], [0], [1], [0, 0, 1, 1], [], []>} : vector<8x128xbf16>, vector<128x512xbf16>, vector<8x512xf32> -> vector<8x512xf32>
    %14 = arith.index_cast %c0_i32_14 : i32 to index
    %c0_15 = arith.constant 0 : index
    %c0_16 = arith.constant 0 : index
    %15 = vector.load %arg2[%14, %c0_15, %c0_16] : memref<8x8x512xf32, #tpu.memory_space<vmem>>, vector<1x8x512xf32>
    %16 = vector.shape_cast %15 : vector<1x8x512xf32> to vector<8x512xf32>
    %17 = arith.addf %13, %16 : vector<8x512xf32>
    %18 = vector.extract_strided_slice %17 {offsets = [0, 0], sizes = [8, 128], strides = [1, 1]} : vector<8x512xf32> to vector<8x128xf32>
    %19 = arith.negf %18 : vector<8x128xf32>
    %20 = math.exp %19 : vector<8x128xf32>
    %cst_17 = arith.constant 1.000000e+00 : f32
    %21 = vector.broadcast %cst_17 : f32 to vector<8x128xf32>
    %22 = arith.addf %21, %20 : vector<8x128xf32>
    %23 = arith.divf %21, %22 : vector<8x128xf32>
    %24 = vector.extract_strided_slice %17 {offsets = [0, 128], sizes = [8, 128], strides = [1, 1]} : vector<8x512xf32> to vector<8x128xf32>
    %25 = arith.negf %24 : vector<8x128xf32>
    %26 = math.exp %25 : vector<8x128xf32>
    %cst_18 = arith.constant 1.000000e+00 : f32
    %27 = vector.broadcast %cst_18 : f32 to vector<8x128xf32>
    %28 = arith.addf %27, %26 : vector<8x128xf32>
    %29 = arith.divf %27, %28 : vector<8x128xf32>
    %30 = vector.extract_strided_slice %17 {offsets = [0, 256], sizes = [8, 128], strides = [1, 1]} : vector<8x512xf32> to vector<8x128xf32>
    %31 = math.tanh %30 : vector<8x128xf32>
    %32 = vector.extract_strided_slice %17 {offsets = [0, 384], sizes = [8, 128], strides = [1, 1]} : vector<8x512xf32> to vector<8x128xf32>
    %33 = arith.negf %32 : vector<8x128xf32>
    %34 = math.exp %33 : vector<8x128xf32>
    %cst_19 = arith.constant 1.000000e+00 : f32
    %35 = vector.broadcast %cst_19 : f32 to vector<8x128xf32>
    %36 = arith.addf %35, %34 : vector<8x128xf32>
    %37 = arith.divf %35, %36 : vector<8x128xf32>
    %38 = arith.mulf %29, %9 : vector<8x128xf32>
    %39 = arith.mulf %23, %31 : vector<8x128xf32>
    %40 = arith.addf %38, %39 : vector<8x128xf32>
    %41 = math.tanh %40 : vector<8x128xf32>
    %42 = arith.mulf %37, %41 : vector<8x128xf32>
    %43 = arith.truncf %42 : vector<8x128xf32> to vector<8x128xbf16>
    %44 = arith.truncf %10 : vector<8x128xf32> to vector<8x128xbf16>
    %45 = tpu.concatenate %43, %44 in 1 : vector<8x128xbf16>, vector<8x128xbf16> -> vector<8x256xbf16>
    %cst_20 = arith.constant dense<0.000000e+00> : vector<8x512xf32>
    %46 = tpu.matmul %45, %4, %cst_20 {dimension_numbers = #tpu.dot_dimension_numbers<[1], [0], [0], [1], [0, 0, 1, 1], [], []>} : vector<8x256xbf16>, vector<256x512xbf16>, vector<8x512xf32> -> vector<8x512xf32>
    %47 = arith.addf %46, %7 : vector<8x512xf32>
    %48 = vector.extract_strided_slice %47 {offsets = [0, 0], sizes = [8, 128], strides = [1, 1]} : vector<8x512xf32> to vector<8x128xf32>
    %49 = arith.negf %48 : vector<8x128xf32>
    %50 = math.exp %49 : vector<8x128xf32>
    %cst_21 = arith.constant 1.000000e+00 : f32
    %51 = vector.broadcast %cst_21 : f32 to vector<8x128xf32>
    %52 = arith.addf %51, %50 : vector<8x128xf32>
    %53 = arith.divf %51, %52 : vector<8x128xf32>
    %54 = vector.extract_strided_slice %47 {offsets = [0, 128], sizes = [8, 128], strides = [1, 1]} : vector<8x512xf32> to vector<8x128xf32>
    %55 = arith.negf %54 : vector<8x128xf32>
    %56 = math.exp %55 : vector<8x128xf32>
    %cst_22 = arith.constant 1.000000e+00 : f32
    %57 = vector.broadcast %cst_22 : f32 to vector<8x128xf32>
    %58 = arith.addf %57, %56 : vector<8x128xf32>
    %59 = arith.divf %57, %58 : vector<8x128xf32>
    %60 = vector.extract_strided_slice %47 {offsets = [0, 256], sizes = [8, 128], strides = [1, 1]} : vector<8x512xf32> to vector<8x128xf32>
    %61 = math.tanh %60 : vector<8x128xf32>
    %62 = vector.extract_strided_slice %47 {offsets = [0, 384], sizes = [8, 128], strides = [1, 1]} : vector<8x512xf32> to vector<8x128xf32>
    %63 = arith.negf %62 : vector<8x128xf32>
    %64 = math.exp %63 : vector<8x128xf32>
    %cst_23 = arith.constant 1.000000e+00 : f32
    %65 = vector.broadcast %cst_23 : f32 to vector<8x128xf32>
    %66 = arith.addf %65, %64 : vector<8x128xf32>
    %67 = arith.divf %65, %66 : vector<8x128xf32>
    %68 = arith.mulf %59, %11 : vector<8x128xf32>
    %69 = arith.mulf %53, %61 : vector<8x128xf32>
    %70 = arith.addf %68, %69 : vector<8x128xf32>
    %71 = math.tanh %70 : vector<8x128xf32>
    %72 = arith.mulf %67, %71 : vector<8x128xf32>
    %c1_i32 = arith.constant 1 : i32
    %73 = arith.truncf %42 : vector<8x128xf32> to vector<8x128xbf16>
    %cst_24 = arith.constant dense<0.000000e+00> : vector<8x512xf32>
    %74 = tpu.matmul %73, %3, %cst_24 {dimension_numbers = #tpu.dot_dimension_numbers<[1], [0], [0], [1], [0, 0, 1, 1], [], []>} : vector<8x128xbf16>, vector<128x512xbf16>, vector<8x512xf32> -> vector<8x512xf32>
    %75 = arith.index_cast %c1_i32 : i32 to index
    %c0_25 = arith.constant 0 : index
    %c0_26 = arith.constant 0 : index
    %76 = vector.load %arg2[%75, %c0_25, %c0_26] : memref<8x8x512xf32, #tpu.memory_space<vmem>>, vector<1x8x512xf32>
    %77 = vector.shape_cast %76 : vector<1x8x512xf32> to vector<8x512xf32>
    %78 = arith.addf %74, %77 : vector<8x512xf32>
    %79 = vector.extract_strided_slice %78 {offsets = [0, 0], sizes = [8, 128], strides = [1, 1]} : vector<8x512xf32> to vector<8x128xf32>
    %80 = arith.negf %79 : vector<8x128xf32>
    %81 = math.exp %80 : vector<8x128xf32>
    %cst_27 = arith.constant 1.000000e+00 : f32
    %82 = vector.broadcast %cst_27 : f32 to vector<8x128xf32>
    %83 = arith.addf %82, %81 : vector<8x128xf32>
    %84 = arith.divf %82, %83 : vector<8x128xf32>
    %85 = vector.extract_strided_slice %78 {offsets = [0, 128], sizes = [8, 128], strides = [1, 1]} : vector<8x512xf32> to vector<8x128xf32>
    %86 = arith.negf %85 : vector<8x128xf32>
    %87 = math.exp %86 : vector<8x128xf32>
    %cst_28 = arith.constant 1.000000e+00 : f32
    %88 = vector.broadcast %cst_28 : f32 to vector<8x128xf32>
    %89 = arith.addf %88, %87 : vector<8x128xf32>
    %90 = arith.divf %88, %89 : vector<8x128xf32>
    %91 = vector.extract_strided_slice %78 {offsets = [0, 256], sizes = [8, 128], strides = [1, 1]} : vector<8x512xf32> to vector<8x128xf32>
    %92 = math.tanh %91 : vector<8x128xf32>
    %93 = vector.extract_strided_slice %78 {offsets = [0, 384], sizes = [8, 128], strides = [1, 1]} : vector<8x512xf32> to vector<8x128xf32>
    %94 = arith.negf %93 : vector<8x128xf32>
    %95 = math.exp %94 : vector<8x128xf32>
    %cst_29 = arith.constant 1.000000e+00 : f32
    %96 = vector.broadcast %cst_29 : f32 to vector<8x128xf32>
    %97 = arith.addf %96, %95 : vector<8x128xf32>
    %98 = arith.divf %96, %97 : vector<8x128xf32>
    %99 = arith.mulf %90, %40 : vector<8x128xf32>
    %100 = arith.mulf %84, %92 : vector<8x128xf32>
    %101 = arith.addf %99, %100 : vector<8x128xf32>
    %102 = math.tanh %101 : vector<8x128xf32>
    %103 = arith.mulf %98, %102 : vector<8x128xf32>
    %104 = arith.truncf %103 : vector<8x128xf32> to vector<8x128xbf16>
    %105 = arith.truncf %72 : vector<8x128xf32> to vector<8x128xbf16>
    %106 = tpu.concatenate %104, %105 in 1 : vector<8x128xbf16>, vector<8x128xbf16> -> vector<8x256xbf16>
    %cst_30 = arith.constant dense<0.000000e+00> : vector<8x512xf32>
    %107 = tpu.matmul %106, %4, %cst_30 {dimension_numbers = #tpu.dot_dimension_numbers<[1], [0], [0], [1], [0, 0, 1, 1], [], []>} : vector<8x256xbf16>, vector<256x512xbf16>, vector<8x512xf32> -> vector<8x512xf32>
    %108 = arith.addf %107, %7 : vector<8x512xf32>
    %109 = vector.extract_strided_slice %108 {offsets = [0, 0], sizes = [8, 128], strides = [1, 1]} : vector<8x512xf32> to vector<8x128xf32>
    %110 = arith.negf %109 : vector<8x128xf32>
    %111 = math.exp %110 : vector<8x128xf32>
    %cst_31 = arith.constant 1.000000e+00 : f32
    %112 = vector.broadcast %cst_31 : f32 to vector<8x128xf32>
    %113 = arith.addf %112, %111 : vector<8x128xf32>
    %114 = arith.divf %112, %113 : vector<8x128xf32>
    %115 = vector.extract_strided_slice %108 {offsets = [0, 128], sizes = [8, 128], strides = [1, 1]} : vector<8x512xf32> to vector<8x128xf32>
    %116 = arith.negf %115 : vector<8x128xf32>
    %117 = math.exp %116 : vector<8x128xf32>
    %cst_32 = arith.constant 1.000000e+00 : f32
    %118 = vector.broadcast %cst_32 : f32 to vector<8x128xf32>
    %119 = arith.addf %118, %117 : vector<8x128xf32>
    %120 = arith.divf %118, %119 : vector<8x128xf32>
    %121 = vector.extract_strided_slice %108 {offsets = [0, 256], sizes = [8, 128], strides = [1, 1]} : vector<8x512xf32> to vector<8x128xf32>
    %122 = math.tanh %121 : vector<8x128xf32>
    %123 = vector.extract_strided_slice %108 {offsets = [0, 384], sizes = [8, 128], strides = [1, 1]} : vector<8x512xf32> to vector<8x128xf32>
    %124 = arith.negf %123 : vector<8x128xf32>
    %125 = math.exp %124 : vector<8x128xf32>
    %cst_33 = arith.constant 1.000000e+00 : f32
    %126 = vector.broadcast %cst_33 : f32 to vector<8x128xf32>
    %127 = arith.addf %126, %125 : vector<8x128xf32>
    %128 = arith.divf %126, %127 : vector<8x128xf32>
    %129 = arith.mulf %120, %70 : vector<8x128xf32>
    %130 = arith.mulf %114, %122 : vector<8x128xf32>
    %131 = arith.addf %129, %130 : vector<8x128xf32>
    %132 = math.tanh %131 : vector<8x128xf32>
    %133 = arith.mulf %128, %132 : vector<8x128xf32>
    %c2_i32 = arith.constant 2 : i32
    %134 = arith.truncf %103 : vector<8x128xf32> to vector<8x128xbf16>
    %cst_34 = arith.constant dense<0.000000e+00> : vector<8x512xf32>
    %135 = tpu.matmul %134, %3, %cst_34 {dimension_numbers = #tpu.dot_dimension_numbers<[1], [0], [0], [1], [0, 0, 1, 1], [], []>} : vector<8x128xbf16>, vector<128x512xbf16>, vector<8x512xf32> -> vector<8x512xf32>
    %136 = arith.index_cast %c2_i32 : i32 to index
    %c0_35 = arith.constant 0 : index
    %c0_36 = arith.constant 0 : index
    %137 = vector.load %arg2[%136, %c0_35, %c0_36] : memref<8x8x512xf32, #tpu.memory_space<vmem>>, vector<1x8x512xf32>
    %138 = vector.shape_cast %137 : vector<1x8x512xf32> to vector<8x512xf32>
    %139 = arith.addf %135, %138 : vector<8x512xf32>
    %140 = vector.extract_strided_slice %139 {offsets = [0, 0], sizes = [8, 128], strides = [1, 1]} : vector<8x512xf32> to vector<8x128xf32>
    %141 = arith.negf %140 : vector<8x128xf32>
    %142 = math.exp %141 : vector<8x128xf32>
    %cst_37 = arith.constant 1.000000e+00 : f32
    %143 = vector.broadcast %cst_37 : f32 to vector<8x128xf32>
    %144 = arith.addf %143, %142 : vector<8x128xf32>
    %145 = arith.divf %143, %144 : vector<8x128xf32>
    %146 = vector.extract_strided_slice %139 {offsets = [0, 128], sizes = [8, 128], strides = [1, 1]} : vector<8x512xf32> to vector<8x128xf32>
    %147 = arith.negf %146 : vector<8x128xf32>
    %148 = math.exp %147 : vector<8x128xf32>
    %cst_38 = arith.constant 1.000000e+00 : f32
    %149 = vector.broadcast %cst_38 : f32 to vector<8x128xf32>
    %150 = arith.addf %149, %148 : vector<8x128xf32>
    %151 = arith.divf %149, %150 : vector<8x128xf32>
    %152 = vector.extract_strided_slice %139 {offsets = [0, 256], sizes = [8, 128], strides = [1, 1]} : vector<8x512xf32> to vector<8x128xf32>
    %153 = math.tanh %152 : vector<8x128xf32>
    %154 = vector.extract_strided_slice %139 {offsets = [0, 384], sizes = [8, 128], strides = [1, 1]} : vector<8x512xf32> to vector<8x128xf32>
    %155 = arith.negf %154 : vector<8x128xf32>
    %156 = math.exp %155 : vector<8x128xf32>
    %cst_39 = arith.constant 1.000000e+00 : f32
    %157 = vector.broadcast %cst_39 : f32 to vector<8x128xf32>
    %158 = arith.addf %157, %156 : vector<8x128xf32>
    %159 = arith.divf %157, %158 : vector<8x128xf32>
    %160 = arith.mulf %151, %101 : vector<8x128xf32>
    %161 = arith.mulf %145, %153 : vector<8x128xf32>
    %162 = arith.addf %160, %161 : vector<8x128xf32>
    %163 = math.tanh %162 : vector<8x128xf32>
    %164 = arith.mulf %159, %163 : vector<8x128xf32>
    %165 = arith.truncf %164 : vector<8x128xf32> to vector<8x128xbf16>
    %166 = arith.truncf %133 : vector<8x128xf32> to vector<8x128xbf16>
    %167 = tpu.concatenate %165, %166 in 1 : vector<8x128xbf16>, vector<8x128xbf16> -> vector<8x256xbf16>
    %cst_40 = arith.constant dense<0.000000e+00> : vector<8x512xf32>
    %168 = tpu.matmul %167, %4, %cst_40 {dimension_numbers = #tpu.dot_dimension_numbers<[1], [0], [0], [1], [0, 0, 1, 1], [], []>} : vector<8x256xbf16>, vector<256x512xbf16>, vector<8x512xf32> -> vector<8x512xf32>
    %169 = arith.addf %168, %7 : vector<8x512xf32>
    %170 = vector.extract_strided_slice %169 {offsets = [0, 0], sizes = [8, 128], strides = [1, 1]} : vector<8x512xf32> to vector<8x128xf32>
    %171 = arith.negf %170 : vector<8x128xf32>
    %172 = math.exp %171 : vector<8x128xf32>
    %cst_41 = arith.constant 1.000000e+00 : f32
    %173 = vector.broadcast %cst_41 : f32 to vector<8x128xf32>
    %174 = arith.addf %173, %172 : vector<8x128xf32>
    %175 = arith.divf %173, %174 : vector<8x128xf32>
    %176 = vector.extract_strided_slice %169 {offsets = [0, 128], sizes = [8, 128], strides = [1, 1]} : vector<8x512xf32> to vector<8x128xf32>
    %177 = arith.negf %176 : vector<8x128xf32>
    %178 = math.exp %177 : vector<8x128xf32>
    %cst_42 = arith.constant 1.000000e+00 : f32
    %179 = vector.broadcast %cst_42 : f32 to vector<8x128xf32>
    %180 = arith.addf %179, %178 : vector<8x128xf32>
    %181 = arith.divf %179, %180 : vector<8x128xf32>
    %182 = vector.extract_strided_slice %169 {offsets = [0, 256], sizes = [8, 128], strides = [1, 1]} : vector<8x512xf32> to vector<8x128xf32>
    %183 = math.tanh %182 : vector<8x128xf32>
    %184 = vector.extract_strided_slice %169 {offsets = [0, 384], sizes = [8, 128], strides = [1, 1]} : vector<8x512xf32> to vector<8x128xf32>
    %185 = arith.negf %184 : vector<8x128xf32>
    %186 = math.exp %185 : vector<8x128xf32>
    %cst_43 = arith.constant 1.000000e+00 : f32
    %187 = vector.broadcast %cst_43 : f32 to vector<8x128xf32>
    %188 = arith.addf %187, %186 : vector<8x128xf32>
    %189 = arith.divf %187, %188 : vector<8x128xf32>
    %190 = arith.mulf %181, %131 : vector<8x128xf32>
    %191 = arith.mulf %175, %183 : vector<8x128xf32>
    %192 = arith.addf %190, %191 : vector<8x128xf32>
    %193 = math.tanh %192 : vector<8x128xf32>
    %194 = arith.mulf %189, %193 : vector<8x128xf32>
    %c3_i32 = arith.constant 3 : i32
    %195 = arith.truncf %164 : vector<8x128xf32> to vector<8x128xbf16>
    %cst_44 = arith.constant dense<0.000000e+00> : vector<8x512xf32>
    %196 = tpu.matmul %195, %3, %cst_44 {dimension_numbers = #tpu.dot_dimension_numbers<[1], [0], [0], [1], [0, 0, 1, 1], [], []>} : vector<8x128xbf16>, vector<128x512xbf16>, vector<8x512xf32> -> vector<8x512xf32>
    %197 = arith.index_cast %c3_i32 : i32 to index
    %c0_45 = arith.constant 0 : index
    %c0_46 = arith.constant 0 : index
    %198 = vector.load %arg2[%197, %c0_45, %c0_46] : memref<8x8x512xf32, #tpu.memory_space<vmem>>, vector<1x8x512xf32>
    %199 = vector.shape_cast %198 : vector<1x8x512xf32> to vector<8x512xf32>
    %200 = arith.addf %196, %199 : vector<8x512xf32>
    %201 = vector.extract_strided_slice %200 {offsets = [0, 0], sizes = [8, 128], strides = [1, 1]} : vector<8x512xf32> to vector<8x128xf32>
    %202 = arith.negf %201 : vector<8x128xf32>
    %203 = math.exp %202 : vector<8x128xf32>
    %cst_47 = arith.constant 1.000000e+00 : f32
    %204 = vector.broadcast %cst_47 : f32 to vector<8x128xf32>
    %205 = arith.addf %204, %203 : vector<8x128xf32>
    %206 = arith.divf %204, %205 : vector<8x128xf32>
    %207 = vector.extract_strided_slice %200 {offsets = [0, 128], sizes = [8, 128], strides = [1, 1]} : vector<8x512xf32> to vector<8x128xf32>
    %208 = arith.negf %207 : vector<8x128xf32>
    %209 = math.exp %208 : vector<8x128xf32>
    %cst_48 = arith.constant 1.000000e+00 : f32
    %210 = vector.broadcast %cst_48 : f32 to vector<8x128xf32>
    %211 = arith.addf %210, %209 : vector<8x128xf32>
    %212 = arith.divf %210, %211 : vector<8x128xf32>
    %213 = vector.extract_strided_slice %200 {offsets = [0, 256], sizes = [8, 128], strides = [1, 1]} : vector<8x512xf32> to vector<8x128xf32>
    %214 = math.tanh %213 : vector<8x128xf32>
    %215 = vector.extract_strided_slice %200 {offsets = [0, 384], sizes = [8, 128], strides = [1, 1]} : vector<8x512xf32> to vector<8x128xf32>
    %216 = arith.negf %215 : vector<8x128xf32>
    %217 = math.exp %216 : vector<8x128xf32>
    %cst_49 = arith.constant 1.000000e+00 : f32
    %218 = vector.broadcast %cst_49 : f32 to vector<8x128xf32>
    %219 = arith.addf %218, %217 : vector<8x128xf32>
    %220 = arith.divf %218, %219 : vector<8x128xf32>
    %221 = arith.mulf %212, %162 : vector<8x128xf32>
    %222 = arith.mulf %206, %214 : vector<8x128xf32>
    %223 = arith.addf %221, %222 : vector<8x128xf32>
    %224 = math.tanh %223 : vector<8x128xf32>
    %225 = arith.mulf %220, %224 : vector<8x128xf32>
    %226 = arith.truncf %225 : vector<8x128xf32> to vector<8x128xbf16>
    %227 = arith.truncf %194 : vector<8x128xf32> to vector<8x128xbf16>
    %228 = tpu.concatenate %226, %227 in 1 : vector<8x128xbf16>, vector<8x128xbf16> -> vector<8x256xbf16>
    %cst_50 = arith.constant dense<0.000000e+00> : vector<8x512xf32>
    %229 = tpu.matmul %228, %4, %cst_50 {dimension_numbers = #tpu.dot_dimension_numbers<[1], [0], [0], [1], [0, 0, 1, 1], [], []>} : vector<8x256xbf16>, vector<256x512xbf16>, vector<8x512xf32> -> vector<8x512xf32>
    %230 = arith.addf %229, %7 : vector<8x512xf32>
    %231 = vector.extract_strided_slice %230 {offsets = [0, 0], sizes = [8, 128], strides = [1, 1]} : vector<8x512xf32> to vector<8x128xf32>
    %232 = arith.negf %231 : vector<8x128xf32>
    %233 = math.exp %232 : vector<8x128xf32>
    %cst_51 = arith.constant 1.000000e+00 : f32
    %234 = vector.broadcast %cst_51 : f32 to vector<8x128xf32>
    %235 = arith.addf %234, %233 : vector<8x128xf32>
    %236 = arith.divf %234, %235 : vector<8x128xf32>
    %237 = vector.extract_strided_slice %230 {offsets = [0, 128], sizes = [8, 128], strides = [1, 1]} : vector<8x512xf32> to vector<8x128xf32>
    %238 = arith.negf %237 : vector<8x128xf32>
    %239 = math.exp %238 : vector<8x128xf32>
    %cst_52 = arith.constant 1.000000e+00 : f32
    %240 = vector.broadcast %cst_52 : f32 to vector<8x128xf32>
    %241 = arith.addf %240, %239 : vector<8x128xf32>
    %242 = arith.divf %240, %241 : vector<8x128xf32>
    %243 = vector.extract_strided_slice %230 {offsets = [0, 256], sizes = [8, 128], strides = [1, 1]} : vector<8x512xf32> to vector<8x128xf32>
    %244 = math.tanh %243 : vector<8x128xf32>
    %245 = vector.extract_strided_slice %230 {offsets = [0, 384], sizes = [8, 128], strides = [1, 1]} : vector<8x512xf32> to vector<8x128xf32>
    %246 = arith.negf %245 : vector<8x128xf32>
    %247 = math.exp %246 : vector<8x128xf32>
    %cst_53 = arith.constant 1.000000e+00 : f32
    %248 = vector.broadcast %cst_53 : f32 to vector<8x128xf32>
    %249 = arith.addf %248, %247 : vector<8x128xf32>
    %250 = arith.divf %248, %249 : vector<8x128xf32>
    %251 = arith.mulf %242, %192 : vector<8x128xf32>
    %252 = arith.mulf %236, %244 : vector<8x128xf32>
    %253 = arith.addf %251, %252 : vector<8x128xf32>
    %254 = math.tanh %253 : vector<8x128xf32>
    %255 = arith.mulf %250, %254 : vector<8x128xf32>
    %c4_i32 = arith.constant 4 : i32
    %256 = arith.truncf %225 : vector<8x128xf32> to vector<8x128xbf16>
    %cst_54 = arith.constant dense<0.000000e+00> : vector<8x512xf32>
    %257 = tpu.matmul %256, %3, %cst_54 {dimension_numbers = #tpu.dot_dimension_numbers<[1], [0], [0], [1], [0, 0, 1, 1], [], []>} : vector<8x128xbf16>, vector<128x512xbf16>, vector<8x512xf32> -> vector<8x512xf32>
    %258 = arith.index_cast %c4_i32 : i32 to index
    %c0_55 = arith.constant 0 : index
    %c0_56 = arith.constant 0 : index
    %259 = vector.load %arg2[%258, %c0_55, %c0_56] : memref<8x8x512xf32, #tpu.memory_space<vmem>>, vector<1x8x512xf32>
    %260 = vector.shape_cast %259 : vector<1x8x512xf32> to vector<8x512xf32>
    %261 = arith.addf %257, %260 : vector<8x512xf32>
    %262 = vector.extract_strided_slice %261 {offsets = [0, 0], sizes = [8, 128], strides = [1, 1]} : vector<8x512xf32> to vector<8x128xf32>
    %263 = arith.negf %262 : vector<8x128xf32>
    %264 = math.exp %263 : vector<8x128xf32>
    %cst_57 = arith.constant 1.000000e+00 : f32
    %265 = vector.broadcast %cst_57 : f32 to vector<8x128xf32>
    %266 = arith.addf %265, %264 : vector<8x128xf32>
    %267 = arith.divf %265, %266 : vector<8x128xf32>
    %268 = vector.extract_strided_slice %261 {offsets = [0, 128], sizes = [8, 128], strides = [1, 1]} : vector<8x512xf32> to vector<8x128xf32>
    %269 = arith.negf %268 : vector<8x128xf32>
    %270 = math.exp %269 : vector<8x128xf32>
    %cst_58 = arith.constant 1.000000e+00 : f32
    %271 = vector.broadcast %cst_58 : f32 to vector<8x128xf32>
    %272 = arith.addf %271, %270 : vector<8x128xf32>
    %273 = arith.divf %271, %272 : vector<8x128xf32>
    %274 = vector.extract_strided_slice %261 {offsets = [0, 256], sizes = [8, 128], strides = [1, 1]} : vector<8x512xf32> to vector<8x128xf32>
    %275 = math.tanh %274 : vector<8x128xf32>
    %276 = vector.extract_strided_slice %261 {offsets = [0, 384], sizes = [8, 128], strides = [1, 1]} : vector<8x512xf32> to vector<8x128xf32>
    %277 = arith.negf %276 : vector<8x128xf32>
    %278 = math.exp %277 : vector<8x128xf32>
    %cst_59 = arith.constant 1.000000e+00 : f32
    %279 = vector.broadcast %cst_59 : f32 to vector<8x128xf32>
    %280 = arith.addf %279, %278 : vector<8x128xf32>
    %281 = arith.divf %279, %280 : vector<8x128xf32>
    %282 = arith.mulf %273, %223 : vector<8x128xf32>
    %283 = arith.mulf %267, %275 : vector<8x128xf32>
    %284 = arith.addf %282, %283 : vector<8x128xf32>
    %285 = math.tanh %284 : vector<8x128xf32>
    %286 = arith.mulf %281, %285 : vector<8x128xf32>
    %287 = arith.truncf %286 : vector<8x128xf32> to vector<8x128xbf16>
    %288 = arith.truncf %255 : vector<8x128xf32> to vector<8x128xbf16>
    %289 = tpu.concatenate %287, %288 in 1 : vector<8x128xbf16>, vector<8x128xbf16> -> vector<8x256xbf16>
    %cst_60 = arith.constant dense<0.000000e+00> : vector<8x512xf32>
    %290 = tpu.matmul %289, %4, %cst_60 {dimension_numbers = #tpu.dot_dimension_numbers<[1], [0], [0], [1], [0, 0, 1, 1], [], []>} : vector<8x256xbf16>, vector<256x512xbf16>, vector<8x512xf32> -> vector<8x512xf32>
    %291 = arith.addf %290, %7 : vector<8x512xf32>
    %292 = vector.extract_strided_slice %291 {offsets = [0, 0], sizes = [8, 128], strides = [1, 1]} : vector<8x512xf32> to vector<8x128xf32>
    %293 = arith.negf %292 : vector<8x128xf32>
    %294 = math.exp %293 : vector<8x128xf32>
    %cst_61 = arith.constant 1.000000e+00 : f32
    %295 = vector.broadcast %cst_61 : f32 to vector<8x128xf32>
    %296 = arith.addf %295, %294 : vector<8x128xf32>
    %297 = arith.divf %295, %296 : vector<8x128xf32>
    %298 = vector.extract_strided_slice %291 {offsets = [0, 128], sizes = [8, 128], strides = [1, 1]} : vector<8x512xf32> to vector<8x128xf32>
    %299 = arith.negf %298 : vector<8x128xf32>
    %300 = math.exp %299 : vector<8x128xf32>
    %cst_62 = arith.constant 1.000000e+00 : f32
    %301 = vector.broadcast %cst_62 : f32 to vector<8x128xf32>
    %302 = arith.addf %301, %300 : vector<8x128xf32>
    %303 = arith.divf %301, %302 : vector<8x128xf32>
    %304 = vector.extract_strided_slice %291 {offsets = [0, 256], sizes = [8, 128], strides = [1, 1]} : vector<8x512xf32> to vector<8x128xf32>
    %305 = math.tanh %304 : vector<8x128xf32>
    %306 = vector.extract_strided_slice %291 {offsets = [0, 384], sizes = [8, 128], strides = [1, 1]} : vector<8x512xf32> to vector<8x128xf32>
    %307 = arith.negf %306 : vector<8x128xf32>
    %308 = math.exp %307 : vector<8x128xf32>
    %cst_63 = arith.constant 1.000000e+00 : f32
    %309 = vector.broadcast %cst_63 : f32 to vector<8x128xf32>
    %310 = arith.addf %309, %308 : vector<8x128xf32>
    %311 = arith.divf %309, %310 : vector<8x128xf32>
    %312 = arith.mulf %303, %253 : vector<8x128xf32>
    %313 = arith.mulf %297, %305 : vector<8x128xf32>
    %314 = arith.addf %312, %313 : vector<8x128xf32>
    %315 = math.tanh %314 : vector<8x128xf32>
    %316 = arith.mulf %311, %315 : vector<8x128xf32>
    %c5_i32 = arith.constant 5 : i32
    %317 = arith.truncf %286 : vector<8x128xf32> to vector<8x128xbf16>
    %cst_64 = arith.constant dense<0.000000e+00> : vector<8x512xf32>
    %318 = tpu.matmul %317, %3, %cst_64 {dimension_numbers = #tpu.dot_dimension_numbers<[1], [0], [0], [1], [0, 0, 1, 1], [], []>} : vector<8x128xbf16>, vector<128x512xbf16>, vector<8x512xf32> -> vector<8x512xf32>
    %319 = arith.index_cast %c5_i32 : i32 to index
    %c0_65 = arith.constant 0 : index
    %c0_66 = arith.constant 0 : index
    %320 = vector.load %arg2[%319, %c0_65, %c0_66] : memref<8x8x512xf32, #tpu.memory_space<vmem>>, vector<1x8x512xf32>
    %321 = vector.shape_cast %320 : vector<1x8x512xf32> to vector<8x512xf32>
    %322 = arith.addf %318, %321 : vector<8x512xf32>
    %323 = vector.extract_strided_slice %322 {offsets = [0, 0], sizes = [8, 128], strides = [1, 1]} : vector<8x512xf32> to vector<8x128xf32>
    %324 = arith.negf %323 : vector<8x128xf32>
    %325 = math.exp %324 : vector<8x128xf32>
    %cst_67 = arith.constant 1.000000e+00 : f32
    %326 = vector.broadcast %cst_67 : f32 to vector<8x128xf32>
    %327 = arith.addf %326, %325 : vector<8x128xf32>
    %328 = arith.divf %326, %327 : vector<8x128xf32>
    %329 = vector.extract_strided_slice %322 {offsets = [0, 128], sizes = [8, 128], strides = [1, 1]} : vector<8x512xf32> to vector<8x128xf32>
    %330 = arith.negf %329 : vector<8x128xf32>
    %331 = math.exp %330 : vector<8x128xf32>
    %cst_68 = arith.constant 1.000000e+00 : f32
    %332 = vector.broadcast %cst_68 : f32 to vector<8x128xf32>
    %333 = arith.addf %332, %331 : vector<8x128xf32>
    %334 = arith.divf %332, %333 : vector<8x128xf32>
    %335 = vector.extract_strided_slice %322 {offsets = [0, 256], sizes = [8, 128], strides = [1, 1]} : vector<8x512xf32> to vector<8x128xf32>
    %336 = math.tanh %335 : vector<8x128xf32>
    %337 = vector.extract_strided_slice %322 {offsets = [0, 384], sizes = [8, 128], strides = [1, 1]} : vector<8x512xf32> to vector<8x128xf32>
    %338 = arith.negf %337 : vector<8x128xf32>
    %339 = math.exp %338 : vector<8x128xf32>
    %cst_69 = arith.constant 1.000000e+00 : f32
    %340 = vector.broadcast %cst_69 : f32 to vector<8x128xf32>
    %341 = arith.addf %340, %339 : vector<8x128xf32>
    %342 = arith.divf %340, %341 : vector<8x128xf32>
    %343 = arith.mulf %334, %284 : vector<8x128xf32>
    %344 = arith.mulf %328, %336 : vector<8x128xf32>
    %345 = arith.addf %343, %344 : vector<8x128xf32>
    %346 = math.tanh %345 : vector<8x128xf32>
    %347 = arith.mulf %342, %346 : vector<8x128xf32>
    %348 = arith.truncf %347 : vector<8x128xf32> to vector<8x128xbf16>
    %349 = arith.truncf %316 : vector<8x128xf32> to vector<8x128xbf16>
    %350 = tpu.concatenate %348, %349 in 1 : vector<8x128xbf16>, vector<8x128xbf16> -> vector<8x256xbf16>
    %cst_70 = arith.constant dense<0.000000e+00> : vector<8x512xf32>
    %351 = tpu.matmul %350, %4, %cst_70 {dimension_numbers = #tpu.dot_dimension_numbers<[1], [0], [0], [1], [0, 0, 1, 1], [], []>} : vector<8x256xbf16>, vector<256x512xbf16>, vector<8x512xf32> -> vector<8x512xf32>
    %352 = arith.addf %351, %7 : vector<8x512xf32>
    %353 = vector.extract_strided_slice %352 {offsets = [0, 0], sizes = [8, 128], strides = [1, 1]} : vector<8x512xf32> to vector<8x128xf32>
    %354 = arith.negf %353 : vector<8x128xf32>
    %355 = math.exp %354 : vector<8x128xf32>
    %cst_71 = arith.constant 1.000000e+00 : f32
    %356 = vector.broadcast %cst_71 : f32 to vector<8x128xf32>
    %357 = arith.addf %356, %355 : vector<8x128xf32>
    %358 = arith.divf %356, %357 : vector<8x128xf32>
    %359 = vector.extract_strided_slice %352 {offsets = [0, 128], sizes = [8, 128], strides = [1, 1]} : vector<8x512xf32> to vector<8x128xf32>
    %360 = arith.negf %359 : vector<8x128xf32>
    %361 = math.exp %360 : vector<8x128xf32>
    %cst_72 = arith.constant 1.000000e+00 : f32
    %362 = vector.broadcast %cst_72 : f32 to vector<8x128xf32>
    %363 = arith.addf %362, %361 : vector<8x128xf32>
    %364 = arith.divf %362, %363 : vector<8x128xf32>
    %365 = vector.extract_strided_slice %352 {offsets = [0, 256], sizes = [8, 128], strides = [1, 1]} : vector<8x512xf32> to vector<8x128xf32>
    %366 = math.tanh %365 : vector<8x128xf32>
    %367 = vector.extract_strided_slice %352 {offsets = [0, 384], sizes = [8, 128], strides = [1, 1]} : vector<8x512xf32> to vector<8x128xf32>
    %368 = arith.negf %367 : vector<8x128xf32>
    %369 = math.exp %368 : vector<8x128xf32>
    %cst_73 = arith.constant 1.000000e+00 : f32
    %370 = vector.broadcast %cst_73 : f32 to vector<8x128xf32>
    %371 = arith.addf %370, %369 : vector<8x128xf32>
    %372 = arith.divf %370, %371 : vector<8x128xf32>
    %373 = arith.mulf %364, %314 : vector<8x128xf32>
    %374 = arith.mulf %358, %366 : vector<8x128xf32>
    %375 = arith.addf %373, %374 : vector<8x128xf32>
    %376 = math.tanh %375 : vector<8x128xf32>
    %377 = arith.mulf %372, %376 : vector<8x128xf32>
    %c6_i32 = arith.constant 6 : i32
    %378 = arith.truncf %347 : vector<8x128xf32> to vector<8x128xbf16>
    %cst_74 = arith.constant dense<0.000000e+00> : vector<8x512xf32>
    %379 = tpu.matmul %378, %3, %cst_74 {dimension_numbers = #tpu.dot_dimension_numbers<[1], [0], [0], [1], [0, 0, 1, 1], [], []>} : vector<8x128xbf16>, vector<128x512xbf16>, vector<8x512xf32> -> vector<8x512xf32>
    %380 = arith.index_cast %c6_i32 : i32 to index
    %c0_75 = arith.constant 0 : index
    %c0_76 = arith.constant 0 : index
    %381 = vector.load %arg2[%380, %c0_75, %c0_76] : memref<8x8x512xf32, #tpu.memory_space<vmem>>, vector<1x8x512xf32>
    %382 = vector.shape_cast %381 : vector<1x8x512xf32> to vector<8x512xf32>
    %383 = arith.addf %379, %382 : vector<8x512xf32>
    %384 = vector.extract_strided_slice %383 {offsets = [0, 0], sizes = [8, 128], strides = [1, 1]} : vector<8x512xf32> to vector<8x128xf32>
    %385 = arith.negf %384 : vector<8x128xf32>
    %386 = math.exp %385 : vector<8x128xf32>
    %cst_77 = arith.constant 1.000000e+00 : f32
    %387 = vector.broadcast %cst_77 : f32 to vector<8x128xf32>
    %388 = arith.addf %387, %386 : vector<8x128xf32>
    %389 = arith.divf %387, %388 : vector<8x128xf32>
    %390 = vector.extract_strided_slice %383 {offsets = [0, 128], sizes = [8, 128], strides = [1, 1]} : vector<8x512xf32> to vector<8x128xf32>
    %391 = arith.negf %390 : vector<8x128xf32>
    %392 = math.exp %391 : vector<8x128xf32>
    %cst_78 = arith.constant 1.000000e+00 : f32
    %393 = vector.broadcast %cst_78 : f32 to vector<8x128xf32>
    %394 = arith.addf %393, %392 : vector<8x128xf32>
    %395 = arith.divf %393, %394 : vector<8x128xf32>
    %396 = vector.extract_strided_slice %383 {offsets = [0, 256], sizes = [8, 128], strides = [1, 1]} : vector<8x512xf32> to vector<8x128xf32>
    %397 = math.tanh %396 : vector<8x128xf32>
    %398 = vector.extract_strided_slice %383 {offsets = [0, 384], sizes = [8, 128], strides = [1, 1]} : vector<8x512xf32> to vector<8x128xf32>
    %399 = arith.negf %398 : vector<8x128xf32>
    %400 = math.exp %399 : vector<8x128xf32>
    %cst_79 = arith.constant 1.000000e+00 : f32
    %401 = vector.broadcast %cst_79 : f32 to vector<8x128xf32>
    %402 = arith.addf %401, %400 : vector<8x128xf32>
    %403 = arith.divf %401, %402 : vector<8x128xf32>
    %404 = arith.mulf %395, %345 : vector<8x128xf32>
    %405 = arith.mulf %389, %397 : vector<8x128xf32>
    %406 = arith.addf %404, %405 : vector<8x128xf32>
    %407 = math.tanh %406 : vector<8x128xf32>
    %408 = arith.mulf %403, %407 : vector<8x128xf32>
    %409 = arith.truncf %408 : vector<8x128xf32> to vector<8x128xbf16>
    %410 = arith.truncf %377 : vector<8x128xf32> to vector<8x128xbf16>
    %411 = tpu.concatenate %409, %410 in 1 : vector<8x128xbf16>, vector<8x128xbf16> -> vector<8x256xbf16>
    %cst_80 = arith.constant dense<0.000000e+00> : vector<8x512xf32>
    %412 = tpu.matmul %411, %4, %cst_80 {dimension_numbers = #tpu.dot_dimension_numbers<[1], [0], [0], [1], [0, 0, 1, 1], [], []>} : vector<8x256xbf16>, vector<256x512xbf16>, vector<8x512xf32> -> vector<8x512xf32>
    %413 = arith.addf %412, %7 : vector<8x512xf32>
    %414 = vector.extract_strided_slice %413 {offsets = [0, 0], sizes = [8, 128], strides = [1, 1]} : vector<8x512xf32> to vector<8x128xf32>
    %415 = arith.negf %414 : vector<8x128xf32>
    %416 = math.exp %415 : vector<8x128xf32>
    %cst_81 = arith.constant 1.000000e+00 : f32
    %417 = vector.broadcast %cst_81 : f32 to vector<8x128xf32>
    %418 = arith.addf %417, %416 : vector<8x128xf32>
    %419 = arith.divf %417, %418 : vector<8x128xf32>
    %420 = vector.extract_strided_slice %413 {offsets = [0, 128], sizes = [8, 128], strides = [1, 1]} : vector<8x512xf32> to vector<8x128xf32>
    %421 = arith.negf %420 : vector<8x128xf32>
    %422 = math.exp %421 : vector<8x128xf32>
    %cst_82 = arith.constant 1.000000e+00 : f32
    %423 = vector.broadcast %cst_82 : f32 to vector<8x128xf32>
    %424 = arith.addf %423, %422 : vector<8x128xf32>
    %425 = arith.divf %423, %424 : vector<8x128xf32>
    %426 = vector.extract_strided_slice %413 {offsets = [0, 256], sizes = [8, 128], strides = [1, 1]} : vector<8x512xf32> to vector<8x128xf32>
    %427 = math.tanh %426 : vector<8x128xf32>
    %428 = vector.extract_strided_slice %413 {offsets = [0, 384], sizes = [8, 128], strides = [1, 1]} : vector<8x512xf32> to vector<8x128xf32>
    %429 = arith.negf %428 : vector<8x128xf32>
    %430 = math.exp %429 : vector<8x128xf32>
    %cst_83 = arith.constant 1.000000e+00 : f32
    %431 = vector.broadcast %cst_83 : f32 to vector<8x128xf32>
    %432 = arith.addf %431, %430 : vector<8x128xf32>
    %433 = arith.divf %431, %432 : vector<8x128xf32>
    %434 = arith.mulf %425, %375 : vector<8x128xf32>
    %435 = arith.mulf %419, %427 : vector<8x128xf32>
    %436 = arith.addf %434, %435 : vector<8x128xf32>
    %437 = math.tanh %436 : vector<8x128xf32>
    %438 = arith.mulf %433, %437 : vector<8x128xf32>
    %c7_i32 = arith.constant 7 : i32
    %439 = arith.truncf %408 : vector<8x128xf32> to vector<8x128xbf16>
    %cst_84 = arith.constant dense<0.000000e+00> : vector<8x512xf32>
    %440 = tpu.matmul %439, %3, %cst_84 {dimension_numbers = #tpu.dot_dimension_numbers<[1], [0], [0], [1], [0, 0, 1, 1], [], []>} : vector<8x128xbf16>, vector<128x512xbf16>, vector<8x512xf32> -> vector<8x512xf32>
    %441 = arith.index_cast %c7_i32 : i32 to index
    %c0_85 = arith.constant 0 : index
    %c0_86 = arith.constant 0 : index
    %442 = vector.load %arg2[%441, %c0_85, %c0_86] : memref<8x8x512xf32, #tpu.memory_space<vmem>>, vector<1x8x512xf32>
    %443 = vector.shape_cast %442 : vector<1x8x512xf32> to vector<8x512xf32>
    %444 = arith.addf %440, %443 : vector<8x512xf32>
    %445 = vector.extract_strided_slice %444 {offsets = [0, 0], sizes = [8, 128], strides = [1, 1]} : vector<8x512xf32> to vector<8x128xf32>
    %446 = arith.negf %445 : vector<8x128xf32>
    %447 = math.exp %446 : vector<8x128xf32>
    %cst_87 = arith.constant 1.000000e+00 : f32
    %448 = vector.broadcast %cst_87 : f32 to vector<8x128xf32>
    %449 = arith.addf %448, %447 : vector<8x128xf32>
    %450 = arith.divf %448, %449 : vector<8x128xf32>
    %451 = vector.extract_strided_slice %444 {offsets = [0, 128], sizes = [8, 128], strides = [1, 1]} : vector<8x512xf32> to vector<8x128xf32>
    %452 = arith.negf %451 : vector<8x128xf32>
    %453 = math.exp %452 : vector<8x128xf32>
    %cst_88 = arith.constant 1.000000e+00 : f32
    %454 = vector.broadcast %cst_88 : f32 to vector<8x128xf32>
    %455 = arith.addf %454, %453 : vector<8x128xf32>
    %456 = arith.divf %454, %455 : vector<8x128xf32>
    %457 = vector.extract_strided_slice %444 {offsets = [0, 256], sizes = [8, 128], strides = [1, 1]} : vector<8x512xf32> to vector<8x128xf32>
    %458 = math.tanh %457 : vector<8x128xf32>
    %459 = vector.extract_strided_slice %444 {offsets = [0, 384], sizes = [8, 128], strides = [1, 1]} : vector<8x512xf32> to vector<8x128xf32>
    %460 = arith.negf %459 : vector<8x128xf32>
    %461 = math.exp %460 : vector<8x128xf32>
    %cst_89 = arith.constant 1.000000e+00 : f32
    %462 = vector.broadcast %cst_89 : f32 to vector<8x128xf32>
    %463 = arith.addf %462, %461 : vector<8x128xf32>
    %464 = arith.divf %462, %463 : vector<8x128xf32>
    %465 = arith.mulf %456, %406 : vector<8x128xf32>
    %466 = arith.mulf %450, %458 : vector<8x128xf32>
    %467 = arith.addf %465, %466 : vector<8x128xf32>
    %468 = math.tanh %467 : vector<8x128xf32>
    %469 = arith.mulf %464, %468 : vector<8x128xf32>
    %470 = arith.truncf %469 : vector<8x128xf32> to vector<8x128xbf16>
    %471 = arith.truncf %438 : vector<8x128xf32> to vector<8x128xbf16>
    %472 = tpu.concatenate %470, %471 in 1 : vector<8x128xbf16>, vector<8x128xbf16> -> vector<8x256xbf16>
    %cst_90 = arith.constant dense<0.000000e+00> : vector<8x512xf32>
    %473 = tpu.matmul %472, %4, %cst_90 {dimension_numbers = #tpu.dot_dimension_numbers<[1], [0], [0], [1], [0, 0, 1, 1], [], []>} : vector<8x256xbf16>, vector<256x512xbf16>, vector<8x512xf32> -> vector<8x512xf32>
    %474 = arith.addf %473, %7 : vector<8x512xf32>
    %475 = vector.extract_strided_slice %474 {offsets = [0, 0], sizes = [8, 128], strides = [1, 1]} : vector<8x512xf32> to vector<8x128xf32>
    %476 = arith.negf %475 : vector<8x128xf32>
    %477 = math.exp %476 : vector<8x128xf32>
    %cst_91 = arith.constant 1.000000e+00 : f32
    %478 = vector.broadcast %cst_91 : f32 to vector<8x128xf32>
    %479 = arith.addf %478, %477 : vector<8x128xf32>
    %480 = arith.divf %478, %479 : vector<8x128xf32>
    %481 = vector.extract_strided_slice %474 {offsets = [0, 128], sizes = [8, 128], strides = [1, 1]} : vector<8x512xf32> to vector<8x128xf32>
    %482 = arith.negf %481 : vector<8x128xf32>
    %483 = math.exp %482 : vector<8x128xf32>
    %cst_92 = arith.constant 1.000000e+00 : f32
    %484 = vector.broadcast %cst_92 : f32 to vector<8x128xf32>
    %485 = arith.addf %484, %483 : vector<8x128xf32>
    %486 = arith.divf %484, %485 : vector<8x128xf32>
    %487 = vector.extract_strided_slice %474 {offsets = [0, 256], sizes = [8, 128], strides = [1, 1]} : vector<8x512xf32> to vector<8x128xf32>
    %488 = math.tanh %487 : vector<8x128xf32>
    %489 = vector.extract_strided_slice %474 {offsets = [0, 384], sizes = [8, 128], strides = [1, 1]} : vector<8x512xf32> to vector<8x128xf32>
    %490 = arith.negf %489 : vector<8x128xf32>
    %491 = math.exp %490 : vector<8x128xf32>
    %cst_93 = arith.constant 1.000000e+00 : f32
    %492 = vector.broadcast %cst_93 : f32 to vector<8x128xf32>
    %493 = arith.addf %492, %491 : vector<8x128xf32>
    %494 = arith.divf %492, %493 : vector<8x128xf32>
    %495 = arith.mulf %486, %436 : vector<8x128xf32>
    %496 = arith.mulf %480, %488 : vector<8x128xf32>
    %497 = arith.addf %495, %496 : vector<8x128xf32>
    %498 = math.tanh %497 : vector<8x128xf32>
    %499 = arith.mulf %494, %498 : vector<8x128xf32>
    %c8_i32 = arith.constant 8 : i32
    %c0_94 = arith.constant 0 : index
    %c0_95 = arith.constant 0 : index
    %500 = vector.load %arg9[%c0_94, %c0_95] : memref<8x128xf32, #tpu.memory_space<vmem>>, vector<8x128xf32>
    tpu.vector_store %arg9[%c0_94, %c0_95], %469 {strides = array<i32>} : memref<8x128xf32, #tpu.memory_space<vmem>>, vector<8x128xf32>,
    %c0_96 = arith.constant 0 : index
    %c0_97 = arith.constant 0 : index
    %501 = vector.load %arg10[%c0_96, %c0_97] : memref<8x128xf32, #tpu.memory_space<vmem>>, vector<8x128xf32>
    tpu.vector_store %arg10[%c0_96, %c0_97], %467 {strides = array<i32>} : memref<8x128xf32, #tpu.memory_space<vmem>>, vector<8x128xf32>,
    %c0_98 = arith.constant 0 : index
    %c0_99 = arith.constant 0 : index
    %502 = vector.load %arg11[%c0_98, %c0_99] : memref<8x128xf32, #tpu.memory_space<vmem>>, vector<8x128xf32>
    tpu.vector_store %arg11[%c0_98, %c0_99], %499 {strides = array<i32>} : memref<8x128xf32, #tpu.memory_space<vmem>>, vector<8x128xf32>,
    %c0_100 = arith.constant 0 : index
    %c0_101 = arith.constant 0 : index
    %503 = vector.load %arg12[%c0_100, %c0_101] : memref<8x128xf32, #tpu.memory_space<vmem>>, vector<8x128xf32>
    tpu.vector_store %arg12[%c0_100, %c0_101], %497 {strides = array<i32>} : memref<8x128xf32, #tpu.memory_space<vmem>>, vector<8x128xf32>,
    %c0_i32_102 = arith.constant 0 : i32
    %504 = arith.cmpi eq, %arg1, %c0_i32_102 : i32
    %505 = arith.extui %504 : i1 to i32
    %c0_i32_103 = arith.constant 0 : i32
    %506 = arith.cmpi ne, %505, %c0_i32_103 : i32
    scf.if %506 {
      %507 = arith.truncf %499 : vector<8x128xf32> to vector<8x128xbf16>
      %c0_104 = arith.constant 0 : index
      %c0_105 = arith.constant 0 : index
      %508 = vector.load %arg6[%c0_104, %c0_105] : memref<128x1xbf16, #tpu.memory_space<vmem>>, vector<128x1xbf16>
      %cst_106 = arith.constant dense<0.000000e+00> : vector<8x1xf32>
      %509 = tpu.matmul %507, %508, %cst_106 {dimension_numbers = #tpu.dot_dimension_numbers<[1], [0], [0], [1], [0, 0, 1, 1], [], []>} : vector<8x128xbf16>, vector<128x1xbf16>, vector<8x1xf32> -> vector<8x1xf32>
      %c0_107 = arith.constant 0 : index
      %c0_108 = arith.constant 0 : index
      %510 = vector.load %arg7[%c0_107, %c0_108] : memref<1x1xf32, #tpu.memory_space<vmem>>, vector<1x1xf32>
      %511 = vector.broadcast %510 : vector<1x1xf32> to vector<8x1xf32>
      %512 = arith.addf %509, %511 : vector<8x1xf32>
      %513 = arith.negf %512 : vector<8x1xf32>
      %514 = math.exp %513 : vector<8x1xf32>
      %cst_109 = arith.constant 1.000000e+00 : f32
      %515 = vector.broadcast %cst_109 : f32 to vector<8x1xf32>
      %516 = arith.addf %515, %514 : vector<8x1xf32>
      %517 = arith.divf %515, %516 : vector<8x1xf32>
      %c0_110 = arith.constant 0 : index
      %c0_111 = arith.constant 0 : index
      %518 = vector.load %arg8[%c0_110, %c0_111] : memref<8x1xf32, #tpu.memory_space<vmem>>, vector<8x1xf32>
      tpu.vector_store %arg8[%c0_110, %c0_111], %517 {strides = array<i32>} : memref<8x1xf32, #tpu.memory_space<vmem>>, vector<8x1xf32>,
    } else {
    }
    return
  }
  func.func @transform_0(%arg0: i32, %arg1: i32) -> (i32, i32, i32) {
    %c0_i32 = arith.constant 0 : i32
    %c0_i32_0 = arith.constant 0 : i32
    return %arg1, %arg0, %c0_i32 : i32, i32, i32
  }
  func.func @transform_1(%arg0: i32, %arg1: i32) -> (i32, i32) {
    %c0_i32 = arith.constant 0 : i32
    %c0_i32_0 = arith.constant 0 : i32
    %c0_i32_1 = arith.constant 0 : i32
    return %c0_i32, %c0_i32_0 : i32, i32
  }
  func.func @transform_2(%arg0: i32, %arg1: i32) -> (i32, i32) {
    %c0_i32 = arith.constant 0 : i32
    %c0_i32_0 = arith.constant 0 : i32
    %c0_i32_1 = arith.constant 0 : i32
    return %c0_i32, %c0_i32_0 : i32, i32
  }
  func.func @transform_3(%arg0: i32, %arg1: i32) -> (i32, i32) {
    %c0_i32 = arith.constant 0 : i32
    %c0_i32_0 = arith.constant 0 : i32
    %c0_i32_1 = arith.constant 0 : i32
    return %c0_i32, %c0_i32_0 : i32, i32
  }
  func.func @transform_4(%arg0: i32, %arg1: i32) -> (i32, i32) {
    %c0_i32 = arith.constant 0 : i32
    %c0_i32_0 = arith.constant 0 : i32
    %c0_i32_1 = arith.constant 0 : i32
    return %c0_i32, %c0_i32_0 : i32, i32
  }
  func.func @transform_5(%arg0: i32, %arg1: i32) -> (i32, i32) {
    %c0_i32 = arith.constant 0 : i32
    %c0_i32_0 = arith.constant 0 : i32
    %c0_i32_1 = arith.constant 0 : i32
    return %c0_i32, %c0_i32_0 : i32, i32
  }
  func.func @transform_6(%arg0: i32, %arg1: i32) -> (i32, i32) {
    %c0_i32 = arith.constant 0 : i32
    %c0_i32_0 = arith.constant 0 : i32
    return %arg0, %c0_i32 : i32, i32
  }
}

</mosaic_0001>

<llo_original>
// kernel: tpu_custom_call.1
$region0: #{tpu_custom_call.1}
  #allocation0 [shape = 'u32[]', space=smem, size = 0x4, offset = 0x4, fixed_abs, tag = 'smem constant byte address 0x4 - core index']
  #allocation1 [shape = 'u32[144,128]{1,0:T(1,128)}', space=vmem, size = 0x12000, scoped, tag = 'internal scratch']
  #allocation2 [shape = 'f32[8,128]{1,0:T(8,128)}', space=vmem, size = 0x1000, scoped, tag = 'scratch operand']
  #allocation3 [shape = 'f32[8,128]{1,0:T(8,128)}', space=vmem, size = 0x1000, scoped, tag = 'scratch operand']
  #allocation4 [shape = 'f32[8,128]{1,0:T(8,128)}', space=vmem, size = 0x1000, scoped, tag = 'scratch operand']
  #allocation5 [shape = 'f32[8,128]{1,0:T(8,128)}', space=vmem, size = 0x1000, scoped, tag = 'scratch operand']
  #allocation6 [shape = 'f32[1,1]{1,0:T(1,128)S(1)}', space=vmem, size = 0x200, scoped, tag = 'scoped memory for tpu_custom_call.1']
  %s0 = inlined_call_operand.hbm [shape: f32[8,8,512], index: 0, kind: input, shape index: {}]
  %s1 = inlined_call_operand.hbm [shape: bf16[128,512], index: 1, kind: input, shape index: {}]
  %s2 = inlined_call_operand.hbm [shape: bf16[256,512], index: 2, kind: input, shape index: {}]
  %s3 = inlined_call_operand.vmem [shape: f32[1,512], index: 3, kind: input, shape index: {}]
  %s4 = inlined_call_operand.vmem [shape: bf16[128,1], index: 4, kind: input, shape index: {}]
  %s5 = inlined_call_operand.<no memory space> [shape: f32[1,1], index: 5, kind: input, shape index: {}]
  %s6 = inlined_call_operand.vmem [shape: f32[8,1], index: 6, kind: output, shape index: {}]
  %s7 = sld [smem:[#allocation0]]
  $region54: #{tpu_custom_call.1} parent=0
    _
  %s9 = ssub.s32 1, %s7
  %s10 = scalar_select 0, %s9, %s7
  %v11 = vstv %s5
  %12 = vst [vmem:[#allocation6] sm:$0x1] %v11
  $region1: #{tpu_custom_call.1} parent=0
    #allocation7 [shape = 'u8[131072]{0}', space=vmem, size = 0x20000, scoped, tag = 'input window, operand 0, single buffered']
    #allocation8 [shape = 's32[1]{0}', space=sflag, size = 0x4, scoped, tag = 'scoped memory for tpu_custom_call.1']
    #allocation9 [shape = 'u8[131072]{0}', space=vmem, size = 0x20000, scoped, tag = 'input window, operand 1, single buffered']
    #allocation10 [shape = 's32[1]{0}', space=sflag, size = 0x4, scoped, tag = 'scoped memory for tpu_custom_call.1']
    #allocation11 [shape = 'u8[262144]{0}', space=vmem, size = 0x40000, scoped, tag = 'input window, operand 2, single buffered']
    %13 = vsyncpa [#allocation8], 0
    %14 = vsyncpa [#allocation10], 0
    // Predicated region
    $region2: #{tpu_custom_call.1} parent=1 // pred_check
      _
    $region3: #{tpu_custom_call.1} parent=1 // pred_check_branch
      %16 = sbr.rel (0) target = $region5
    $region4: #{tpu_custom_call.1} parent=1 // pred_region
      %s18 = ssub.s32 4096, 4096
      %19 = vsyncadd [#allocation8], %s18
      %s20 = sshll.u32 [#allocation7], 4
      %s21 = int_to_ptr.vmem [resolvable:$true] %s20
      %26 = dma.hbm_to_vmem [thread:$0]  %s0, 4096, %s21, [#allocation8], 512, 512, 32
    $region5: #{tpu_custom_call.1} parent=1 // pred_fallthru
      _
    // Predicated region
    $region6: #{tpu_custom_call.1} parent=1 // pred_check
      _
    $region7: #{tpu_custom_call.1} parent=1 // pred_check_branch
      %28 = sbr.rel (0) target = $region9
    $region8: #{tpu_custom_call.1} parent=1 // pred_region
      %s30 = ssub.s32 4096, 4096
      %31 = vsyncadd [#allocation10], %s30
      %s32 = sshll.u32 [#allocation9], 4
      %s33 = int_to_ptr.vmem [resolvable:$true] %s32
      %38 = dma.hbm_to_vmem [thread:$0]  %s1, 4096, %s33, [#allocation10], 256, 256, 16
    $region9: #{tpu_custom_call.1} parent=1 // pred_fallthru
      _
    // Predicated region
    $region10: #{tpu_custom_call.1} parent=1 // pred_check
      _
    $region11: #{tpu_custom_call.1} parent=1 // pred_check_branch
      %40 = sbr.rel (0) target = $region13
    $region12: #{tpu_custom_call.1} parent=1 // pred_region
      %s42 = ssub.s32 8192, 8192
      %43 = vsyncadd [#allocation10], %s42
      %s44 = sshll.u32 [#allocation11], 4
      %s45 = int_to_ptr.vmem [resolvable:$true] %s44
      %50 = dma.hbm_to_vmem [thread:$0]  %s2, 8192, %s45, [#allocation10], 256, 256, 16
    $region13: #{tpu_custom_call.1} parent=1 // pred_fallthru
      _
    // Predicated region
    $region14: #{tpu_custom_call.1} parent=1 // pred_check
      _
    $region15: #{tpu_custom_call.1} parent=1 // pred_check_branch
      %52 = sbr.rel (0) target = $region17
    $region16: #{tpu_custom_call.1} parent=1 // pred_region
      _
    $region17: #{tpu_custom_call.1} parent=1 // pred_fallthru
      _
    // Predicated region
    $region18: #{tpu_custom_call.1} parent=1 // pred_check
      _
    $region19: #{tpu_custom_call.1} parent=1 // pred_check_branch
      %54 = sbr.rel (0) target = $region21
    $region20: #{tpu_custom_call.1} parent=1 // pred_region
      _
    $region21: #{tpu_custom_call.1} parent=1 // pred_fallthru
      _
    // Predicated region
    $region22: #{tpu_custom_call.1} parent=1 // pred_check
      _
    $region23: #{tpu_custom_call.1} parent=1 // pred_check_branch
      %56 = sbr.rel (0) target = $region25
    $region24: #{tpu_custom_call.1} parent=1 // pred_region
      _
    $region25: #{tpu_custom_call.1} parent=1 // pred_fallthru
      _
    // Predicated region
    $region26: #{tpu_custom_call.1} parent=1 // pred_check
      _
    $region27: #{tpu_custom_call.1} parent=1 // pred_check_branch
      %58 = sbr.rel (0) target = $region29
    $region28: #{tpu_custom_call.1} parent=1 // pred_region
      %59 = dma.done [#allocation8], 4096
    $region29: #{tpu_custom_call.1} parent=1 // pred_fallthru
      _
    // Predicated region
    $region30: #{tpu_custom_call.1} parent=1 // pred_check
      _
    $region31: #{tpu_custom_call.1} parent=1 // pred_check_branch
      %61 = sbr.rel (0) target = $region33
    $region32: #{tpu_custom_call.1} parent=1 // pred_region
      %62 = dma.done [#allocation10], 4096
    $region33: #{tpu_custom_call.1} parent=1 // pred_fallthru
      _
    // Predicated region
    $region34: #{tpu_custom_call.1} parent=1 // pred_check
      _
    $region35: #{tpu_custom_call.1} parent=1 // pred_check_branch
      %64 = sbr.rel (0) target = $region37
    $region36: #{tpu_custom_call.1} parent=1 // pred_region
      %65 = dma.done [#allocation10], 8192
    $region37: #{tpu_custom_call.1} parent=1 // pred_fallthru
      _
    %p67 = scmp.eq.s32.totalorder 0, 0
    // Predicated region
    $region38: #{tpu_custom_call.1} parent=1 // pred_check
      %p68 = pneg %p67
    $region39: #{tpu_custom_call.1} parent=1 // pred_check_branch
      %70 = sbr.rel (%p68) target = $region41
    $region40: #{tpu_custom_call.1} parent=1 // pred_region
      %71 = vst [vmem:[#allocation2] sm:$0xff] 0.0
      %72 = vst [vmem:[#allocation3] sm:$0xff] 0.0
      %73 = vst [vmem:[#allocation4] sm:$0xff] 0.0
      %74 = vst [vmem:[#allocation5] sm:$0xff] 0.0
    $region41: #{tpu_custom_call.1} parent=1 // pred_fallthru
      _
    %v75 = vld [vmem:[#allocation9] sm:$0xff]
    %v76 = vld [vmem:[#allocation9 + $0x8] sm:$0xff]
    %v77 = vld [vmem:[#allocation9 + $0x10] sm:$0xff]
    %v78 = vld [vmem:[#allocation9 + $0x18] sm:$0xff]
    %v79 = vld [vmem:[#allocation9 + $0x20] sm:$0xff]
    %v80 = vld [vmem:[#allocation9 + $0x28] sm:$0xff]
    %v81 = vld [vmem:[#allocation9 + $0x30] sm:$0xff]
    %v82 = vld [vmem:[#allocation9 + $0x38] sm:$0xff]
    %v83 = vld [vmem:[#allocation9 + $0x40] sm:$0xff]
    %v84 = vld [vmem:[#allocation9 + $0x48] sm:$0xff]
    %v85 = vld [vmem:[#allocation9 + $0x50] sm:$0xff]
    %v86 = vld [vmem:[#allocation9 + $0x58] sm:$0xff]
    %v87 = vld [vmem:[#allocation9 + $0x60] sm:$0xff]
    %v88 = vld [vmem:[#allocation9 + $0x68] sm:$0xff]
    %v89 = vld [vmem:[#allocation9 + $0x70] sm:$0xff]
    %v90 = vld [vmem:[#allocation9 + $0x78] sm:$0xff]
    %v91 = vld [vmem:[#allocation9 + $0x80] sm:$0xff]
    %v92 = vld [vmem:[#allocation9 + $0x88] sm:$0xff]
    %v93 = vld [vmem:[#allocation9 + $0x90] sm:$0xff]
    %v94 = vld [vmem:[#allocation9 + $0x98] sm:$0xff]
    %v95 = vld [vmem:[#allocation9 + $0xa0] sm:$0xff]
    %v96 = vld [vmem:[#allocation9 + $0xa8] sm:$0xff]
    %v97 = vld [vmem:[#allocation9 + $0xb0] sm:$0xff]
    %v98 = vld [vmem:[#allocation9 + $0xb8] sm:$0xff]
    %v99 = vld [vmem:[#allocation9 + $0xc0] sm:$0xff]
    %v100 = vld [vmem:[#allocation9 + $0xc8] sm:$0xff]
    %v101 = vld [vmem:[#allocation9 + $0xd0] sm:$0xff]
    %v102 = vld [vmem:[#allocation9 + $0xd8] sm:$0xff]
    %v103 = vld [vmem:[#allocation9 + $0xe0] sm:$0xff]
    %v104 = vld [vmem:[#allocation9 + $0xe8] sm:$0xff]
    %v105 = vld [vmem:[#allocation9 + $0xf0] sm:$0xff]
    %v106 = vld [vmem:[#allocation9 + $0xf8] sm:$0xff]
    %v107 = vld [vmem:[#allocation11] sm:$0xff]
    %v108 = vld [vmem:[#allocation11 + $0x8] sm:$0xff]
    %v109 = vld [vmem:[#allocation11 + $0x10] sm:$0xff]
    %v110 = vld [vmem:[#allocation11 + $0x18] sm:$0xff]
    %v111 = vld [vmem:[#allocation11 + $0x20] sm:$0xff]
    %v112 = vld [vmem:[#allocation11 + $0x28] sm:$0xff]
    %v113 = vld [vmem:[#allocation11 + $0x30] sm:$0xff]
    %v114 = vld [vmem:[#allocation11 + $0x38] sm:$0xff]
    %v115 = vld [vmem:[#allocation11 + $0x40] sm:$0xff]
    %v116 = vld [vmem:[#allocation11 + $0x48] sm:$0xff]
    %v117 = vld [vmem:[#allocation11 + $0x50] sm:$0xff]
    %v118 = vld [vmem:[#allocation11 + $0x58] sm:$0xff]
    %v119 = vld [vmem:[#allocation11 + $0x60] sm:$0xff]
    %v120 = vld [vmem:[#allocation11 + $0x68] sm:$0xff]
    %v121 = vld [vmem:[#allocation11 + $0x70] sm:$0xff]
    %v122 = vld [vmem:[#allocation11 + $0x78] sm:$0xff]
    %v123 = vld [vmem:[#allocation11 + $0x80] sm:$0xff]
    %v124 = vld [vmem:[#allocation11 + $0x88] sm:$0xff]
    %v125 = vld [vmem:[#allocation11 + $0x90] sm:$0xff]
    %v126 = vld [vmem:[#allocation11 + $0x98] sm:$0xff]
    %v127 = vld [vmem:[#allocation11 + $0xa0] sm:$0xff]
    %v128 = vld [vmem:[#allocation11 + $0xa8] sm:$0xff]
    %v129 = vld [vmem:[#allocation11 + $0xb0] sm:$0xff]
    %v130 = vld [vmem:[#allocation11 + $0xb8] sm:$0xff]
    %v131 = vld [vmem:[#allocation11 + $0xc0] sm:$0xff]
    %v132 = vld [vmem:[#allocation11 + $0xc8] sm:$0xff]
    %v133 = vld [vmem:[#allocation11 + $0xd0] sm:$0xff]
    %v134 = vld [vmem:[#allocation11 + $0xd8] sm:$0xff]
    %v135 = vld [vmem:[#allocation11 + $0xe0] sm:$0xff]
    %v136 = vld [vmem:[#allocation11 + $0xe8] sm:$0xff]
    %v137 = vld [vmem:[#allocation11 + $0xf0] sm:$0xff]
    %v138 = vld [vmem:[#allocation11 + $0xf8] sm:$0xff]
    %v139 = vld [vmem:[#allocation11 + $0x100] sm:$0xff]
    %v140 = vld [vmem:[#allocation11 + $0x108] sm:$0xff]
    %v141 = vld [vmem:[#allocation11 + $0x110] sm:$0xff]
    %v142 = vld [vmem:[#allocation11 + $0x118] sm:$0xff]
    %v143 = vld [vmem:[#allocation11 + $0x120] sm:$0xff]
    %v144 = vld [vmem:[#allocation11 + $0x128] sm:$0xff]
    %v145 = vld [vmem:[#allocation11 + $0x130] sm:$0xff]
    %v146 = vld [vmem:[#allocation11 + $0x138] sm:$0xff]
    %v147 = vld [vmem:[#allocation11 + $0x140] sm:$0xff]
    %v148 = vld [vmem:[#allocation11 + $0x148] sm:$0xff]
    %v149 = vld [vmem:[#allocation11 + $0x150] sm:$0xff]
    %v150 = vld [vmem:[#allocation11 + $0x158] sm:$0xff]
    %v151 = vld [vmem:[#allocation11 + $0x160] sm:$0xff]
    %v152 = vld [vmem:[#allocation11 + $0x168] sm:$0xff]
    %v153 = vld [vmem:[#allocation11 + $0x170] sm:$0xff]
    %v154 = vld [vmem:[#allocation11 + $0x178] sm:$0xff]
    %v155 = vld [vmem:[#allocation11 + $0x180] sm:$0xff]
    %v156 = vld [vmem:[#allocation11 + $0x188] sm:$0xff]
    %v157 = vld [vmem:[#allocation11 + $0x190] sm:$0xff]
    %v158 = vld [vmem:[#allocation11 + $0x198] sm:$0xff]
    %v159 = vld [vmem:[#allocation11 + $0x1a0] sm:$0xff]
    %v160 = vld [vmem:[#allocation11 + $0x1a8] sm:$0xff]
    %v161 = vld [vmem:[#allocation11 + $0x1b0] sm:$0xff]
    %v162 = vld [vmem:[#allocation11 + $0x1b8] sm:$0xff]
    %v163 = vld [vmem:[#allocation11 + $0x1c0] sm:$0xff]
    %v164 = vld [vmem:[#allocation11 + $0x1c8] sm:$0xff]
    %v165 = vld [vmem:[#allocation11 + $0x1d0] sm:$0xff]
    %v166 = vld [vmem:[#allocation11 + $0x1d8] sm:$0xff]
    %v167 = vld [vmem:[#allocation11 + $0x1e0] sm:$0xff]
    %v168 = vld [vmem:[#allocation11 + $0x1e8] sm:$0xff]
    %v169 = vld [vmem:[#allocation11 + $0x1f0] sm:$0xff]
    %v170 = vld [vmem:[#allocation11 + $0x1f8] sm:$0xff]
    %v171 = vld [vmem:[%s3] sm:$0xf]
    %v173 = vlaneseq
    %v174 = vshrl.u32 %v173, 7
    %v175 = vsub.s32 0, %v174
    %v176 = vrot.slane %v171, %v175
    %v177 = vlaneseq
    %v178 = vshrl.u32 %v177, 7
    %v179 = vsub.s32 1, %v178
    %v180 = vrot.slane %v171, %v179
    %v181 = vlaneseq
    %v182 = vshrl.u32 %v181, 7
    %v183 = vsub.s32 2, %v182
    %v184 = vrot.slane %v171, %v183
    %v185 = vlaneseq
    %v186 = vshrl.u32 %v185, 7
    %v187 = vsub.s32 3, %v186
    %v188 = vrot.slane %v171, %v187
    %v193 = vld [vmem:[#allocation2] sm:$0xff]
    %v194 = vld [vmem:[#allocation3] sm:$0xff]
    %v195 = vld [vmem:[#allocation4] sm:$0xff]
    %v196 = vld [vmem:[#allocation5] sm:$0xff]
    %v197 = vpack.c.bf16 %v193, %v193
    %v198 = vld [vmem:[#allocation7] sm:$0xff]
    %v199 = vld [vmem:[#allocation7 + $0x8] sm:$0xff]
    %v200 = vld [vmem:[#allocation7 + $0x10] sm:$0xff]
    %v201 = vld [vmem:[#allocation7 + $0x18] sm:$0xff]
    %v234 = vunpack.c.l.b16 %v75
    %v235 = vunpack.c.h.b16 %v75
    %v236 = vunpack.c.l.b16 %v76
    %v237 = vunpack.c.h.b16 %v76
    %v238 = vunpack.c.l.b16 %v77
    %v239 = vunpack.c.h.b16 %v77
    %v240 = vunpack.c.l.b16 %v78
    %v241 = vunpack.c.h.b16 %v78
    %v242 = vunpack.c.l.b16 %v79
    %v243 = vunpack.c.h.b16 %v79
    %v244 = vunpack.c.l.b16 %v80
    %v245 = vunpack.c.h.b16 %v80
    %v246 = vunpack.c.l.b16 %v81
    %v247 = vunpack.c.h.b16 %v81
    %v248 = vunpack.c.l.b16 %v82
    %v249 = vunpack.c.h.b16 %v82
    %v250 = vunpack.c.l.b16 %v83
    %v251 = vunpack.c.h.b16 %v83
    %v252 = vunpack.c.l.b16 %v84
    %v253 = vunpack.c.h.b16 %v84
    %v254 = vunpack.c.l.b16 %v85
    %v255 = vunpack.c.h.b16 %v85
    %v256 = vunpack.c.l.b16 %v86
    %v257 = vunpack.c.h.b16 %v86
    %v258 = vunpack.c.l.b16 %v87
    %v259 = vunpack.c.h.b16 %v87
    %v260 = vunpack.c.l.b16 %v88
    %v261 = vunpack.c.h.b16 %v88
    %v262 = vunpack.c.l.b16 %v89
    %v263 = vunpack.c.h.b16 %v89
    %v264 = vunpack.c.l.b16 %v90
    %v265 = vunpack.c.h.b16 %v90
    %v266 = vunpack.c.l.b16 %v91
    %v267 = vunpack.c.h.b16 %v91
    %v268 = vunpack.c.l.b16 %v92
    %v269 = vunpack.c.h.b16 %v92
    %v270 = vunpack.c.l.b16 %v93
    %v271 = vunpack.c.h.b16 %v93
    %v272 = vunpack.c.l.b16 %v94
    %v273 = vunpack.c.h.b16 %v94
    %v274 = vunpack.c.l.b16 %v95
    %v275 = vunpack.c.h.b16 %v95
    %v276 = vunpack.c.l.b16 %v96
    %v277 = vunpack.c.h.b16 %v96
    %v278 = vunpack.c.l.b16 %v97
    %v279 = vunpack.c.h.b16 %v97
    %v280 = vunpack.c.l.b16 %v98
    %v281 = vunpack.c.h.b16 %v98
    %v282 = vunpack.c.l.b16 %v99
    %v283 = vunpack.c.h.b16 %v99
    %v284 = vunpack.c.l.b16 %v100
    %v285 = vunpack.c.h.b16 %v100
    %v286 = vunpack.c.l.b16 %v101
    %v287 = vunpack.c.h.b16 %v101
    %v288 = vunpack.c.l.b16 %v102
    %v289 = vunpack.c.h.b16 %v102
    %v290 = vunpack.c.l.b16 %v103
    %v291 = vunpack.c.h.b16 %v103
    %v292 = vunpack.c.l.b16 %v104
    %v293 = vunpack.c.h.b16 %v104
    %v294 = vunpack.c.l.b16 %v105
    %v295 = vunpack.c.h.b16 %v105
    %v296 = vunpack.c.l.b16 %v106
    %v297 = vunpack.c.h.b16 %v106
    %v298 = vpack.c.b16 %v238, %v234
    %v299 = vpack.c.b16 %v239, %v235
    %v300 = vpack.c.b16 %v240, %v236
    %v301 = vpack.c.b16 %v241, %v237
    %v302 = vpack.c.b16 %v246, %v242
    %v303 = vpack.c.b16 %v247, %v243
    %v304 = vpack.c.b16 %v248, %v244
    %v305 = vpack.c.b16 %v249, %v245
    %v306 = vpack.c.b16 %v254, %v250
    %v307 = vpack.c.b16 %v255, %v251
    %v308 = vpack.c.b16 %v256, %v252
    %v309 = vpack.c.b16 %v257, %v253
    %v310 = vpack.c.b16 %v262, %v258
    %v311 = vpack.c.b16 %v263, %v259
    %v312 = vpack.c.b16 %v264, %v260
    %v313 = vpack.c.b16 %v265, %v261
    %v314 = vpack.c.b16 %v270, %v266
    %v315 = vpack.c.b16 %v271, %v267
    %v316 = vpack.c.b16 %v272, %v268
    %v317 = vpack.c.b16 %v273, %v269
    %v318 = vpack.c.b16 %v278, %v274
    %v319 = vpack.c.b16 %v279, %v275
    %v320 = vpack.c.b16 %v280, %v276
    %v321 = vpack.c.b16 %v281, %v277
    %v322 = vpack.c.b16 %v286, %v282
    %v323 = vpack.c.b16 %v287, %v283
    %v324 = vpack.c.b16 %v288, %v284
    %v325 = vpack.c.b16 %v289, %v285
    %v326 = vpack.c.b16 %v294, %v290
    %v327 = vpack.c.b16 %v295, %v291
    %v328 = vpack.c.b16 %v296, %v292
    %v329 = vpack.c.b16 %v297, %v293
    %362 = vmatprep.subr.bf16.mxu0 %v299
    %363 = vmatpush1.bf16.msra.mxu0 %v298
    %364 = vmatprep.subr.bf16.mxu0 %v303
    %365 = vmatpush1.bf16.msra.mxu0 %v302
    %366 = vmatprep.subr.bf16.mxu0 %v307
    %367 = vmatpush1.bf16.msra.mxu0 %v306
    %368 = vmatprep.subr.bf16.mxu0 %v311
    %369 = vmatpush1.bf16.msra.mxu0 %v310
    %370 = vmatprep.subr.bf16.mxu0 %v315
    %371 = vmatpush1.bf16.msra.mxu0 %v314
    %372 = vmatprep.subr.bf16.mxu0 %v319
    %373 = vmatpush1.bf16.msra.mxu0 %v318
    %374 = vmatprep.subr.bf16.mxu0 %v323
    %375 = vmatpush1.bf16.msra.mxu0 %v322
    %376 = vmatprep.subr.bf16.mxu0 %v327
    %377 = vmatpush1.bf16.msra.mxu0 %v326
    %378 = vmatprep.subr.bf16.mxu0 0
    %379 = vmatpush1.bf16.msra.mxu0 0
    %380 = vmatprep.subr.bf16.mxu0 0
    %381 = vmatpush1.bf16.msra.mxu0 0
    %382 = vmatprep.subr.bf16.mxu0 0
    %383 = vmatpush1.bf16.msra.mxu0 0
    %384 = vmatprep.subr.bf16.mxu0 0
    %385 = vmatpush1.bf16.msra.mxu0 0
    %386 = vmatprep.subr.bf16.mxu0 0
    %387 = vmatpush1.bf16.msra.mxu0 0
    %388 = vmatprep.subr.bf16.mxu0 0
    %389 = vmatpush1.bf16.msra.mxu0 0
    %390 = vmatprep.subr.bf16.mxu0 0
    %391 = vmatpush1.bf16.msra.mxu0 0
    %392 = vmatprep.subr.bf16.mxu0 0
    %393 = vmatpush1.bf16.msra.mxu0 0
    %394 = vmatprep.mubr.bf16.mxu0 0
    %395 = vmatmul.mubr.bf16.gmra.mrb[0].mxu0 %v197
    %v396 = vpop.f32.mrb[0].mxu0
    %v397 = vadd.f32 %v198, %v396
    %v398 = vpop.f32.mrb[0].mxu0
    %v399 = vadd.f32 %v199, %v398
    %v400 = vpop.f32.mrb[0].mxu0
    %v401 = vpop.f32.mrb[0].mxu0
    %402 = vdwg.mxu0
    %403 = vmatprep.subr.bf16.mxu0 %v301
    %404 = vmatpush1.bf16.msra.mxu0 %v300
    %405 = vmatprep.subr.bf16.mxu0 %v305
    %406 = vmatpush1.bf16.msra.mxu0 %v304
    %407 = vmatprep.subr.bf16.mxu0 %v309
    %408 = vmatpush1.bf16.msra.mxu0 %v308
    %409 = vmatprep.subr.bf16.mxu0 %v313
    %410 = vmatpush1.bf16.msra.mxu0 %v312
    %411 = vmatprep.subr.bf16.mxu0 %v317
    %412 = vmatpush1.bf16.msra.mxu0 %v316
    %413 = vmatprep.subr.bf16.mxu0 %v321
    %414 = vmatpush1.bf16.msra.mxu0 %v320
    %415 = vmatprep.subr.bf16.mxu0 %v325
    %416 = vmatpush1.bf16.msra.mxu0 %v324
    %417 = vmatprep.subr.bf16.mxu0 %v329
    %418 = vmatpush1.bf16.msra.mxu0 %v328
    %419 = vmatprep.subr.bf16.mxu0 0
    %420 = vmatpush1.bf16.msra.mxu0 0
    %421 = vmatprep.subr.bf16.mxu0 0
    %422 = vmatpush1.bf16.msra.mxu0 0
    %423 = vmatprep.subr.bf16.mxu0 0
    %424 = vmatpush1.bf16.msra.mxu0 0
    %425 = vmatprep.subr.bf16.mxu0 0
    %426 = vmatpush1.bf16.msra.mxu0 0
    %427 = vmatprep.subr.bf16.mxu0 0
    %428 = vmatpush1.bf16.msra.mxu0 0
    %429 = vmatprep.subr.bf16.mxu0 0
    %430 = vmatpush1.bf16.msra.mxu0 0
    %431 = vmatprep.subr.bf16.mxu0 0
    %432 = vmatpush1.bf16.msra.mxu0 0
    %433 = vmatprep.subr.bf16.mxu0 0
    %434 = vmatpush1.bf16.msra.mxu0 0
    %435 = vmatprep.mubr.bf16.mxu0 0
    %436 = vmatmul.mubr.bf16.gmra.mrb[0].mxu0 %v197
    %v437 = vpop.f32.mrb[0].mxu0
    %v438 = vadd.f32 %v200, %v437
    %v439 = vpop.f32.mrb[0].mxu0
    %v440 = vadd.f32 %v201, %v439
    %v441 = vpop.f32.mrb[0].mxu0
    %v442 = vpop.f32.mrb[0].mxu0
    %443 = vdwg.mxu0
    %v444 = vxor.u32 %v397, 2147483648
    %v445 = vmul.f32 %v444, 1.442695
    %v446 = vpow.pop %v445
    %v447 = vadd.f32 %v446, 1.0
    %v448 = vrcp.pop %v447
    %v449 = vmul.f32 1.0, %v448
    %v450 = vxor.u32 %v399, 2147483648
    %v451 = vmul.f32 %v450, 1.442695
    %v452 = vpow.pop %v451
    %v453 = vadd.f32 %v452, 1.0
    %v454 = vrcp.pop %v453
    %v455 = vmul.f32 1.0, %v454
    %v456 = vtanh.pop %v438
    %v457 = vxor.u32 %v440, 2147483648
    %v458 = vmul.f32 %v457, 1.442695
    %v459 = vpow.pop %v458
    %v460 = vadd.f32 %v459, 1.0
    %v461 = vrcp.pop %v460
    %v462 = vmul.f32 1.0, %v461
    %v463 = vmul.f32 %v455, %v194
    %v464 = vmul.f32 %v449, %v456
    %v465 = vadd.f32 %v463, %v464
    %v466 = vtanh.pop %v465
    %v467 = vmul.f32 %v462, %v466
    %v468 = vpack.c.bf16 %v467, %v467
    %v469 = vpack.c.bf16 %v195, %v195
    %v534 = vunpack.c.l.b16 %v107
    %v535 = vunpack.c.h.b16 %v107
    %v536 = vunpack.c.l.b16 %v108
    %v537 = vunpack.c.h.b16 %v108
    %v538 = vunpack.c.l.b16 %v109
    %v539 = vunpack.c.h.b16 %v109
    %v540 = vunpack.c.l.b16 %v110
    %v541 = vunpack.c.h.b16 %v110
    %v542 = vunpack.c.l.b16 %v111
    %v543 = vunpack.c.h.b16 %v111
    %v544 = vunpack.c.l.b16 %v112
    %v545 = vunpack.c.h.b16 %v112
    %v546 = vunpack.c.l.b16 %v113
    %v547 = vunpack.c.h.b16 %v113
    %v548 = vunpack.c.l.b16 %v114
    %v549 = vunpack.c.h.b16 %v114
    %v550 = vunpack.c.l.b16 %v115
    %v551 = vunpack.c.h.b16 %v115
    %v552 = vunpack.c.l.b16 %v116
    %v553 = vunpack.c.h.b16 %v116
    %v554 = vunpack.c.l.b16 %v117
    %v555 = vunpack.c.h.b16 %v117
    %v556 = vunpack.c.l.b16 %v118
    %v557 = vunpack.c.h.b16 %v118
    %v558 = vunpack.c.l.b16 %v119
    %v559 = vunpack.c.h.b16 %v119
    %v560 = vunpack.c.l.b16 %v120
    %v561 = vunpack.c.h.b16 %v120
    %v562 = vunpack.c.l.b16 %v121
    %v563 = vunpack.c.h.b16 %v121
    %v564 = vunpack.c.l.b16 %v122
    %v565 = vunpack.c.h.b16 %v122
    %v566 = vunpack.c.l.b16 %v123
    %v567 = vunpack.c.h.b16 %v123
    %v568 = vunpack.c.l.b16 %v124
    %v569 = vunpack.c.h.b16 %v124
    %v570 = vunpack.c.l.b16 %v125
    %v571 = vunpack.c.h.b16 %v125
    %v572 = vunpack.c.l.b16 %v126
    %v573 = vunpack.c.h.b16 %v126
    %v574 = vunpack.c.l.b16 %v127
    %v575 = vunpack.c.h.b16 %v127
    %v576 = vunpack.c.l.b16 %v128
    %v577 = vunpack.c.h.b16 %v128
    %v578 = vunpack.c.l.b16 %v129
    %v579 = vunpack.c.h.b16 %v129
    %v580 = vunpack.c.l.b16 %v130
    %v581 = vunpack.c.h.b16 %v130
    %v582 = vunpack.c.l.b16 %v131
    %v583 = vunpack.c.h.b16 %v131
    %v584 = vunpack.c.l.b16 %v132
    %v585 = vunpack.c.h.b16 %v132
    %v586 = vunpack.c.l.b16 %v133
    %v587 = vunpack.c.h.b16 %v133
    %v588 = vunpack.c.l.b16 %v134
    %v589 = vunpack.c.h.b16 %v134
    %v590 = vunpack.c.l.b16 %v135
    %v591 = vunpack.c.h.b16 %v135
    %v592 = vunpack.c.l.b16 %v136
    %v593 = vunpack.c.h.b16 %v136
    %v594 = vunpack.c.l.b16 %v137
    %v595 = vunpack.c.h.b16 %v137
    %v596 = vunpack.c.l.b16 %v138
    %v597 = vunpack.c.h.b16 %v138
    %v598 = vunpack.c.l.b16 %v139
    %v599 = vunpack.c.h.b16 %v139
    %v600 = vunpack.c.l.b16 %v140
    %v601 = vunpack.c.h.b16 %v140
    %v602 = vunpack.c.l.b16 %v141
    %v603 = vunpack.c.h.b16 %v141
    %v604 = vunpack.c.l.b16 %v142
    %v605 = vunpack.c.h.b16 %v142
    %v606 = vunpack.c.l.b16 %v143
    %v607 = vunpack.c.h.b16 %v143
    %v608 = vunpack.c.l.b16 %v144
    %v609 = vunpack.c.h.b16 %v144
    %v610 = vunpack.c.l.b16 %v145
    %v611 = vunpack.c.h.b16 %v145
    %v612 = vunpack.c.l.b16 %v146
    %v613 = vunpack.c.h.b16 %v146
    %v614 = vunpack.c.l.b16 %v147
    %v615 = vunpack.c.h.b16 %v147
    %v616 = vunpack.c.l.b16 %v148
    %v617 = vunpack.c.h.b16 %v148
    %v618 = vunpack.c.l.b16 %v149
    %v619 = vunpack.c.h.b16 %v149
    %v620 = vunpack.c.l.b16 %v150
    %v621 = vunpack.c.h.b16 %v150
    %v622 = vunpack.c.l.b16 %v151
    %v623 = vunpack.c.h.b16 %v151
    %v624 = vunpack.c.l.b16 %v152
    %v625 = vunpack.c.h.b16 %v152
    %v626 = vunpack.c.l.b16 %v153
    %v627 = vunpack.c.h.b16 %v153
    %v628 = vunpack.c.l.b16 %v154
    %v629 = vunpack.c.h.b16 %v154
    %v630 = vunpack.c.l.b16 %v155
    %v631 = vunpack.c.h.b16 %v155
    %v632 = vunpack.c.l.b16 %v156
    %v633 = vunpack.c.h.b16 %v156
    %v634 = vunpack.c.l.b16 %v157
    %v635 = vunpack.c.h.b16 %v157
    %v636 = vunpack.c.l.b16 %v158
    %v637 = vunpack.c.h.b16 %v158
    %v638 = vunpack.c.l.b16 %v159
    %v639 = vunpack.c.h.b16 %v159
    %v640 = vunpack.c.l.b16 %v160
    %v641 = vunpack.c.h.b16 %v160
    %v642 = vunpack.c.l.b16 %v161
    %v643 = vunpack.c.h.b16 %v161
    %v644 = vunpack.c.l.b16 %v162
    %v645 = vunpack.c.h.b16 %v162
    %v646 = vunpack.c.l.b16 %v163
    %v647 = vunpack.c.h.b16 %v163
    %v648 = vunpack.c.l.b16 %v164
    %v649 = vunpack.c.h.b16 %v164
    %v650 = vunpack.c.l.b16 %v165
    %v651 = vunpack.c.h.b16 %v165
    %v652 = vunpack.c.l.b16 %v166
    %v653 = vunpack.c.h.b16 %v166
    %v654 = vunpack.c.l.b16 %v167
    %v655 = vunpack.c.h.b16 %v167
    %v656 = vunpack.c.l.b16 %v168
    %v657 = vunpack.c.h.b16 %v168
    %v658 = vunpack.c.l.b16 %v169
    %v659 = vunpack.c.h.b16 %v169
    %v660 = vunpack.c.l.b16 %v170
    %v661 = vunpack.c.h.b16 %v170
    %v662 = vpack.c.b16 %v538, %v534
    %v663 = vpack.c.b16 %v539, %v535
    %v664 = vpack.c.b16 %v540, %v536
    %v665 = vpack.c.b16 %v541, %v537
    %v666 = vpack.c.b16 %v546, %v542
    %v667 = vpack.c.b16 %v547, %v543
    %v668 = vpack.c.b16 %v548, %v544
    %v669 = vpack.c.b16 %v549, %v545
    %v670 = vpack.c.b16 %v554, %v550
    %v671 = vpack.c.b16 %v555, %v551
    %v672 = vpack.c.b16 %v556, %v552
    %v673 = vpack.c.b16 %v557, %v553
    %v674 = vpack.c.b16 %v562, %v558
    %v675 = vpack.c.b16 %v563, %v559
    %v676 = vpack.c.b16 %v564, %v560
    %v677 = vpack.c.b16 %v565, %v561
    %v678 = vpack.c.b16 %v570, %v566
    %v679 = vpack.c.b16 %v571, %v567
    %v680 = vpack.c.b16 %v572, %v568
    %v681 = vpack.c.b16 %v573, %v569
    %v682 = vpack.c.b16 %v578, %v574
    %v683 = vpack.c.b16 %v579, %v575
    %v684 = vpack.c.b16 %v580, %v576
    %v685 = vpack.c.b16 %v581, %v577
    %v686 = vpack.c.b16 %v586, %v582
    %v687 = vpack.c.b16 %v587, %v583
    %v688 = vpack.c.b16 %v588, %v584
    %v689 = vpack.c.b16 %v589, %v585
    %v690 = vpack.c.b16 %v594, %v590
    %v691 = vpack.c.b16 %v595, %v591
    %v692 = vpack.c.b16 %v596, %v592
    %v693 = vpack.c.b16 %v597, %v593
    %v694 = vpack.c.b16 %v602, %v598
    %v695 = vpack.c.b16 %v603, %v599
    %v696 = vpack.c.b16 %v604, %v600
    %v697 = vpack.c.b16 %v605, %v601
    %v698 = vpack.c.b16 %v610, %v606
    %v699 = vpack.c.b16 %v611, %v607
    %v700 = vpack.c.b16 %v612, %v608
    %v701 = vpack.c.b16 %v613, %v609
    %v702 = vpack.c.b16 %v618, %v614
    %v703 = vpack.c.b16 %v619, %v615
    %v704 = vpack.c.b16 %v620, %v616
    %v705 = vpack.c.b16 %v621, %v617
    %v706 = vpack.c.b16 %v626, %v622
    %v707 = vpack.c.b16 %v627, %v623
    %v708 = vpack.c.b16 %v628, %v624
    %v709 = vpack.c.b16 %v629, %v625
    %v710 = vpack.c.b16 %v634, %v630
    %v711 = vpack.c.b16 %v635, %v631
    %v712 = vpack.c.b16 %v636, %v632
    %v713 = vpack.c.b16 %v637, %v633
    %v714 = vpack.c.b16 %v642, %v638
    %v715 = vpack.c.b16 %v643, %v639
    %v716 = vpack.c.b16 %v644, %v640
    %v717 = vpack.c.b16 %v645, %v641
    %v718 = vpack.c.b16 %v650, %v646
    %v719 = vpack.c.b16 %v651, %v647
    %v720 = vpack.c.b16 %v652, %v648
    %v721 = vpack.c.b16 %v653, %v649
    %v722 = vpack.c.b16 %v658, %v654
    %v723 = vpack.c.b16 %v659, %v655
    %v724 = vpack.c.b16 %v660, %v656
    %v725 = vpack.c.b16 %v661, %v657
    %790 = vmatprep.subr.bf16.mxu0 %v663
    %791 = vmatpush1.bf16.msra.mxu0 %v662
    %792 = vmatprep.subr.bf16.mxu0 %v667
    %793 = vmatpush1.bf16.msra.mxu0 %v666
    %794 = vmatprep.subr.bf16.mxu0 %v671
    %795 = vmatpush1.bf16.msra.mxu0 %v670
    %796 = vmatprep.subr.bf16.mxu0 %v675
    %797 = vmatpush1.bf16.msra.mxu0 %v674
    %798 = vmatprep.subr.bf16.mxu0 %v679
    %799 = vmatpush1.bf16.msra.mxu0 %v678
    %800 = vmatprep.subr.bf16.mxu0 %v683
    %801 = vmatpush1.bf16.msra.mxu0 %v682
    %802 = vmatprep.subr.bf16.mxu0 %v687
    %803 = vmatpush1.bf16.msra.mxu0 %v686
    %804 = vmatprep.subr.bf16.mxu0 %v691
    %805 = vmatpush1.bf16.msra.mxu0 %v690
    %806 = vmatprep.subr.bf16.mxu0 %v695
    %807 = vmatpush1.bf16.msra.mxu0 %v694
    %808 = vmatprep.subr.bf16.mxu0 %v699
    %809 = vmatpush1.bf16.msra.mxu0 %v698
    %810 = vmatprep.subr.bf16.mxu0 %v703
    %811 = vmatpush1.bf16.msra.mxu0 %v702
    %812 = vmatprep.subr.bf16.mxu0 %v707
    %813 = vmatpush1.bf16.msra.mxu0 %v706
    %814 = vmatprep.subr.bf16.mxu0 %v711
    %815 = vmatpush1.bf16.msra.mxu0 %v710
    %816 = vmatprep.subr.bf16.mxu0 %v715
    %817 = vmatpush1.bf16.msra.mxu0 %v714
    %818 = vmatprep.subr.bf16.mxu0 %v719
    %819 = vmatpush1.bf16.msra.mxu0 %v718
    %820 = vmatprep.subr.bf16.mxu0 %v723
    %821 = vmatpush1.bf16.msra.mxu0 %v722
    %822 = vmatprep.mubr.bf16.mxu0 %v469
    %823 = vmatmul.mubr.bf16.gmra.mrb[0].mxu0 %v468
    %v824 = vpop.f32.mrb[0].mxu0
    %v825 = vadd.f32 %v176, %v824
    %v826 = vpop.f32.mrb[0].mxu0
    %v827 = vadd.f32 %v180, %v826
    %v828 = vpop.f32.mrb[0].mxu0
    %v829 = vpop.f32.mrb[0].mxu0
    %830 = vdwg.mxu0
    %831 = vmatprep.subr.bf16.mxu0 %v665
    %832 = vmatpush1.bf16.msra.mxu0 %v664
    %833 = vmatprep.subr.bf16.mxu0 %v669
    %834 = vmatpush1.bf16.msra.mxu0 %v668
    %835 = vmatprep.subr.bf16.mxu0 %v673
    %836 = vmatpush1.bf16.msra.mxu0 %v672
    %837 = vmatprep.subr.bf16.mxu0 %v677
    %838 = vmatpush1.bf16.msra.mxu0 %v676
    %839 = vmatprep.subr.bf16.mxu0 %v681
    %840 = vmatpush1.bf16.msra.mxu0 %v680
    %841 = vmatprep.subr.bf16.mxu0 %v685
    %842 = vmatpush1.bf16.msra.mxu0 %v684
    %843 = vmatprep.subr.bf16.mxu0 %v689
    %844 = vmatpush1.bf16.msra.mxu0 %v688
    %845 = vmatprep.subr.bf16.mxu0 %v693
    %846 = vmatpush1.bf16.msra.mxu0 %v692
    %847 = vmatprep.subr.bf16.mxu0 %v697
    %848 = vmatpush1.bf16.msra.mxu0 %v696
    %849 = vmatprep.subr.bf16.mxu0 %v701
    %850 = vmatpush1.bf16.msra.mxu0 %v700
    %851 = vmatprep.subr.bf16.mxu0 %v705
    %852 = vmatpush1.bf16.msra.mxu0 %v704
    %853 = vmatprep.subr.bf16.mxu0 %v709
    %854 = vmatpush1.bf16.msra.mxu0 %v708
    %855 = vmatprep.subr.bf16.mxu0 %v713
    %856 = vmatpush1.bf16.msra.mxu0 %v712
    %857 = vmatprep.subr.bf16.mxu0 %v717
    %858 = vmatpush1.bf16.msra.mxu0 %v716
    %859 = vmatprep.subr.bf16.mxu0 %v721
    %860 = vmatpush1.bf16.msra.mxu0 %v720
    %861 = vmatprep.subr.bf16.mxu0 %v725
    %862 = vmatpush1.bf16.msra.mxu0 %v724
    %863 = vmatprep.mubr.bf16.mxu0 %v469
    %864 = vmatmul.mubr.bf16.gmra.mrb[0].mxu0 %v468
    %v865 = vpop.f32.mrb[0].mxu0
    %v866 = vadd.f32 %v184, %v865
    %v867 = vpop.f32.mrb[0].mxu0
    %v868 = vadd.f32 %v188, %v867
    %v869 = vpop.f32.mrb[0].mxu0
    %v870 = vpop.f32.mrb[0].mxu0
    %871 = vdwg.mxu0
    %v872 = vxor.u32 %v825, 2147483648
    %v873 = vmul.f32 %v872, 1.442695
    %v874 = vpow.pop %v873
    %v875 = vadd.f32 %v874, 1.0
    %v876 = vrcp.pop %v875
    %v877 = vmul.f32 1.0, %v876
    %v878 = vxor.u32 %v827, 2147483648
    %v879 = vmul.f32 %v878, 1.442695
    %v880 = vpow.pop %v879
    %v881 = vadd.f32 %v880, 1.0
    %v882 = vrcp.pop %v881
    %v883 = vmul.f32 1.0, %v882
    %v884 = vtanh.pop %v866
    %v885 = vxor.u32 %v868, 2147483648
    %v886 = vmul.f32 %v885, 1.442695
    %v887 = vpow.pop %v886
    %v888 = vadd.f32 %v887, 1.0
    %v889 = vrcp.pop %v888
    %v890 = vmul.f32 1.0, %v889
    %v891 = vmul.f32 %v883, %v196
    %v892 = vmul.f32 %v877, %v884
    %v893 = vadd.f32 %v891, %v892
    %v894 = vtanh.pop %v893
    %v895 = vmul.f32 %v890, %v894
    %s896 = scalar_lea.vmem [#allocation7], 32
    %v897 = vld [vmem:[%s896] sm:$0xff]
    %v898 = vld [vmem:[%s896 + $0x8] sm:$0xff]
    %v899 = vld [vmem:[%s896 + $0x10] sm:$0xff]
    %v900 = vld [vmem:[%s896 + $0x18] sm:$0xff]
    %901 = vmatprep.subr.bf16.mxu0 %v299
    %902 = vmatpush1.bf16.msra.mxu0 %v298
    %903 = vmatprep.subr.bf16.mxu0 %v303
    %904 = vmatpush1.bf16.msra.mxu0 %v302
    %905 = vmatprep.subr.bf16.mxu0 %v307
    %906 = vmatpush1.bf16.msra.mxu0 %v306
    %907 = vmatprep.subr.bf16.mxu0 %v311
    %908 = vmatpush1.bf16.msra.mxu0 %v310
    %909 = vmatprep.subr.bf16.mxu0 %v315
    %910 = vmatpush1.bf16.msra.mxu0 %v314
    %911 = vmatprep.subr.bf16.mxu0 %v319
    %912 = vmatpush1.bf16.msra.mxu0 %v318
    %913 = vmatprep.subr.bf16.mxu0 %v323
    %914 = vmatpush1.bf16.msra.mxu0 %v322
    %915 = vmatprep.subr.bf16.mxu0 %v327
    %916 = vmatpush1.bf16.msra.mxu0 %v326
    %917 = vmatprep.subr.bf16.mxu0 0
    %918 = vmatpush1.bf16.msra.mxu0 0
    %919 = vmatprep.subr.bf16.mxu0 0
    %920 = vmatpush1.bf16.msra.mxu0 0
    %921 = vmatprep.subr.bf16.mxu0 0
    %922 = vmatpush1.bf16.msra.mxu0 0
    %923 = vmatprep.subr.bf16.mxu0 0
    %924 = vmatpush1.bf16.msra.mxu0 0
    %925 = vmatprep.subr.bf16.mxu0 0
    %926 = vmatpush1.bf16.msra.mxu0 0
    %927 = vmatprep.subr.bf16.mxu0 0
    %928 = vmatpush1.bf16.msra.mxu0 0
    %929 = vmatprep.subr.bf16.mxu0 0
    %930 = vmatpush1.bf16.msra.mxu0 0
    %931 = vmatprep.subr.bf16.mxu0 0
    %932 = vmatpush1.bf16.msra.mxu0 0
    %933 = vmatprep.mubr.bf16.mxu0 0
    %934 = vmatmul.mubr.bf16.gmra.mrb[0].mxu0 %v468
    %v935 = vpop.f32.mrb[0].mxu0
    %v936 = vadd.f32 %v897, %v935
    %v937 = vpop.f32.mrb[0].mxu0
    %v938 = vadd.f32 %v898, %v937
    %v939 = vpop.f32.mrb[0].mxu0
    %v940 = vpop.f32.mrb[0].mxu0
    %941 = vdwg.mxu0
    %942 = vmatprep.subr.bf16.mxu0 %v301
    %943 = vmatpush1.bf16.msra.mxu0 %v300
    %944 = vmatprep.subr.bf16.mxu0 %v305
    %945 = vmatpush1.bf16.msra.mxu0 %v304
    %946 = vmatprep.subr.bf16.mxu0 %v309
    %947 = vmatpush1.bf16.msra.mxu0 %v308
    %948 = vmatprep.subr.bf16.mxu0 %v313
    %949 = vmatpush1.bf16.msra.mxu0 %v312
    %950 = vmatprep.subr.bf16.mxu0 %v317
    %951 = vmatpush1.bf16.msra.mxu0 %v316
    %952 = vmatprep.subr.bf16.mxu0 %v321
    %953 = vmatpush1.bf16.msra.mxu0 %v320
    %954 = vmatprep.subr.bf16.mxu0 %v325
    %955 = vmatpush1.bf16.msra.mxu0 %v324
    %956 = vmatprep.subr.bf16.mxu0 %v329
    %957 = vmatpush1.bf16.msra.mxu0 %v328
    %958 = vmatprep.subr.bf16.mxu0 0
    %959 = vmatpush1.bf16.msra.mxu0 0
    %960 = vmatprep.subr.bf16.mxu0 0
    %961 = vmatpush1.bf16.msra.mxu0 0
    %962 = vmatprep.subr.bf16.mxu0 0
    %963 = vmatpush1.bf16.msra.mxu0 0
    %964 = vmatprep.subr.bf16.mxu0 0
    %965 = vmatpush1.bf16.msra.mxu0 0
    %966 = vmatprep.subr.bf16.mxu0 0
    %967 = vmatpush1.bf16.msra.mxu0 0
    %968 = vmatprep.subr.bf16.mxu0 0
    %969 = vmatpush1.bf16.msra.mxu0 0
    %970 = vmatprep.subr.bf16.mxu0 0
    %971 = vmatpush1.bf16.msra.mxu0 0
    %972 = vmatprep.subr.bf16.mxu0 0
    %973 = vmatpush1.bf16.msra.mxu0 0
    %974 = vmatprep.mubr.bf16.mxu0 0
    %975 = vmatmul.mubr.bf16.gmra.mrb[0].mxu0 %v468
    %v976 = vpop.f32.mrb[0].mxu0
    %v977 = vadd.f32 %v899, %v976
    %v978 = vpop.f32.mrb[0].mxu0
    %v979 = vadd.f32 %v900, %v978
    %v980 = vpop.f32.mrb[0].mxu0
    %v981 = vpop.f32.mrb[0].mxu0
    %982 = vdwg.mxu0
    %v983 = vxor.u32 %v936, 2147483648
    %v984 = vmul.f32 %v983, 1.442695
    %v985 = vpow.pop %v984
    %v986 = vadd.f32 %v985, 1.0
    %v987 = vrcp.pop %v986
    %v988 = vmul.f32 1.0, %v987
    %v989 = vxor.u32 %v938, 2147483648
    %v990 = vmul.f32 %v989, 1.442695
    %v991 = vpow.pop %v990
    %v992 = vadd.f32 %v991, 1.0
    %v993 = vrcp.pop %v992
    %v994 = vmul.f32 1.0, %v993
    %v995 = vtanh.pop %v977
    %v996 = vxor.u32 %v979, 2147483648
    %v997 = vmul.f32 %v996, 1.442695
    %v998 = vpow.pop %v997
    %v999 = vadd.f32 %v998, 1.0
    %v1000 = vrcp.pop %v999
    %v1001 = vmul.f32 1.0, %v1000
    %v1002 = vmul.f32 %v994, %v465
    %v1003 = vmul.f32 %v988, %v995
    %v1004 = vadd.f32 %v1002, %v1003
    %v1005 = vtanh.pop %v1004
    %v1006 = vmul.f32 %v1001, %v1005
    %v1007 = vpack.c.bf16 %v1006, %v1006
    %v1008 = vpack.c.bf16 %v895, %v895
    %1009 = vmatprep.subr.bf16.mxu0 %v663
    %1010 = vmatpush1.bf16.msra.mxu0 %v662
    %1011 = vmatprep.subr.bf16.mxu0 %v667
    %1012 = vmatpush1.bf16.msra.mxu0 %v666
    %1013 = vmatprep.subr.bf16.mxu0 %v671
    %1014 = vmatpush1.bf16.msra.mxu0 %v670
    %1015 = vmatprep.subr.bf16.mxu0 %v675
    %1016 = vmatpush1.bf16.msra.mxu0 %v674
    %1017 = vmatprep.subr.bf16.mxu0 %v679
    %1018 = vmatpush1.bf16.msra.mxu0 %v678
    %1019 = vmatprep.subr.bf16.mxu0 %v683
    %1020 = vmatpush1.bf16.msra.mxu0 %v682
    %1021 = vmatprep.subr.bf16.mxu0 %v687
    %1022 = vmatpush1.bf16.msra.mxu0 %v686
    %1023 = vmatprep.subr.bf16.mxu0 %v691
    %1024 = vmatpush1.bf16.msra.mxu0 %v690
    %1025 = vmatprep.subr.bf16.mxu0 %v695
    %1026 = vmatpush1.bf16.msra.mxu0 %v694
    %1027 = vmatprep.subr.bf16.mxu0 %v699
    %1028 = vmatpush1.bf16.msra.mxu0 %v698
    %1029 = vmatprep.subr.bf16.mxu0 %v703
    %1030 = vmatpush1.bf16.msra.mxu0 %v702
    %1031 = vmatprep.subr.bf16.mxu0 %v707
    %1032 = vmatpush1.bf16.msra.mxu0 %v706
    %1033 = vmatprep.subr.bf16.mxu0 %v711
    %1034 = vmatpush1.bf16.msra.mxu0 %v710
    %1035 = vmatprep.subr.bf16.mxu0 %v715
    %1036 = vmatpush1.bf16.msra.mxu0 %v714
    %1037 = vmatprep.subr.bf16.mxu0 %v719
    %1038 = vmatpush1.bf16.msra.mxu0 %v718
    %1039 = vmatprep.subr.bf16.mxu0 %v723
    %1040 = vmatpush1.bf16.msra.mxu0 %v722
    %1041 = vmatprep.mubr.bf16.mxu0 %v1008
    %1042 = vmatmul.mubr.bf16.gmra.mrb[0].mxu0 %v1007
    %v1043 = vpop.f32.mrb[0].mxu0
    %v1044 = vadd.f32 %v176, %v1043
    %v1045 = vpop.f32.mrb[0].mxu0
    %v1046 = vadd.f32 %v180, %v1045
    %v1047 = vpop.f32.mrb[0].mxu0
    %v1048 = vpop.f32.mrb[0].mxu0
    %1049 = vdwg.mxu0
    %1050 = vmatprep.subr.bf16.mxu0 %v665
    %1051 = vmatpush1.bf16.msra.mxu0 %v664
    %1052 = vmatprep.subr.bf16.mxu0 %v669
    %1053 = vmatpush1.bf16.msra.mxu0 %v668
    %1054 = vmatprep.subr.bf16.mxu0 %v673
    %1055 = vmatpush1.bf16.msra.mxu0 %v672
    %1056 = vmatprep.subr.bf16.mxu0 %v677
    %1057 = vmatpush1.bf16.msra.mxu0 %v676
    %1058 = vmatprep.subr.bf16.mxu0 %v681
    %1059 = vmatpush1.bf16.msra.mxu0 %v680
    %1060 = vmatprep.subr.bf16.mxu0 %v685
    %1061 = vmatpush1.bf16.msra.mxu0 %v684
    %1062 = vmatprep.subr.bf16.mxu0 %v689
    %1063 = vmatpush1.bf16.msra.mxu0 %v688
    %1064 = vmatprep.subr.bf16.mxu0 %v693
    %1065 = vmatpush1.bf16.msra.mxu0 %v692
    %1066 = vmatprep.subr.bf16.mxu0 %v697
    %1067 = vmatpush1.bf16.msra.mxu0 %v696
    %1068 = vmatprep.subr.bf16.mxu0 %v701
    %1069 = vmatpush1.bf16.msra.mxu0 %v700
    %1070 = vmatprep.subr.bf16.mxu0 %v705
    %1071 = vmatpush1.bf16.msra.mxu0 %v704
    %1072 = vmatprep.subr.bf16.mxu0 %v709
    %1073 = vmatpush1.bf16.msra.mxu0 %v708
    %1074 = vmatprep.subr.bf16.mxu0 %v713
    %1075 = vmatpush1.bf16.msra.mxu0 %v712
    %1076 = vmatprep.subr.bf16.mxu0 %v717
    %1077 = vmatpush1.bf16.msra.mxu0 %v716
    %1078 = vmatprep.subr.bf16.mxu0 %v721
    %1079 = vmatpush1.bf16.msra.mxu0 %v720
    %1080 = vmatprep.subr.bf16.mxu0 %v725
    %1081 = vmatpush1.bf16.msra.mxu0 %v724
    %1082 = vmatprep.mubr.bf16.mxu0 %v1008
    %1083 = vmatmul.mubr.bf16.gmra.mrb[0].mxu0 %v1007
    %v1084 = vpop.f32.mrb[0].mxu0
    %v1085 = vadd.f32 %v184, %v1084
    %v1086 = vpop.f32.mrb[0].mxu0
    %v1087 = vadd.f32 %v188, %v1086
    %v1088 = vpop.f32.mrb[0].mxu0
    %v1089 = vpop.f32.mrb[0].mxu0
    %1090 = vdwg.mxu0
    %v1091 = vxor.u32 %v1044, 2147483648
    %v1092 = vmul.f32 %v1091, 1.442695
    %v1093 = vpow.pop %v1092
    %v1094 = vadd.f32 %v1093, 1.0
    %v1095 = vrcp.pop %v1094
    %v1096 = vmul.f32 1.0, %v1095
    %v1097 = vxor.u32 %v1046, 2147483648
    %v1098 = vmul.f32 %v1097, 1.442695
    %v1099 = vpow.pop %v1098
    %v1100 = vadd.f32 %v1099, 1.0
    %v1101 = vrcp.pop %v1100
    %v1102 = vmul.f32 1.0, %v1101
    %v1103 = vtanh.pop %v1085
    %v1104 = vxor.u32 %v1087, 2147483648
    %v1105 = vmul.f32 %v1104, 1.442695
    %v1106 = vpow.pop %v1105
    %v1107 = vadd.f32 %v1106, 1.0
    %v1108 = vrcp.pop %v1107
    %v1109 = vmul.f32 1.0, %v1108
    %v1110 = vmul.f32 %v1102, %v893
    %v1111 = vmul.f32 %v1096, %v1103
    %v1112 = vadd.f32 %v1110, %v1111
    %v1113 = vtanh.pop %v1112
    %v1114 = vmul.f32 %v1109, %v1113
    %s1115 = scalar_lea.vmem [#allocation7], 64
    %v1116 = vld [vmem:[%s1115] sm:$0xff]
    %v1117 = vld [vmem:[%s1115 + $0x8] sm:$0xff]
    %v1118 = vld [vmem:[%s1115 + $0x10] sm:$0xff]
    %v1119 = vld [vmem:[%s1115 + $0x18] sm:$0xff]
    %1120 = vmatprep.subr.bf16.mxu0 %v299
    %1121 = vmatpush1.bf16.msra.mxu0 %v298
    %1122 = vmatprep.subr.bf16.mxu0 %v303
    %1123 = vmatpush1.bf16.msra.mxu0 %v302
    %1124 = vmatprep.subr.bf16.mxu0 %v307
    %1125 = vmatpush1.bf16.msra.mxu0 %v306
    %1126 = vmatprep.subr.bf16.mxu0 %v311
    %1127 = vmatpush1.bf16.msra.mxu0 %v310
    %1128 = vmatprep.subr.bf16.mxu0 %v315
    %1129 = vmatpush1.bf16.msra.mxu0 %v314
    %1130 = vmatprep.subr.bf16.mxu0 %v319
    %1131 = vmatpush1.bf16.msra.mxu0 %v318
    %1132 = vmatprep.subr.bf16.mxu0 %v323
    %1133 = vmatpush1.bf16.msra.mxu0 %v322
    %1134 = vmatprep.subr.bf16.mxu0 %v327
    %1135 = vmatpush1.bf16.msra.mxu0 %v326
    %1136 = vmatprep.subr.bf16.mxu0 0
    %1137 = vmatpush1.bf16.msra.mxu0 0
    %1138 = vmatprep.subr.bf16.mxu0 0
    %1139 = vmatpush1.bf16.msra.mxu0 0
    %1140 = vmatprep.subr.bf16.mxu0 0
    %1141 = vmatpush1.bf16.msra.mxu0 0
    %1142 = vmatprep.subr.bf16.mxu0 0
    %1143 = vmatpush1.bf16.msra.mxu0 0
    %1144 = vmatprep.subr.bf16.mxu0 0
    %1145 = vmatpush1.bf16.msra.mxu0 0
    %1146 = vmatprep.subr.bf16.mxu0 0
    %1147 = vmatpush1.bf16.msra.mxu0 0
    %1148 = vmatprep.subr.bf16.mxu0 0
    %1149 = vmatpush1.bf16.msra.mxu0 0
    %1150 = vmatprep.subr.bf16.mxu0 0
    %1151 = vmatpush1.bf16.msra.mxu0 0
    %1152 = vmatprep.mubr.bf16.mxu0 0
    %1153 = vmatmul.mubr.bf16.gmra.mrb[0].mxu0 %v1007
    %v1154 = vpop.f32.mrb[0].mxu0
    %v1155 = vadd.f32 %v1116, %v1154
    %v1156 = vpop.f32.mrb[0].mxu0
    %v1157 = vadd.f32 %v1117, %v1156
    %v1158 = vpop.f32.mrb[0].mxu0
    %v1159 = vpop.f32.mrb[0].mxu0
    %1160 = vdwg.mxu0
    %1161 = vmatprep.subr.bf16.mxu0 %v301
    %1162 = vmatpush1.bf16.msra.mxu0 %v300
    %1163 = vmatprep.subr.bf16.mxu0 %v305
    %1164 = vmatpush1.bf16.msra.mxu0 %v304
    %1165 = vmatprep.subr.bf16.mxu0 %v309
    %1166 = vmatpush1.bf16.msra.mxu0 %v308
    %1167 = vmatprep.subr.bf16.mxu0 %v313
    %1168 = vmatpush1.bf16.msra.mxu0 %v312
    %1169 = vmatprep.subr.bf16.mxu0 %v317
    %1170 = vmatpush1.bf16.msra.mxu0 %v316
    %1171 = vmatprep.subr.bf16.mxu0 %v321
    %1172 = vmatpush1.bf16.msra.mxu0 %v320
    %1173 = vmatprep.subr.bf16.mxu0 %v325
    %1174 = vmatpush1.bf16.msra.mxu0 %v324
    %1175 = vmatprep.subr.bf16.mxu0 %v329
    %1176 = vmatpush1.bf16.msra.mxu0 %v328
    %1177 = vmatprep.subr.bf16.mxu0 0
    %1178 = vmatpush1.bf16.msra.mxu0 0
    %1179 = vmatprep.subr.bf16.mxu0 0
    %1180 = vmatpush1.bf16.msra.mxu0 0
    %1181 = vmatprep.subr.bf16.mxu0 0
    %1182 = vmatpush1.bf16.msra.mxu0 0
    %1183 = vmatprep.subr.bf16.mxu0 0
    %1184 = vmatpush1.bf16.msra.mxu0 0
    %1185 = vmatprep.subr.bf16.mxu0 0
    %1186 = vmatpush1.bf16.msra.mxu0 0
    %1187 = vmatprep.subr.bf16.mxu0 0
    %1188 = vmatpush1.bf16.msra.mxu0 0
    %1189 = vmatprep.subr.bf16.mxu0 0
    %1190 = vmatpush1.bf16.msra.mxu0 0
    %1191 = vmatprep.subr.bf16.mxu0 0
    %1192 = vmatpush1.bf16.msra.mxu0 0
    %1193 = vmatprep.mubr.bf16.mxu0 0
    %1194 = vmatmul.mubr.bf16.gmra.mrb[0].mxu0 %v1007
    %v1195 = vpop.f32.mrb[0].mxu0
    %v1196 = vadd.f32 %v1118, %v1195
    %v1197 = vpop.f32.mrb[0].mxu0
    %v1198 = vadd.f32 %v1119, %v1197
    %v1199 = vpop.f32.mrb[0].mxu0
    %v1200 = vpop.f32.mrb[0].mxu0
    %1201 = vdwg.mxu0
    %v1202 = vxor.u32 %v1155, 2147483648
    %v1203 = vmul.f32 %v1202, 1.442695
    %v1204 = vpow.pop %v1203
    %v1205 = vadd.f32 %v1204, 1.0
    %v1206 = vrcp.pop %v1205
    %v1207 = vmul.f32 1.0, %v1206
    %v1208 = vxor.u32 %v1157, 2147483648
    %v1209 = vmul.f32 %v1208, 1.442695
    %v1210 = vpow.pop %v1209
    %v1211 = vadd.f32 %v1210, 1.0
    %v1212 = vrcp.pop %v1211
    %v1213 = vmul.f32 1.0, %v1212
    %v1214 = vtanh.pop %v1196
    %v1215 = vxor.u32 %v1198, 2147483648
    %v1216 = vmul.f32 %v1215, 1.442695
    %v1217 = vpow.pop %v1216
    %v1218 = vadd.f32 %v1217, 1.0
    %v1219 = vrcp.pop %v1218
    %v1220 = vmul.f32 1.0, %v1219
    %v1221 = vmul.f32 %v1213, %v1004
    %v1222 = vmul.f32 %v1207, %v1214
    %v1223 = vadd.f32 %v1221, %v1222
    %v1224 = vtanh.pop %v1223
    %v1225 = vmul.f32 %v1220, %v1224
    %v1226 = vpack.c.bf16 %v1225, %v1225
    %v1227 = vpack.c.bf16 %v1114, %v1114
    %1228 = vmatprep.subr.bf16.mxu0 %v663
    %1229 = vmatpush1.bf16.msra.mxu0 %v662
    %1230 = vmatprep.subr.bf16.mxu0 %v667
    %1231 = vmatpush1.bf16.msra.mxu0 %v666
    %1232 = vmatprep.subr.bf16.mxu0 %v671
    %1233 = vmatpush1.bf16.msra.mxu0 %v670
    %1234 = vmatprep.subr.bf16.mxu0 %v675
    %1235 = vmatpush1.bf16.msra.mxu0 %v674
    %1236 = vmatprep.subr.bf16.mxu0 %v679
    %1237 = vmatpush1.bf16.msra.mxu0 %v678
    %1238 = vmatprep.subr.bf16.mxu0 %v683
    %1239 = vmatpush1.bf16.msra.mxu0 %v682
    %1240 = vmatprep.subr.bf16.mxu0 %v687
    %1241 = vmatpush1.bf16.msra.mxu0 %v686
    %1242 = vmatprep.subr.bf16.mxu0 %v691
    %1243 = vmatpush1.bf16.msra.mxu0 %v690
    %1244 = vmatprep.subr.bf16.mxu0 %v695
    %1245 = vmatpush1.bf16.msra.mxu0 %v694
    %1246 = vmatprep.subr.bf16.mxu0 %v699
    %1247 = vmatpush1.bf16.msra.mxu0 %v698
    %1248 = vmatprep.subr.bf16.mxu0 %v703
    %1249 = vmatpush1.bf16.msra.mxu0 %v702
    %1250 = vmatprep.subr.bf16.mxu0 %v707
    %1251 = vmatpush1.bf16.msra.mxu0 %v706
    %1252 = vmatprep.subr.bf16.mxu0 %v711
    %1253 = vmatpush1.bf16.msra.mxu0 %v710
    %1254 = vmatprep.subr.bf16.mxu0 %v715
    %1255 = vmatpush1.bf16.msra.mxu0 %v714
    %1256 = vmatprep.subr.bf16.mxu0 %v719
    %1257 = vmatpush1.bf16.msra.mxu0 %v718
    %1258 = vmatprep.subr.bf16.mxu0 %v723
    %1259 = vmatpush1.bf16.msra.mxu0 %v722
    %1260 = vmatprep.mubr.bf16.mxu0 %v1227
    %1261 = vmatmul.mubr.bf16.gmra.mrb[0].mxu0 %v1226
    %v1262 = vpop.f32.mrb[0].mxu0
    %v1263 = vadd.f32 %v176, %v1262
    %v1264 = vpop.f32.mrb[0].mxu0
    %v1265 = vadd.f32 %v180, %v1264
    %v1266 = vpop.f32.mrb[0].mxu0
    %v1267 = vpop.f32.mrb[0].mxu0
    %1268 = vdwg.mxu0
    %1269 = vmatprep.subr.bf16.mxu0 %v665
    %1270 = vmatpush1.bf16.msra.mxu0 %v664
    %1271 = vmatprep.subr.bf16.mxu0 %v669
    %1272 = vmatpush1.bf16.msra.mxu0 %v668
    %1273 = vmatprep.subr.bf16.mxu0 %v673
    %1274 = vmatpush1.bf16.msra.mxu0 %v672
    %1275 = vmatprep.subr.bf16.mxu0 %v677
    %1276 = vmatpush1.bf16.msra.mxu0 %v676
    %1277 = vmatprep.subr.bf16.mxu0 %v681
    %1278 = vmatpush1.bf16.msra.mxu0 %v680
    %1279 = vmatprep.subr.bf16.mxu0 %v685
    %1280 = vmatpush1.bf16.msra.mxu0 %v684
    %1281 = vmatprep.subr.bf16.mxu0 %v689
    %1282 = vmatpush1.bf16.msra.mxu0 %v688
    %1283 = vmatprep.subr.bf16.mxu0 %v693
    %1284 = vmatpush1.bf16.msra.mxu0 %v692
    %1285 = vmatprep.subr.bf16.mxu0 %v697
    %1286 = vmatpush1.bf16.msra.mxu0 %v696
    %1287 = vmatprep.subr.bf16.mxu0 %v701
    %1288 = vmatpush1.bf16.msra.mxu0 %v700
    %1289 = vmatprep.subr.bf16.mxu0 %v705
    %1290 = vmatpush1.bf16.msra.mxu0 %v704
    %1291 = vmatprep.subr.bf16.mxu0 %v709
    %1292 = vmatpush1.bf16.msra.mxu0 %v708
    %1293 = vmatprep.subr.bf16.mxu0 %v713
    %1294 = vmatpush1.bf16.msra.mxu0 %v712
    %1295 = vmatprep.subr.bf16.mxu0 %v717
    %1296 = vmatpush1.bf16.msra.mxu0 %v716
    %1297 = vmatprep.subr.bf16.mxu0 %v721
    %1298 = vmatpush1.bf16.msra.mxu0 %v720
    %1299 = vmatprep.subr.bf16.mxu0 %v725
    %1300 = vmatpush1.bf16.msra.mxu0 %v724
    %1301 = vmatprep.mubr.bf16.mxu0 %v1227
    %1302 = vmatmul.mubr.bf16.gmra.mrb[0].mxu0 %v1226
    %v1303 = vpop.f32.mrb[0].mxu0
    %v1304 = vadd.f32 %v184, %v1303
    %v1305 = vpop.f32.mrb[0].mxu0
    %v1306 = vadd.f32 %v188, %v1305
    %v1307 = vpop.f32.mrb[0].mxu0
    %v1308 = vpop.f32.mrb[0].mxu0
    %1309 = vdwg.mxu0
    %v1310 = vxor.u32 %v1263, 2147483648
    %v1311 = vmul.f32 %v1310, 1.442695
    %v1312 = vpow.pop %v1311
    %v1313 = vadd.f32 %v1312, 1.0
    %v1314 = vrcp.pop %v1313
    %v1315 = vmul.f32 1.0, %v1314
    %v1316 = vxor.u32 %v1265, 2147483648
    %v1317 = vmul.f32 %v1316, 1.442695
    %v1318 = vpow.pop %v1317
    %v1319 = vadd.f32 %v1318, 1.0
    %v1320 = vrcp.pop %v1319
    %v1321 = vmul.f32 1.0, %v1320
    %v1322 = vtanh.pop %v1304
    %v1323 = vxor.u32 %v1306, 2147483648
    %v1324 = vmul.f32 %v1323, 1.442695
    %v1325 = vpow.pop %v1324
    %v1326 = vadd.f32 %v1325, 1.0
    %v1327 = vrcp.pop %v1326
    %v1328 = vmul.f32 1.0, %v1327
    %v1329 = vmul.f32 %v1321, %v1112
    %v1330 = vmul.f32 %v1315, %v1322
    %v1331 = vadd.f32 %v1329, %v1330
    %v1332 = vtanh.pop %v1331
    %v1333 = vmul.f32 %v1328, %v1332
    %s1334 = scalar_lea.vmem [#allocation7], 96
    %v1335 = vld [vmem:[%s1334] sm:$0xff]
    %v1336 = vld [vmem:[%s1334 + $0x8] sm:$0xff]
    %v1337 = vld [vmem:[%s1334 + $0x10] sm:$0xff]
    %v1338 = vld [vmem:[%s1334 + $0x18] sm:$0xff]
    %1339 = vmatprep.subr.bf16.mxu0 %v299
    %1340 = vmatpush1.bf16.msra.mxu0 %v298
    %1341 = vmatprep.subr.bf16.mxu0 %v303
    %1342 = vmatpush1.bf16.msra.mxu0 %v302
    %1343 = vmatprep.subr.bf16.mxu0 %v307
    %1344 = vmatpush1.bf16.msra.mxu0 %v306
    %1345 = vmatprep.subr.bf16.mxu0 %v311
    %1346 = vmatpush1.bf16.msra.mxu0 %v310
    %1347 = vmatprep.subr.bf16.mxu0 %v315
    %1348 = vmatpush1.bf16.msra.mxu0 %v314
    %1349 = vmatprep.subr.bf16.mxu0 %v319
    %1350 = vmatpush1.bf16.msra.mxu0 %v318
    %1351 = vmatprep.subr.bf16.mxu0 %v323
    %1352 = vmatpush1.bf16.msra.mxu0 %v322
    %1353 = vmatprep.subr.bf16.mxu0 %v327
    %1354 = vmatpush1.bf16.msra.mxu0 %v326
    %1355 = vmatprep.subr.bf16.mxu0 0
    %1356 = vmatpush1.bf16.msra.mxu0 0
    %1357 = vmatprep.subr.bf16.mxu0 0
    %1358 = vmatpush1.bf16.msra.mxu0 0
    %1359 = vmatprep.subr.bf16.mxu0 0
    %1360 = vmatpush1.bf16.msra.mxu0 0
    %1361 = vmatprep.subr.bf16.mxu0 0
    %1362 = vmatpush1.bf16.msra.mxu0 0
    %1363 = vmatprep.subr.bf16.mxu0 0
    %1364 = vmatpush1.bf16.msra.mxu0 0
    %1365 = vmatprep.subr.bf16.mxu0 0
    %1366 = vmatpush1.bf16.msra.mxu0 0
    %1367 = vmatprep.subr.bf16.mxu0 0
    %1368 = vmatpush1.bf16.msra.mxu0 0
    %1369 = vmatprep.subr.bf16.mxu0 0
    %1370 = vmatpush1.bf16.msra.mxu0 0
    %1371 = vmatprep.mubr.bf16.mxu0 0
    %1372 = vmatmul.mubr.bf16.gmra.mrb[0].mxu0 %v1226
    %v1373 = vpop.f32.mrb[0].mxu0
    %v1374 = vadd.f32 %v1335, %v1373
    %v1375 = vpop.f32.mrb[0].mxu0
    %v1376 = vadd.f32 %v1336, %v1375
    %v1377 = vpop.f32.mrb[0].mxu0
    %v1378 = vpop.f32.mrb[0].mxu0
    %1379 = vdwg.mxu0
    %1380 = vmatprep.subr.bf16.mxu0 %v301
    %1381 = vmatpush1.bf16.msra.mxu0 %v300
    %1382 = vmatprep.subr.bf16.mxu0 %v305
    %1383 = vmatpush1.bf16.msra.mxu0 %v304
    %1384 = vmatprep.subr.bf16.mxu0 %v309
    %1385 = vmatpush1.bf16.msra.mxu0 %v308
    %1386 = vmatprep.subr.bf16.mxu0 %v313
    %1387 = vmatpush1.bf16.msra.mxu0 %v312
    %1388 = vmatprep.subr.bf16.mxu0 %v317
    %1389 = vmatpush1.bf16.msra.mxu0 %v316
    %1390 = vmatprep.subr.bf16.mxu0 %v321
    %1391 = vmatpush1.bf16.msra.mxu0 %v320
    %1392 = vmatprep.subr.bf16.mxu0 %v325
    %1393 = vmatpush1.bf16.msra.mxu0 %v324
    %1394 = vmatprep.subr.bf16.mxu0 %v329
    %1395 = vmatpush1.bf16.msra.mxu0 %v328
    %1396 = vmatprep.subr.bf16.mxu0 0
    %1397 = vmatpush1.bf16.msra.mxu0 0
    %1398 = vmatprep.subr.bf16.mxu0 0
    %1399 = vmatpush1.bf16.msra.mxu0 0
    %1400 = vmatprep.subr.bf16.mxu0 0
    %1401 = vmatpush1.bf16.msra.mxu0 0
    %1402 = vmatprep.subr.bf16.mxu0 0
    %1403 = vmatpush1.bf16.msra.mxu0 0
    %1404 = vmatprep.subr.bf16.mxu0 0
    %1405 = vmatpush1.bf16.msra.mxu0 0
    %1406 = vmatprep.subr.bf16.mxu0 0
    %1407 = vmatpush1.bf16.msra.mxu0 0
    %1408 = vmatprep.subr.bf16.mxu0 0
    %1409 = vmatpush1.bf16.msra.mxu0 0
    %1410 = vmatprep.subr.bf16.mxu0 0
    %1411 = vmatpush1.bf16.msra.mxu0 0
    %1412 = vmatprep.mubr.bf16.mxu0 0
    %1413 = vmatmul.mubr.bf16.gmra.mrb[0].mxu0 %v1226
    %v1414 = vpop.f32.mrb[0].mxu0
    %v1415 = vadd.f32 %v1337, %v1414
    %v1416 = vpop.f32.mrb[0].mxu0
    %v1417 = vadd.f32 %v1338, %v1416
    %v1418 = vpop.f32.mrb[0].mxu0
    %v1419 = vpop.f32.mrb[0].mxu0
    %1420 = vdwg.mxu0
    %v1421 = vxor.u32 %v1374, 2147483648
    %v1422 = vmul.f32 %v1421, 1.442695
    %v1423 = vpow.pop %v1422
    %v1424 = vadd.f32 %v1423, 1.0
    %v1425 = vrcp.pop %v1424
    %v1426 = vmul.f32 1.0, %v1425
    %v1427 = vxor.u32 %v1376, 2147483648
    %v1428 = vmul.f32 %v1427, 1.442695
    %v1429 = vpow.pop %v1428
    %v1430 = vadd.f32 %v1429, 1.0
    %v1431 = vrcp.pop %v1430
    %v1432 = vmul.f32 1.0, %v1431
    %v1433 = vtanh.pop %v1415
    %v1434 = vxor.u32 %v1417, 2147483648
    %v1435 = vmul.f32 %v1434, 1.442695
    %v1436 = vpow.pop %v1435
    %v1437 = vadd.f32 %v1436, 1.0
    %v1438 = vrcp.pop %v1437
    %v1439 = vmul.f32 1.0, %v1438
    %v1440 = vmul.f32 %v1432, %v1223
    %v1441 = vmul.f32 %v1426, %v1433
    %v1442 = vadd.f32 %v1440, %v1441
    %v1443 = vtanh.pop %v1442
    %v1444 = vmul.f32 %v1439, %v1443
    %v1445 = vpack.c.bf16 %v1444, %v1444
    %v1446 = vpack.c.bf16 %v1333, %v1333
    %1447 = vmatprep.subr.bf16.mxu0 %v663
    %1448 = vmatpush1.bf16.msra.mxu0 %v662
    %1449 = vmatprep.subr.bf16.mxu0 %v667
    %1450 = vmatpush1.bf16.msra.mxu0 %v666
    %1451 = vmatprep.subr.bf16.mxu0 %v671
    %1452 = vmatpush1.bf16.msra.mxu0 %v670
    %1453 = vmatprep.subr.bf16.mxu0 %v675
    %1454 = vmatpush1.bf16.msra.mxu0 %v674
    %1455 = vmatprep.subr.bf16.mxu0 %v679
    %1456 = vmatpush1.bf16.msra.mxu0 %v678
    %1457 = vmatprep.subr.bf16.mxu0 %v683
    %1458 = vmatpush1.bf16.msra.mxu0 %v682
    %1459 = vmatprep.subr.bf16.mxu0 %v687
    %1460 = vmatpush1.bf16.msra.mxu0 %v686
    %1461 = vmatprep.subr.bf16.mxu0 %v691
    %1462 = vmatpush1.bf16.msra.mxu0 %v690
    %1463 = vmatprep.subr.bf16.mxu0 %v695
    %1464 = vmatpush1.bf16.msra.mxu0 %v694
    %1465 = vmatprep.subr.bf16.mxu0 %v699
    %1466 = vmatpush1.bf16.msra.mxu0 %v698
    %1467 = vmatprep.subr.bf16.mxu0 %v703
    %1468 = vmatpush1.bf16.msra.mxu0 %v702
    %1469 = vmatprep.subr.bf16.mxu0 %v707
    %1470 = vmatpush1.bf16.msra.mxu0 %v706
    %1471 = vmatprep.subr.bf16.mxu0 %v711
    %1472 = vmatpush1.bf16.msra.mxu0 %v710
    %1473 = vmatprep.subr.bf16.mxu0 %v715
    %1474 = vmatpush1.bf16.msra.mxu0 %v714
    %1475 = vmatprep.subr.bf16.mxu0 %v719
    %1476 = vmatpush1.bf16.msra.mxu0 %v718
    %1477 = vmatprep.subr.bf16.mxu0 %v723
    %1478 = vmatpush1.bf16.msra.mxu0 %v722
    %1479 = vmatprep.mubr.bf16.mxu0 %v1446
    %1480 = vmatmul.mubr.bf16.gmra.mrb[0].mxu0 %v1445
    %v1481 = vpop.f32.mrb[0].mxu0
    %v1482 = vadd.f32 %v176, %v1481
    %v1483 = vpop.f32.mrb[0].mxu0
    %v1484 = vadd.f32 %v180, %v1483
    %v1485 = vpop.f32.mrb[0].mxu0
    %v1486 = vpop.f32.mrb[0].mxu0
    %1487 = vdwg.mxu0
    %1488 = vmatprep.subr.bf16.mxu0 %v665
    %1489 = vmatpush1.bf16.msra.mxu0 %v664
    %1490 = vmatprep.subr.bf16.mxu0 %v669
    %1491 = vmatpush1.bf16.msra.mxu0 %v668
    %1492 = vmatprep.subr.bf16.mxu0 %v673
    %1493 = vmatpush1.bf16.msra.mxu0 %v672
    %1494 = vmatprep.subr.bf16.mxu0 %v677
    %1495 = vmatpush1.bf16.msra.mxu0 %v676
    %1496 = vmatprep.subr.bf16.mxu0 %v681
    %1497 = vmatpush1.bf16.msra.mxu0 %v680
    %1498 = vmatprep.subr.bf16.mxu0 %v685
    %1499 = vmatpush1.bf16.msra.mxu0 %v684
    %1500 = vmatprep.subr.bf16.mxu0 %v689
    %1501 = vmatpush1.bf16.msra.mxu0 %v688
    %1502 = vmatprep.subr.bf16.mxu0 %v693
    %1503 = vmatpush1.bf16.msra.mxu0 %v692
    %1504 = vmatprep.subr.bf16.mxu0 %v697
    %1505 = vmatpush1.bf16.msra.mxu0 %v696
    %1506 = vmatprep.subr.bf16.mxu0 %v701
    %1507 = vmatpush1.bf16.msra.mxu0 %v700
    %1508 = vmatprep.subr.bf16.mxu0 %v705
    %1509 = vmatpush1.bf16.msra.mxu0 %v704
    %1510 = vmatprep.subr.bf16.mxu0 %v709
    %1511 = vmatpush1.bf16.msra.mxu0 %v708
    %1512 = vmatprep.subr.bf16.mxu0 %v713
    %1513 = vmatpush1.bf16.msra.mxu0 %v712
    %1514 = vmatprep.subr.bf16.mxu0 %v717
    %1515 = vmatpush1.bf16.msra.mxu0 %v716
    %1516 = vmatprep.subr.bf16.mxu0 %v721
    %1517 = vmatpush1.bf16.msra.mxu0 %v720
    %1518 = vmatprep.subr.bf16.mxu0 %v725
    %1519 = vmatpush1.bf16.msra.mxu0 %v724
    %1520 = vmatprep.mubr.bf16.mxu0 %v1446
    %1521 = vmatmul.mubr.bf16.gmra.mrb[0].mxu0 %v1445
    %v1522 = vpop.f32.mrb[0].mxu0
    %v1523 = vadd.f32 %v184, %v1522
    %v1524 = vpop.f32.mrb[0].mxu0
    %v1525 = vadd.f32 %v188, %v1524
    %v1526 = vpop.f32.mrb[0].mxu0
    %v1527 = vpop.f32.mrb[0].mxu0
    %1528 = vdwg.mxu0
    %v1529 = vxor.u32 %v1482, 2147483648
    %v1530 = vmul.f32 %v1529, 1.442695
    %v1531 = vpow.pop %v1530
    %v1532 = vadd.f32 %v1531, 1.0
    %v1533 = vrcp.pop %v1532
    %v1534 = vmul.f32 1.0, %v1533
    %v1535 = vxor.u32 %v1484, 2147483648
    %v1536 = vmul.f32 %v1535, 1.442695
    %v1537 = vpow.pop %v1536
    %v1538 = vadd.f32 %v1537, 1.0
    %v1539 = vrcp.pop %v1538
    %v1540 = vmul.f32 1.0, %v1539
    %v1541 = vtanh.pop %v1523
    %v1542 = vxor.u32 %v1525, 2147483648
    %v1543 = vmul.f32 %v1542, 1.442695
    %v1544 = vpow.pop %v1543
    %v1545 = vadd.f32 %v1544, 1.0
    %v1546 = vrcp.pop %v1545
    %v1547 = vmul.f32 1.0, %v1546
    %v1548 = vmul.f32 %v1540, %v1331
    %v1549 = vmul.f32 %v1534, %v1541
    %v1550 = vadd.f32 %v1548, %v1549
    %v1551 = vtanh.pop %v1550
    %v1552 = vmul.f32 %v1547, %v1551
    %s1553 = scalar_lea.vmem [#allocation7], 128
    %v1554 = vld [vmem:[%s1553] sm:$0xff]
    %v1555 = vld [vmem:[%s1553 + $0x8] sm:$0xff]
    %v1556 = vld [vmem:[%s1553 + $0x10] sm:$0xff]
    %v1557 = vld [vmem:[%s1553 + $0x18] sm:$0xff]
    %1558 = vmatprep.subr.bf16.mxu0 %v299
    %1559 = vmatpush1.bf16.msra.mxu0 %v298
    %1560 = vmatprep.subr.bf16.mxu0 %v303
    %1561 = vmatpush1.bf16.msra.mxu0 %v302
    %1562 = vmatprep.subr.bf16.mxu0 %v307
    %1563 = vmatpush1.bf16.msra.mxu0 %v306
    %1564 = vmatprep.subr.bf16.mxu0 %v311
    %1565 = vmatpush1.bf16.msra.mxu0 %v310
    %1566 = vmatprep.subr.bf16.mxu0 %v315
    %1567 = vmatpush1.bf16.msra.mxu0 %v314
    %1568 = vmatprep.subr.bf16.mxu0 %v319
    %1569 = vmatpush1.bf16.msra.mxu0 %v318
    %1570 = vmatprep.subr.bf16.mxu0 %v323
    %1571 = vmatpush1.bf16.msra.mxu0 %v322
    %1572 = vmatprep.subr.bf16.mxu0 %v327
    %1573 = vmatpush1.bf16.msra.mxu0 %v326
    %1574 = vmatprep.subr.bf16.mxu0 0
    %1575 = vmatpush1.bf16.msra.mxu0 0
    %1576 = vmatprep.subr.bf16.mxu0 0
    %1577 = vmatpush1.bf16.msra.mxu0 0
    %1578 = vmatprep.subr.bf16.mxu0 0
    %1579 = vmatpush1.bf16.msra.mxu0 0
    %1580 = vmatprep.subr.bf16.mxu0 0
    %1581 = vmatpush1.bf16.msra.mxu0 0
    %1582 = vmatprep.subr.bf16.mxu0 0
    %1583 = vmatpush1.bf16.msra.mxu0 0
    %1584 = vmatprep.subr.bf16.mxu0 0
    %1585 = vmatpush1.bf16.msra.mxu0 0
    %1586 = vmatprep.subr.bf16.mxu0 0
    %1587 = vmatpush1.bf16.msra.mxu0 0
    %1588 = vmatprep.subr.bf16.mxu0 0
    %1589 = vmatpush1.bf16.msra.mxu0 0
    %1590 = vmatprep.mubr.bf16.mxu0 0
    %1591 = vmatmul.mubr.bf16.gmra.mrb[0].mxu0 %v1445
    %v1592 = vpop.f32.mrb[0].mxu0
    %v1593 = vadd.f32 %v1554, %v1592
    %v1594 = vpop.f32.mrb[0].mxu0
    %v1595 = vadd.f32 %v1555, %v1594
    %v1596 = vpop.f32.mrb[0].mxu0
    %v1597 = vpop.f32.mrb[0].mxu0
    %1598 = vdwg.mxu0
    %1599 = vmatprep.subr.bf16.mxu0 %v301
    %1600 = vmatpush1.bf16.msra.mxu0 %v300
    %1601 = vmatprep.subr.bf16.mxu0 %v305
    %1602 = vmatpush1.bf16.msra.mxu0 %v304
    %1603 = vmatprep.subr.bf16.mxu0 %v309
    %1604 = vmatpush1.bf16.msra.mxu0 %v308
    %1605 = vmatprep.subr.bf16.mxu0 %v313
    %1606 = vmatpush1.bf16.msra.mxu0 %v312
    %1607 = vmatprep.subr.bf16.mxu0 %v317
    %1608 = vmatpush1.bf16.msra.mxu0 %v316
    %1609 = vmatprep.subr.bf16.mxu0 %v321
    %1610 = vmatpush1.bf16.msra.mxu0 %v320
    %1611 = vmatprep.subr.bf16.mxu0 %v325
    %1612 = vmatpush1.bf16.msra.mxu0 %v324
    %1613 = vmatprep.subr.bf16.mxu0 %v329
    %1614 = vmatpush1.bf16.msra.mxu0 %v328
    %1615 = vmatprep.subr.bf16.mxu0 0
    %1616 = vmatpush1.bf16.msra.mxu0 0
    %1617 = vmatprep.subr.bf16.mxu0 0
    %1618 = vmatpush1.bf16.msra.mxu0 0
    %1619 = vmatprep.subr.bf16.mxu0 0
    %1620 = vmatpush1.bf16.msra.mxu0 0
    %1621 = vmatprep.subr.bf16.mxu0 0
    %1622 = vmatpush1.bf16.msra.mxu0 0
    %1623 = vmatprep.subr.bf16.mxu0 0
    %1624 = vmatpush1.bf16.msra.mxu0 0
    %1625 = vmatprep.subr.bf16.mxu0 0
    %1626 = vmatpush1.bf16.msra.mxu0 0
    %1627 = vmatprep.subr.bf16.mxu0 0
    %1628 = vmatpush1.bf16.msra.mxu0 0
    %1629 = vmatprep.subr.bf16.mxu0 0
    %1630 = vmatpush1.bf16.msra.mxu0 0
    %1631 = vmatprep.mubr.bf16.mxu0 0
    %1632 = vmatmul.mubr.bf16.gmra.mrb[0].mxu0 %v1445
    %v1633 = vpop.f32.mrb[0].mxu0
    %v1634 = vadd.f32 %v1556, %v1633
    %v1635 = vpop.f32.mrb[0].mxu0
    %v1636 = vadd.f32 %v1557, %v1635
    %v1637 = vpop.f32.mrb[0].mxu0
    %v1638 = vpop.f32.mrb[0].mxu0
    %1639 = vdwg.mxu0
    %v1640 = vxor.u32 %v1593, 2147483648
    %v1641 = vmul.f32 %v1640, 1.442695
    %v1642 = vpow.pop %v1641
    %v1643 = vadd.f32 %v1642, 1.0
    %v1644 = vrcp.pop %v1643
    %v1645 = vmul.f32 1.0, %v1644
    %v1646 = vxor.u32 %v1595, 2147483648
    %v1647 = vmul.f32 %v1646, 1.442695
    %v1648 = vpow.pop %v1647
    %v1649 = vadd.f32 %v1648, 1.0
    %v1650 = vrcp.pop %v1649
    %v1651 = vmul.f32 1.0, %v1650
    %v1652 = vtanh.pop %v1634
    %v1653 = vxor.u32 %v1636, 2147483648
    %v1654 = vmul.f32 %v1653, 1.442695
    %v1655 = vpow.pop %v1654
    %v1656 = vadd.f32 %v1655, 1.0
    %v1657 = vrcp.pop %v1656
    %v1658 = vmul.f32 1.0, %v1657
    %v1659 = vmul.f32 %v1651, %v1442
    %v1660 = vmul.f32 %v1645, %v1652
    %v1661 = vadd.f32 %v1659, %v1660
    %v1662 = vtanh.pop %v1661
    %v1663 = vmul.f32 %v1658, %v1662
    %v1664 = vpack.c.bf16 %v1663, %v1663
    %v1665 = vpack.c.bf16 %v1552, %v1552
    %1666 = vmatprep.subr.bf16.mxu0 %v663
    %1667 = vmatpush1.bf16.msra.mxu0 %v662
    %1668 = vmatprep.subr.bf16.mxu0 %v667
    %1669 = vmatpush1.bf16.msra.mxu0 %v666
    %1670 = vmatprep.subr.bf16.mxu0 %v671
    %1671 = vmatpush1.bf16.msra.mxu0 %v670
    %1672 = vmatprep.subr.bf16.mxu0 %v675
    %1673 = vmatpush1.bf16.msra.mxu0 %v674
    %1674 = vmatprep.subr.bf16.mxu0 %v679
    %1675 = vmatpush1.bf16.msra.mxu0 %v678
    %1676 = vmatprep.subr.bf16.mxu0 %v683
    %1677 = vmatpush1.bf16.msra.mxu0 %v682
    %1678 = vmatprep.subr.bf16.mxu0 %v687
    %1679 = vmatpush1.bf16.msra.mxu0 %v686
    %1680 = vmatprep.subr.bf16.mxu0 %v691
    %1681 = vmatpush1.bf16.msra.mxu0 %v690
    %1682 = vmatprep.subr.bf16.mxu0 %v695
    %1683 = vmatpush1.bf16.msra.mxu0 %v694
    %1684 = vmatprep.subr.bf16.mxu0 %v699
    %1685 = vmatpush1.bf16.msra.mxu0 %v698
    %1686 = vmatprep.subr.bf16.mxu0 %v703
    %1687 = vmatpush1.bf16.msra.mxu0 %v702
    %1688 = vmatprep.subr.bf16.mxu0 %v707
    %1689 = vmatpush1.bf16.msra.mxu0 %v706
    %1690 = vmatprep.subr.bf16.mxu0 %v711
    %1691 = vmatpush1.bf16.msra.mxu0 %v710
    %1692 = vmatprep.subr.bf16.mxu0 %v715
    %1693 = vmatpush1.bf16.msra.mxu0 %v714
    %1694 = vmatprep.subr.bf16.mxu0 %v719
    %1695 = vmatpush1.bf16.msra.mxu0 %v718
    %1696 = vmatprep.subr.bf16.mxu0 %v723
    %1697 = vmatpush1.bf16.msra.mxu0 %v722
    %1698 = vmatprep.mubr.bf16.mxu0 %v1665
    %1699 = vmatmul.mubr.bf16.gmra.mrb[0].mxu0 %v1664
    %v1700 = vpop.f32.mrb[0].mxu0
    %v1701 = vadd.f32 %v176, %v1700
    %v1702 = vpop.f32.mrb[0].mxu0
    %v1703 = vadd.f32 %v180, %v1702
    %v1704 = vpop.f32.mrb[0].mxu0
    %v1705 = vpop.f32.mrb[0].mxu0
    %1706 = vdwg.mxu0
    %1707 = vmatprep.subr.bf16.mxu0 %v665
    %1708 = vmatpush1.bf16.msra.mxu0 %v664
    %1709 = vmatprep.subr.bf16.mxu0 %v669
    %1710 = vmatpush1.bf16.msra.mxu0 %v668
    %1711 = vmatprep.subr.bf16.mxu0 %v673
    %1712 = vmatpush1.bf16.msra.mxu0 %v672
    %1713 = vmatprep.subr.bf16.mxu0 %v677
    %1714 = vmatpush1.bf16.msra.mxu0 %v676
    %1715 = vmatprep.subr.bf16.mxu0 %v681
    %1716 = vmatpush1.bf16.msra.mxu0 %v680
    %1717 = vmatprep.subr.bf16.mxu0 %v685
    %1718 = vmatpush1.bf16.msra.mxu0 %v684
    %1719 = vmatprep.subr.bf16.mxu0 %v689
    %1720 = vmatpush1.bf16.msra.mxu0 %v688
    %1721 = vmatprep.subr.bf16.mxu0 %v693
    %1722 = vmatpush1.bf16.msra.mxu0 %v692
    %1723 = vmatprep.subr.bf16.mxu0 %v697
    %1724 = vmatpush1.bf16.msra.mxu0 %v696
    %1725 = vmatprep.subr.bf16.mxu0 %v701
    %1726 = vmatpush1.bf16.msra.mxu0 %v700
    %1727 = vmatprep.subr.bf16.mxu0 %v705
    %1728 = vmatpush1.bf16.msra.mxu0 %v704
    %1729 = vmatprep.subr.bf16.mxu0 %v709
    %1730 = vmatpush1.bf16.msra.mxu0 %v708
    %1731 = vmatprep.subr.bf16.mxu0 %v713
    %1732 = vmatpush1.bf16.msra.mxu0 %v712
    %1733 = vmatprep.subr.bf16.mxu0 %v717
    %1734 = vmatpush1.bf16.msra.mxu0 %v716
    %1735 = vmatprep.subr.bf16.mxu0 %v721
    %1736 = vmatpush1.bf16.msra.mxu0 %v720
    %1737 = vmatprep.subr.bf16.mxu0 %v725
    %1738 = vmatpush1.bf16.msra.mxu0 %v724
    %1739 = vmatprep.mubr.bf16.mxu0 %v1665
    %1740 = vmatmul.mubr.bf16.gmra.mrb[0].mxu0 %v1664
    %v1741 = vpop.f32.mrb[0].mxu0
    %v1742 = vadd.f32 %v184, %v1741
    %v1743 = vpop.f32.mrb[0].mxu0
    %v1744 = vadd.f32 %v188, %v1743
    %v1745 = vpop.f32.mrb[0].mxu0
    %v1746 = vpop.f32.mrb[0].mxu0
    %1747 = vdwg.mxu0
    %v1748 = vxor.u32 %v1701, 2147483648
    %v1749 = vmul.f32 %v1748, 1.442695
    %v1750 = vpow.pop %v1749
    %v1751 = vadd.f32 %v1750, 1.0
    %v1752 = vrcp.pop %v1751
    %v1753 = vmul.f32 1.0, %v1752
    %v1754 = vxor.u32 %v1703, 2147483648
    %v1755 = vmul.f32 %v1754, 1.442695
    %v1756 = vpow.pop %v1755
    %v1757 = vadd.f32 %v1756, 1.0
    %v1758 = vrcp.pop %v1757
    %v1759 = vmul.f32 1.0, %v1758
    %v1760 = vtanh.pop %v1742
    %v1761 = vxor.u32 %v1744, 2147483648
    %v1762 = vmul.f32 %v1761, 1.442695
    %v1763 = vpow.pop %v1762
    %v1764 = vadd.f32 %v1763, 1.0
    %v1765 = vrcp.pop %v1764
    %v1766 = vmul.f32 1.0, %v1765
    %v1767 = vmul.f32 %v1759, %v1550
    %v1768 = vmul.f32 %v1753, %v1760
    %v1769 = vadd.f32 %v1767, %v1768
    %v1770 = vtanh.pop %v1769
    %v1771 = vmul.f32 %v1766, %v1770
    %s1772 = scalar_lea.vmem [#allocation7], 160
    %v1773 = vld [vmem:[%s1772] sm:$0xff]
    %v1774 = vld [vmem:[%s1772 + $0x8] sm:$0xff]
    %v1775 = vld [vmem:[%s1772 + $0x10] sm:$0xff]
    %v1776 = vld [vmem:[%s1772 + $0x18] sm:$0xff]
    %1777 = vmatprep.subr.bf16.mxu0 %v299
    %1778 = vmatpush1.bf16.msra.mxu0 %v298
    %1779 = vmatprep.subr.bf16.mxu0 %v303
    %1780 = vmatpush1.bf16.msra.mxu0 %v302
    %1781 = vmatprep.subr.bf16.mxu0 %v307
    %1782 = vmatpush1.bf16.msra.mxu0 %v306
    %1783 = vmatprep.subr.bf16.mxu0 %v311
    %1784 = vmatpush1.bf16.msra.mxu0 %v310
    %1785 = vmatprep.subr.bf16.mxu0 %v315
    %1786 = vmatpush1.bf16.msra.mxu0 %v314
    %1787 = vmatprep.subr.bf16.mxu0 %v319
    %1788 = vmatpush1.bf16.msra.mxu0 %v318
    %1789 = vmatprep.subr.bf16.mxu0 %v323
    %1790 = vmatpush1.bf16.msra.mxu0 %v322
    %1791 = vmatprep.subr.bf16.mxu0 %v327
    %1792 = vmatpush1.bf16.msra.mxu0 %v326
    %1793 = vmatprep.subr.bf16.mxu0 0
    %1794 = vmatpush1.bf16.msra.mxu0 0
    %1795 = vmatprep.subr.bf16.mxu0 0
    %1796 = vmatpush1.bf16.msra.mxu0 0
    %1797 = vmatprep.subr.bf16.mxu0 0
    %1798 = vmatpush1.bf16.msra.mxu0 0
    %1799 = vmatprep.subr.bf16.mxu0 0
    %1800 = vmatpush1.bf16.msra.mxu0 0
    %1801 = vmatprep.subr.bf16.mxu0 0
    %1802 = vmatpush1.bf16.msra.mxu0 0
    %1803 = vmatprep.subr.bf16.mxu0 0
    %1804 = vmatpush1.bf16.msra.mxu0 0
    %1805 = vmatprep.subr.bf16.mxu0 0
    %1806 = vmatpush1.bf16.msra.mxu0 0
    %1807 = vmatprep.subr.bf16.mxu0 0
    %1808 = vmatpush1.bf16.msra.mxu0 0
    %1809 = vmatprep.mubr.bf16.mxu0 0
    %1810 = vmatmul.mubr.bf16.gmra.mrb[0].mxu0 %v1664
    %v1811 = vpop.f32.mrb[0].mxu0
    %v1812 = vadd.f32 %v1773, %v1811
    %v1813 = vpop.f32.mrb[0].mxu0
    %v1814 = vadd.f32 %v1774, %v1813
    %v1815 = vpop.f32.mrb[0].mxu0
    %v1816 = vpop.f32.mrb[0].mxu0
    %1817 = vdwg.mxu0
    %1818 = vmatprep.subr.bf16.mxu0 %v301
    %1819 = vmatpush1.bf16.msra.mxu0 %v300
    %1820 = vmatprep.subr.bf16.mxu0 %v305
    %1821 = vmatpush1.bf16.msra.mxu0 %v304
    %1822 = vmatprep.subr.bf16.mxu0 %v309
    %1823 = vmatpush1.bf16.msra.mxu0 %v308
    %1824 = vmatprep.subr.bf16.mxu0 %v313
    %1825 = vmatpush1.bf16.msra.mxu0 %v312
    %1826 = vmatprep.subr.bf16.mxu0 %v317
    %1827 = vmatpush1.bf16.msra.mxu0 %v316
    %1828 = vmatprep.subr.bf16.mxu0 %v321
    %1829 = vmatpush1.bf16.msra.mxu0 %v320
    %1830 = vmatprep.subr.bf16.mxu0 %v325
    %1831 = vmatpush1.bf16.msra.mxu0 %v324
    %1832 = vmatprep.subr.bf16.mxu0 %v329
    %1833 = vmatpush1.bf16.msra.mxu0 %v328
    %1834 = vmatprep.subr.bf16.mxu0 0
    %1835 = vmatpush1.bf16.msra.mxu0 0
    %1836 = vmatprep.subr.bf16.mxu0 0
    %1837 = vmatpush1.bf16.msra.mxu0 0
    %1838 = vmatprep.subr.bf16.mxu0 0
    %1839 = vmatpush1.bf16.msra.mxu0 0
    %1840 = vmatprep.subr.bf16.mxu0 0
    %1841 = vmatpush1.bf16.msra.mxu0 0
    %1842 = vmatprep.subr.bf16.mxu0 0
    %1843 = vmatpush1.bf16.msra.mxu0 0
    %1844 = vmatprep.subr.bf16.mxu0 0
    %1845 = vmatpush1.bf16.msra.mxu0 0
    %1846 = vmatprep.subr.bf16.mxu0 0
    %1847 = vmatpush1.bf16.msra.mxu0 0
    %1848 = vmatprep.subr.bf16.mxu0 0
    %1849 = vmatpush1.bf16.msra.mxu0 0
    %1850 = vmatprep.mubr.bf16.mxu0 0
    %1851 = vmatmul.mubr.bf16.gmra.mrb[0].mxu0 %v1664
    %v1852 = vpop.f32.mrb[0].mxu0
    %v1853 = vadd.f32 %v1775, %v1852
    %v1854 = vpop.f32.mrb[0].mxu0
    %v1855 = vadd.f32 %v1776, %v1854
    %v1856 = vpop.f32.mrb[0].mxu0
    %v1857 = vpop.f32.mrb[0].mxu0
    %1858 = vdwg.mxu0
    %v1859 = vxor.u32 %v1812, 2147483648
    %v1860 = vmul.f32 %v1859, 1.442695
    %v1861 = vpow.pop %v1860
    %v1862 = vadd.f32 %v1861, 1.0
    %v1863 = vrcp.pop %v1862
    %v1864 = vmul.f32 1.0, %v1863
    %v1865 = vxor.u32 %v1814, 2147483648
    %v1866 = vmul.f32 %v1865, 1.442695
    %v1867 = vpow.pop %v1866
    %v1868 = vadd.f32 %v1867, 1.0
    %v1869 = vrcp.pop %v1868
    %v1870 = vmul.f32 1.0, %v1869
    %v1871 = vtanh.pop %v1853
    %v1872 = vxor.u32 %v1855, 2147483648
    %v1873 = vmul.f32 %v1872, 1.442695
    %v1874 = vpow.pop %v1873
    %v1875 = vadd.f32 %v1874, 1.0
    %v1876 = vrcp.pop %v1875
    %v1877 = vmul.f32 1.0, %v1876
    %v1878 = vmul.f32 %v1870, %v1661
    %v1879 = vmul.f32 %v1864, %v1871
    %v1880 = vadd.f32 %v1878, %v1879
    %v1881 = vtanh.pop %v1880
    %v1882 = vmul.f32 %v1877, %v1881
    %v1883 = vpack.c.bf16 %v1882, %v1882
    %v1884 = vpack.c.bf16 %v1771, %v1771
    %1885 = vmatprep.subr.bf16.mxu0 %v663
    %1886 = vmatpush1.bf16.msra.mxu0 %v662
    %1887 = vmatprep.subr.bf16.mxu0 %v667
    %1888 = vmatpush1.bf16.msra.mxu0 %v666
    %1889 = vmatprep.subr.bf16.mxu0 %v671
    %1890 = vmatpush1.bf16.msra.mxu0 %v670
    %1891 = vmatprep.subr.bf16.mxu0 %v675
    %1892 = vmatpush1.bf16.msra.mxu0 %v674
    %1893 = vmatprep.subr.bf16.mxu0 %v679
    %1894 = vmatpush1.bf16.msra.mxu0 %v678
    %1895 = vmatprep.subr.bf16.mxu0 %v683
    %1896 = vmatpush1.bf16.msra.mxu0 %v682
    %1897 = vmatprep.subr.bf16.mxu0 %v687
    %1898 = vmatpush1.bf16.msra.mxu0 %v686
    %1899 = vmatprep.subr.bf16.mxu0 %v691
    %1900 = vmatpush1.bf16.msra.mxu0 %v690
    %1901 = vmatprep.subr.bf16.mxu0 %v695
    %1902 = vmatpush1.bf16.msra.mxu0 %v694
    %1903 = vmatprep.subr.bf16.mxu0 %v699
    %1904 = vmatpush1.bf16.msra.mxu0 %v698
    %1905 = vmatprep.subr.bf16.mxu0 %v703
    %1906 = vmatpush1.bf16.msra.mxu0 %v702
    %1907 = vmatprep.subr.bf16.mxu0 %v707
    %1908 = vmatpush1.bf16.msra.mxu0 %v706
    %1909 = vmatprep.subr.bf16.mxu0 %v711
    %1910 = vmatpush1.bf16.msra.mxu0 %v710
    %1911 = vmatprep.subr.bf16.mxu0 %v715
    %1912 = vmatpush1.bf16.msra.mxu0 %v714
    %1913 = vmatprep.subr.bf16.mxu0 %v719
    %1914 = vmatpush1.bf16.msra.mxu0 %v718
    %1915 = vmatprep.subr.bf16.mxu0 %v723
    %1916 = vmatpush1.bf16.msra.mxu0 %v722
    %1917 = vmatprep.mubr.bf16.mxu0 %v1884
    %1918 = vmatmul.mubr.bf16.gmra.mrb[0].mxu0 %v1883
    %v1919 = vpop.f32.mrb[0].mxu0
    %v1920 = vadd.f32 %v176, %v1919
    %v1921 = vpop.f32.mrb[0].mxu0
    %v1922 = vadd.f32 %v180, %v1921
    %v1923 = vpop.f32.mrb[0].mxu0
    %v1924 = vpop.f32.mrb[0].mxu0
    %1925 = vdwg.mxu0
    %1926 = vmatprep.subr.bf16.mxu0 %v665
    %1927 = vmatpush1.bf16.msra.mxu0 %v664
    %1928 = vmatprep.subr.bf16.mxu0 %v669
    %1929 = vmatpush1.bf16.msra.mxu0 %v668
    %1930 = vmatprep.subr.bf16.mxu0 %v673
    %1931 = vmatpush1.bf16.msra.mxu0 %v672
    %1932 = vmatprep.subr.bf16.mxu0 %v677
    %1933 = vmatpush1.bf16.msra.mxu0 %v676
    %1934 = vmatprep.subr.bf16.mxu0 %v681
    %1935 = vmatpush1.bf16.msra.mxu0 %v680
    %1936 = vmatprep.subr.bf16.mxu0 %v685
    %1937 = vmatpush1.bf16.msra.mxu0 %v684
    %1938 = vmatprep.subr.bf16.mxu0 %v689
    %1939 = vmatpush1.bf16.msra.mxu0 %v688
    %1940 = vmatprep.subr.bf16.mxu0 %v693
    %1941 = vmatpush1.bf16.msra.mxu0 %v692
    %1942 = vmatprep.subr.bf16.mxu0 %v697
    %1943 = vmatpush1.bf16.msra.mxu0 %v696
    %1944 = vmatprep.subr.bf16.mxu0 %v701
    %1945 = vmatpush1.bf16.msra.mxu0 %v700
    %1946 = vmatprep.subr.bf16.mxu0 %v705
    %1947 = vmatpush1.bf16.msra.mxu0 %v704
    %1948 = vmatprep.subr.bf16.mxu0 %v709
    %1949 = vmatpush1.bf16.msra.mxu0 %v708
    %1950 = vmatprep.subr.bf16.mxu0 %v713
    %1951 = vmatpush1.bf16.msra.mxu0 %v712
    %1952 = vmatprep.subr.bf16.mxu0 %v717
    %1953 = vmatpush1.bf16.msra.mxu0 %v716
    %1954 = vmatprep.subr.bf16.mxu0 %v721
    %1955 = vmatpush1.bf16.msra.mxu0 %v720
    %1956 = vmatprep.subr.bf16.mxu0 %v725
    %1957 = vmatpush1.bf16.msra.mxu0 %v724
    %1958 = vmatprep.mubr.bf16.mxu0 %v1884
    %1959 = vmatmul.mubr.bf16.gmra.mrb[0].mxu0 %v1883
    %v1960 = vpop.f32.mrb[0].mxu0
    %v1961 = vadd.f32 %v184, %v1960
    %v1962 = vpop.f32.mrb[0].mxu0
    %v1963 = vadd.f32 %v188, %v1962
    %v1964 = vpop.f32.mrb[0].mxu0
    %v1965 = vpop.f32.mrb[0].mxu0
    %1966 = vdwg.mxu0
    %v1967 = vxor.u32 %v1920, 2147483648
    %v1968 = vmul.f32 %v1967, 1.442695
    %v1969 = vpow.pop %v1968
    %v1970 = vadd.f32 %v1969, 1.0
    %v1971 = vrcp.pop %v1970
    %v1972 = vmul.f32 1.0, %v1971
    %v1973 = vxor.u32 %v1922, 2147483648
    %v1974 = vmul.f32 %v1973, 1.442695
    %v1975 = vpow.pop %v1974
    %v1976 = vadd.f32 %v1975, 1.0
    %v1977 = vrcp.pop %v1976
    %v1978 = vmul.f32 1.0, %v1977
    %v1979 = vtanh.pop %v1961
    %v1980 = vxor.u32 %v1963, 2147483648
    %v1981 = vmul.f32 %v1980, 1.442695
    %v1982 = vpow.pop %v1981
    %v1983 = vadd.f32 %v1982, 1.0
    %v1984 = vrcp.pop %v1983
    %v1985 = vmul.f32 1.0, %v1984
    %v1986 = vmul.f32 %v1978, %v1769
    %v1987 = vmul.f32 %v1972, %v1979
    %v1988 = vadd.f32 %v1986, %v1987
    %v1989 = vtanh.pop %v1988
    %v1990 = vmul.f32 %v1985, %v1989
    %s1991 = scalar_lea.vmem [#allocation7], 192
    %v1992 = vld [vmem:[%s1991] sm:$0xff]
    %v1993 = vld [vmem:[%s1991 + $0x8] sm:$0xff]
    %v1994 = vld [vmem:[%s1991 + $0x10] sm:$0xff]
    %v1995 = vld [vmem:[%s1991 + $0x18] sm:$0xff]
    %1996 = vmatprep.subr.bf16.mxu0 %v299
    %1997 = vmatpush1.bf16.msra.mxu0 %v298
    %1998 = vmatprep.subr.bf16.mxu0 %v303
    %1999 = vmatpush1.bf16.msra.mxu0 %v302
    %2000 = vmatprep.subr.bf16.mxu0 %v307
    %2001 = vmatpush1.bf16.msra.mxu0 %v306
    %2002 = vmatprep.subr.bf16.mxu0 %v311
    %2003 = vmatpush1.bf16.msra.mxu0 %v310
    %2004 = vmatprep.subr.bf16.mxu0 %v315
    %2005 = vmatpush1.bf16.msra.mxu0 %v314
    %2006 = vmatprep.subr.bf16.mxu0 %v319
    %2007 = vmatpush1.bf16.msra.mxu0 %v318
    %2008 = vmatprep.subr.bf16.mxu0 %v323
    %2009 = vmatpush1.bf16.msra.mxu0 %v322
    %2010 = vmatprep.subr.bf16.mxu0 %v327
    %2011 = vmatpush1.bf16.msra.mxu0 %v326
    %2012 = vmatprep.subr.bf16.mxu0 0
    %2013 = vmatpush1.bf16.msra.mxu0 0
    %2014 = vmatprep.subr.bf16.mxu0 0
    %2015 = vmatpush1.bf16.msra.mxu0 0
    %2016 = vmatprep.subr.bf16.mxu0 0
    %2017 = vmatpush1.bf16.msra.mxu0 0
    %2018 = vmatprep.subr.bf16.mxu0 0
    %2019 = vmatpush1.bf16.msra.mxu0 0
    %2020 = vmatprep.subr.bf16.mxu0 0
    %2021 = vmatpush1.bf16.msra.mxu0 0
    %2022 = vmatprep.subr.bf16.mxu0 0
    %2023 = vmatpush1.bf16.msra.mxu0 0
    %2024 = vmatprep.subr.bf16.mxu0 0
    %2025 = vmatpush1.bf16.msra.mxu0 0
    %2026 = vmatprep.subr.bf16.mxu0 0
    %2027 = vmatpush1.bf16.msra.mxu0 0
    %2028 = vmatprep.mubr.bf16.mxu0 0
    %2029 = vmatmul.mubr.bf16.gmra.mrb[0].mxu0 %v1883
    %v2030 = vpop.f32.mrb[0].mxu0
    %v2031 = vadd.f32 %v1992, %v2030
    %v2032 = vpop.f32.mrb[0].mxu0
    %v2033 = vadd.f32 %v1993, %v2032
    %v2034 = vpop.f32.mrb[0].mxu0
    %v2035 = vpop.f32.mrb[0].mxu0
    %2036 = vdwg.mxu0
    %2037 = vmatprep.subr.bf16.mxu0 %v301
    %2038 = vmatpush1.bf16.msra.mxu0 %v300
    %2039 = vmatprep.subr.bf16.mxu0 %v305
    %2040 = vmatpush1.bf16.msra.mxu0 %v304
    %2041 = vmatprep.subr.bf16.mxu0 %v309
    %2042 = vmatpush1.bf16.msra.mxu0 %v308
    %2043 = vmatprep.subr.bf16.mxu0 %v313
    %2044 = vmatpush1.bf16.msra.mxu0 %v312
    %2045 = vmatprep.subr.bf16.mxu0 %v317
    %2046 = vmatpush1.bf16.msra.mxu0 %v316
    %2047 = vmatprep.subr.bf16.mxu0 %v321
    %2048 = vmatpush1.bf16.msra.mxu0 %v320
    %2049 = vmatprep.subr.bf16.mxu0 %v325
    %2050 = vmatpush1.bf16.msra.mxu0 %v324
    %2051 = vmatprep.subr.bf16.mxu0 %v329
    %2052 = vmatpush1.bf16.msra.mxu0 %v328
    %2053 = vmatprep.subr.bf16.mxu0 0
    %2054 = vmatpush1.bf16.msra.mxu0 0
    %2055 = vmatprep.subr.bf16.mxu0 0
    %2056 = vmatpush1.bf16.msra.mxu0 0
    %2057 = vmatprep.subr.bf16.mxu0 0
    %2058 = vmatpush1.bf16.msra.mxu0 0
    %2059 = vmatprep.subr.bf16.mxu0 0
    %2060 = vmatpush1.bf16.msra.mxu0 0
    %2061 = vmatprep.subr.bf16.mxu0 0
    %2062 = vmatpush1.bf16.msra.mxu0 0
    %2063 = vmatprep.subr.bf16.mxu0 0
    %2064 = vmatpush1.bf16.msra.mxu0 0
    %2065 = vmatprep.subr.bf16.mxu0 0
    %2066 = vmatpush1.bf16.msra.mxu0 0
    %2067 = vmatprep.subr.bf16.mxu0 0
    %2068 = vmatpush1.bf16.msra.mxu0 0
    %2069 = vmatprep.mubr.bf16.mxu0 0
    %2070 = vmatmul.mubr.bf16.gmra.mrb[0].mxu0 %v1883
    %v2071 = vpop.f32.mrb[0].mxu0
    %v2072 = vadd.f32 %v1994, %v2071
    %v2073 = vpop.f32.mrb[0].mxu0
    %v2074 = vadd.f32 %v1995, %v2073
    %v2075 = vpop.f32.mrb[0].mxu0
    %v2076 = vpop.f32.mrb[0].mxu0
    %2077 = vdwg.mxu0
    %v2078 = vxor.u32 %v2031, 2147483648
    %v2079 = vmul.f32 %v2078, 1.442695
    %v2080 = vpow.pop %v2079
    %v2081 = vadd.f32 %v2080, 1.0
    %v2082 = vrcp.pop %v2081
    %v2083 = vmul.f32 1.0, %v2082
    %v2084 = vxor.u32 %v2033, 2147483648
    %v2085 = vmul.f32 %v2084, 1.442695
    %v2086 = vpow.pop %v2085
    %v2087 = vadd.f32 %v2086, 1.0
    %v2088 = vrcp.pop %v2087
    %v2089 = vmul.f32 1.0, %v2088
    %v2090 = vtanh.pop %v2072
    %v2091 = vxor.u32 %v2074, 2147483648
    %v2092 = vmul.f32 %v2091, 1.442695
    %v2093 = vpow.pop %v2092
    %v2094 = vadd.f32 %v2093, 1.0
    %v2095 = vrcp.pop %v2094
    %v2096 = vmul.f32 1.0, %v2095
    %v2097 = vmul.f32 %v2089, %v1880
    %v2098 = vmul.f32 %v2083, %v2090
    %v2099 = vadd.f32 %v2097, %v2098
    %v2100 = vtanh.pop %v2099
    %v2101 = vmul.f32 %v2096, %v2100
    %v2102 = vpack.c.bf16 %v2101, %v2101
    %v2103 = vpack.c.bf16 %v1990, %v1990
    %2104 = vmatprep.subr.bf16.mxu0 %v663
    %2105 = vmatpush1.bf16.msra.mxu0 %v662
    %2106 = vmatprep.subr.bf16.mxu0 %v667
    %2107 = vmatpush1.bf16.msra.mxu0 %v666
    %2108 = vmatprep.subr.bf16.mxu0 %v671
    %2109 = vmatpush1.bf16.msra.mxu0 %v670
    %2110 = vmatprep.subr.bf16.mxu0 %v675
    %2111 = vmatpush1.bf16.msra.mxu0 %v674
    %2112 = vmatprep.subr.bf16.mxu0 %v679
    %2113 = vmatpush1.bf16.msra.mxu0 %v678
    %2114 = vmatprep.subr.bf16.mxu0 %v683
    %2115 = vmatpush1.bf16.msra.mxu0 %v682
    %2116 = vmatprep.subr.bf16.mxu0 %v687
    %2117 = vmatpush1.bf16.msra.mxu0 %v686
    %2118 = vmatprep.subr.bf16.mxu0 %v691
    %2119 = vmatpush1.bf16.msra.mxu0 %v690
    %2120 = vmatprep.subr.bf16.mxu0 %v695
    %2121 = vmatpush1.bf16.msra.mxu0 %v694
    %2122 = vmatprep.subr.bf16.mxu0 %v699
    %2123 = vmatpush1.bf16.msra.mxu0 %v698
    %2124 = vmatprep.subr.bf16.mxu0 %v703
    %2125 = vmatpush1.bf16.msra.mxu0 %v702
    %2126 = vmatprep.subr.bf16.mxu0 %v707
    %2127 = vmatpush1.bf16.msra.mxu0 %v706
    %2128 = vmatprep.subr.bf16.mxu0 %v711
    %2129 = vmatpush1.bf16.msra.mxu0 %v710
    %2130 = vmatprep.subr.bf16.mxu0 %v715
    %2131 = vmatpush1.bf16.msra.mxu0 %v714
    %2132 = vmatprep.subr.bf16.mxu0 %v719
    %2133 = vmatpush1.bf16.msra.mxu0 %v718
    %2134 = vmatprep.subr.bf16.mxu0 %v723
    %2135 = vmatpush1.bf16.msra.mxu0 %v722
    %2136 = vmatprep.mubr.bf16.mxu0 %v2103
    %2137 = vmatmul.mubr.bf16.gmra.mrb[0].mxu0 %v2102
    %v2138 = vpop.f32.mrb[0].mxu0
    %v2139 = vadd.f32 %v176, %v2138
    %v2140 = vpop.f32.mrb[0].mxu0
    %v2141 = vadd.f32 %v180, %v2140
    %v2142 = vpop.f32.mrb[0].mxu0
    %v2143 = vpop.f32.mrb[0].mxu0
    %2144 = vdwg.mxu0
    %2145 = vmatprep.subr.bf16.mxu0 %v665
    %2146 = vmatpush1.bf16.msra.mxu0 %v664
    %2147 = vmatprep.subr.bf16.mxu0 %v669
    %2148 = vmatpush1.bf16.msra.mxu0 %v668
    %2149 = vmatprep.subr.bf16.mxu0 %v673
    %2150 = vmatpush1.bf16.msra.mxu0 %v672
    %2151 = vmatprep.subr.bf16.mxu0 %v677
    %2152 = vmatpush1.bf16.msra.mxu0 %v676
    %2153 = vmatprep.subr.bf16.mxu0 %v681
    %2154 = vmatpush1.bf16.msra.mxu0 %v680
    %2155 = vmatprep.subr.bf16.mxu0 %v685
    %2156 = vmatpush1.bf16.msra.mxu0 %v684
    %2157 = vmatprep.subr.bf16.mxu0 %v689
    %2158 = vmatpush1.bf16.msra.mxu0 %v688
    %2159 = vmatprep.subr.bf16.mxu0 %v693
    %2160 = vmatpush1.bf16.msra.mxu0 %v692
    %2161 = vmatprep.subr.bf16.mxu0 %v697
    %2162 = vmatpush1.bf16.msra.mxu0 %v696
    %2163 = vmatprep.subr.bf16.mxu0 %v701
    %2164 = vmatpush1.bf16.msra.mxu0 %v700
    %2165 = vmatprep.subr.bf16.mxu0 %v705
    %2166 = vmatpush1.bf16.msra.mxu0 %v704
    %2167 = vmatprep.subr.bf16.mxu0 %v709
    %2168 = vmatpush1.bf16.msra.mxu0 %v708
    %2169 = vmatprep.subr.bf16.mxu0 %v713
    %2170 = vmatpush1.bf16.msra.mxu0 %v712
    %2171 = vmatprep.subr.bf16.mxu0 %v717
    %2172 = vmatpush1.bf16.msra.mxu0 %v716
    %2173 = vmatprep.subr.bf16.mxu0 %v721
    %2174 = vmatpush1.bf16.msra.mxu0 %v720
    %2175 = vmatprep.subr.bf16.mxu0 %v725
    %2176 = vmatpush1.bf16.msra.mxu0 %v724
    %2177 = vmatprep.mubr.bf16.mxu0 %v2103
    %2178 = vmatmul.mubr.bf16.gmra.mrb[0].mxu0 %v2102
    %v2179 = vpop.f32.mrb[0].mxu0
    %v2180 = vadd.f32 %v184, %v2179
    %v2181 = vpop.f32.mrb[0].mxu0
    %v2182 = vadd.f32 %v188, %v2181
    %v2183 = vpop.f32.mrb[0].mxu0
    %v2184 = vpop.f32.mrb[0].mxu0
    %2185 = vdwg.mxu0
    %v2186 = vxor.u32 %v2139, 2147483648
    %v2187 = vmul.f32 %v2186, 1.442695
    %v2188 = vpow.pop %v2187
    %v2189 = vadd.f32 %v2188, 1.0
    %v2190 = vrcp.pop %v2189
    %v2191 = vmul.f32 1.0, %v2190
    %v2192 = vxor.u32 %v2141, 2147483648
    %v2193 = vmul.f32 %v2192, 1.442695
    %v2194 = vpow.pop %v2193
    %v2195 = vadd.f32 %v2194, 1.0
    %v2196 = vrcp.pop %v2195
    %v2197 = vmul.f32 1.0, %v2196
    %v2198 = vtanh.pop %v2180
    %v2199 = vxor.u32 %v2182, 2147483648
    %v2200 = vmul.f32 %v2199, 1.442695
    %v2201 = vpow.pop %v2200
    %v2202 = vadd.f32 %v2201, 1.0
    %v2203 = vrcp.pop %v2202
    %v2204 = vmul.f32 1.0, %v2203
    %v2205 = vmul.f32 %v2197, %v1988
    %v2206 = vmul.f32 %v2191, %v2198
    %v2207 = vadd.f32 %v2205, %v2206
    %v2208 = vtanh.pop %v2207
    %v2209 = vmul.f32 %v2204, %v2208
    %s2210 = scalar_lea.vmem [#allocation7], 224
    %v2211 = vld [vmem:[%s2210] sm:$0xff]
    %v2212 = vld [vmem:[%s2210 + $0x8] sm:$0xff]
    %v2213 = vld [vmem:[%s2210 + $0x10] sm:$0xff]
    %v2214 = vld [vmem:[%s2210 + $0x18] sm:$0xff]
    %2215 = vmatprep.subr.bf16.mxu0 %v299
    %2216 = vmatpush1.bf16.msra.mxu0 %v298
    %2217 = vmatprep.subr.bf16.mxu0 %v303
    %2218 = vmatpush1.bf16.msra.mxu0 %v302
    %2219 = vmatprep.subr.bf16.mxu0 %v307
    %2220 = vmatpush1.bf16.msra.mxu0 %v306
    %2221 = vmatprep.subr.bf16.mxu0 %v311
    %2222 = vmatpush1.bf16.msra.mxu0 %v310
    %2223 = vmatprep.subr.bf16.mxu0 %v315
    %2224 = vmatpush1.bf16.msra.mxu0 %v314
    %2225 = vmatprep.subr.bf16.mxu0 %v319
    %2226 = vmatpush1.bf16.msra.mxu0 %v318
    %2227 = vmatprep.subr.bf16.mxu0 %v323
    %2228 = vmatpush1.bf16.msra.mxu0 %v322
    %2229 = vmatprep.subr.bf16.mxu0 %v327
    %2230 = vmatpush1.bf16.msra.mxu0 %v326
    %2231 = vmatprep.subr.bf16.mxu0 0
    %2232 = vmatpush1.bf16.msra.mxu0 0
    %2233 = vmatprep.subr.bf16.mxu0 0
    %2234 = vmatpush1.bf16.msra.mxu0 0
    %2235 = vmatprep.subr.bf16.mxu0 0
    %2236 = vmatpush1.bf16.msra.mxu0 0
    %2237 = vmatprep.subr.bf16.mxu0 0
    %2238 = vmatpush1.bf16.msra.mxu0 0
    %2239 = vmatprep.subr.bf16.mxu0 0
    %2240 = vmatpush1.bf16.msra.mxu0 0
    %2241 = vmatprep.subr.bf16.mxu0 0
    %2242 = vmatpush1.bf16.msra.mxu0 0
    %2243 = vmatprep.subr.bf16.mxu0 0
    %2244 = vmatpush1.bf16.msra.mxu0 0
    %2245 = vmatprep.subr.bf16.mxu0 0
    %2246 = vmatpush1.bf16.msra.mxu0 0
    %2247 = vmatprep.mubr.bf16.mxu0 0
    %2248 = vmatmul.mubr.bf16.gmra.mrb[0].mxu0 %v2102
    %v2249 = vpop.f32.mrb[0].mxu0
    %v2250 = vadd.f32 %v2211, %v2249
    %v2251 = vpop.f32.mrb[0].mxu0
    %v2252 = vadd.f32 %v2212, %v2251
    %v2253 = vpop.f32.mrb[0].mxu0
    %v2254 = vpop.f32.mrb[0].mxu0
    %2255 = vdwg.mxu0
    %2256 = vmatprep.subr.bf16.mxu0 %v301
    %2257 = vmatpush1.bf16.msra.mxu0 %v300
    %2258 = vmatprep.subr.bf16.mxu0 %v305
    %2259 = vmatpush1.bf16.msra.mxu0 %v304
    %2260 = vmatprep.subr.bf16.mxu0 %v309
    %2261 = vmatpush1.bf16.msra.mxu0 %v308
    %2262 = vmatprep.subr.bf16.mxu0 %v313
    %2263 = vmatpush1.bf16.msra.mxu0 %v312
    %2264 = vmatprep.subr.bf16.mxu0 %v317
    %2265 = vmatpush1.bf16.msra.mxu0 %v316
    %2266 = vmatprep.subr.bf16.mxu0 %v321
    %2267 = vmatpush1.bf16.msra.mxu0 %v320
    %2268 = vmatprep.subr.bf16.mxu0 %v325
    %2269 = vmatpush1.bf16.msra.mxu0 %v324
    %2270 = vmatprep.subr.bf16.mxu0 %v329
    %2271 = vmatpush1.bf16.msra.mxu0 %v328
    %2272 = vmatprep.subr.bf16.mxu0 0
    %2273 = vmatpush1.bf16.msra.mxu0 0
    %2274 = vmatprep.subr.bf16.mxu0 0
    %2275 = vmatpush1.bf16.msra.mxu0 0
    %2276 = vmatprep.subr.bf16.mxu0 0
    %2277 = vmatpush1.bf16.msra.mxu0 0
    %2278 = vmatprep.subr.bf16.mxu0 0
    %2279 = vmatpush1.bf16.msra.mxu0 0
    %2280 = vmatprep.subr.bf16.mxu0 0
    %2281 = vmatpush1.bf16.msra.mxu0 0
    %2282 = vmatprep.subr.bf16.mxu0 0
    %2283 = vmatpush1.bf16.msra.mxu0 0
    %2284 = vmatprep.subr.bf16.mxu0 0
    %2285 = vmatpush1.bf16.msra.mxu0 0
    %2286 = vmatprep.subr.bf16.mxu0 0
    %2287 = vmatpush1.bf16.msra.mxu0 0
    %2288 = vmatprep.mubr.bf16.mxu0 0
    %2289 = vmatmul.mubr.bf16.gmra.mrb[0].mxu0 %v2102
    %v2290 = vpop.f32.mrb[0].mxu0
    %v2291 = vadd.f32 %v2213, %v2290
    %v2292 = vpop.f32.mrb[0].mxu0
    %v2293 = vadd.f32 %v2214, %v2292
    %v2294 = vpop.f32.mrb[0].mxu0
    %v2295 = vpop.f32.mrb[0].mxu0
    %2296 = vdwg.mxu0
    %v2297 = vxor.u32 %v2250, 2147483648
    %v2298 = vmul.f32 %v2297, 1.442695
    %v2299 = vpow.pop %v2298
    %v2300 = vadd.f32 %v2299, 1.0
    %v2301 = vrcp.pop %v2300
    %v2302 = vmul.f32 1.0, %v2301
    %v2303 = vxor.u32 %v2252, 2147483648
    %v2304 = vmul.f32 %v2303, 1.442695
    %v2305 = vpow.pop %v2304
    %v2306 = vadd.f32 %v2305, 1.0
    %v2307 = vrcp.pop %v2306
    %v2308 = vmul.f32 1.0, %v2307
    %v2309 = vtanh.pop %v2291
    %v2310 = vxor.u32 %v2293, 2147483648
    %v2311 = vmul.f32 %v2310, 1.442695
    %v2312 = vpow.pop %v2311
    %v2313 = vadd.f32 %v2312, 1.0
    %v2314 = vrcp.pop %v2313
    %v2315 = vmul.f32 1.0, %v2314
    %v2316 = vmul.f32 %v2308, %v2099
    %v2317 = vmul.f32 %v2302, %v2309
    %v2318 = vadd.f32 %v2316, %v2317
    %v2319 = vtanh.pop %v2318
    %v2320 = vmul.f32 %v2315, %v2319
    %v2321 = vpack.c.bf16 %v2320, %v2320
    %v2322 = vpack.c.bf16 %v2209, %v2209
    %2323 = vmatprep.subr.bf16.mxu0 %v663
    %2324 = vmatpush1.bf16.msra.mxu0 %v662
    %2325 = vmatprep.subr.bf16.mxu0 %v667
    %2326 = vmatpush1.bf16.msra.mxu0 %v666
    %2327 = vmatprep.subr.bf16.mxu0 %v671
    %2328 = vmatpush1.bf16.msra.mxu0 %v670
    %2329 = vmatprep.subr.bf16.mxu0 %v675
    %2330 = vmatpush1.bf16.msra.mxu0 %v674
    %2331 = vmatprep.subr.bf16.mxu0 %v679
    %2332 = vmatpush1.bf16.msra.mxu0 %v678
    %2333 = vmatprep.subr.bf16.mxu0 %v683
    %2334 = vmatpush1.bf16.msra.mxu0 %v682
    %2335 = vmatprep.subr.bf16.mxu0 %v687
    %2336 = vmatpush1.bf16.msra.mxu0 %v686
    %2337 = vmatprep.subr.bf16.mxu0 %v691
    %2338 = vmatpush1.bf16.msra.mxu0 %v690
    %2339 = vmatprep.subr.bf16.mxu0 %v695
    %2340 = vmatpush1.bf16.msra.mxu0 %v694
    %2341 = vmatprep.subr.bf16.mxu0 %v699
    %2342 = vmatpush1.bf16.msra.mxu0 %v698
    %2343 = vmatprep.subr.bf16.mxu0 %v703
    %2344 = vmatpush1.bf16.msra.mxu0 %v702
    %2345 = vmatprep.subr.bf16.mxu0 %v707
    %2346 = vmatpush1.bf16.msra.mxu0 %v706
    %2347 = vmatprep.subr.bf16.mxu0 %v711
    %2348 = vmatpush1.bf16.msra.mxu0 %v710
    %2349 = vmatprep.subr.bf16.mxu0 %v715
    %2350 = vmatpush1.bf16.msra.mxu0 %v714
    %2351 = vmatprep.subr.bf16.mxu0 %v719
    %2352 = vmatpush1.bf16.msra.mxu0 %v718
    %2353 = vmatprep.subr.bf16.mxu0 %v723
    %2354 = vmatpush1.bf16.msra.mxu0 %v722
    %2355 = vmatprep.mubr.bf16.mxu0 %v2322
    %2356 = vmatmul.mubr.bf16.gmra.mrb[0].mxu0 %v2321
    %v2357 = vpop.f32.mrb[0].mxu0
    %v2358 = vadd.f32 %v176, %v2357
    %v2359 = vpop.f32.mrb[0].mxu0
    %v2360 = vadd.f32 %v180, %v2359
    %v2361 = vpop.f32.mrb[0].mxu0
    %v2362 = vpop.f32.mrb[0].mxu0
    %2363 = vdwg.mxu0
    %2364 = vmatprep.subr.bf16.mxu0 %v665
    %2365 = vmatpush1.bf16.msra.mxu0 %v664
    %2366 = vmatprep.subr.bf16.mxu0 %v669
    %2367 = vmatpush1.bf16.msra.mxu0 %v668
    %2368 = vmatprep.subr.bf16.mxu0 %v673
    %2369 = vmatpush1.bf16.msra.mxu0 %v672
    %2370 = vmatprep.subr.bf16.mxu0 %v677
    %2371 = vmatpush1.bf16.msra.mxu0 %v676
    %2372 = vmatprep.subr.bf16.mxu0 %v681
    %2373 = vmatpush1.bf16.msra.mxu0 %v680
    %2374 = vmatprep.subr.bf16.mxu0 %v685
    %2375 = vmatpush1.bf16.msra.mxu0 %v684
    %2376 = vmatprep.subr.bf16.mxu0 %v689
    %2377 = vmatpush1.bf16.msra.mxu0 %v688
    %2378 = vmatprep.subr.bf16.mxu0 %v693
    %2379 = vmatpush1.bf16.msra.mxu0 %v692
    %2380 = vmatprep.subr.bf16.mxu0 %v697
    %2381 = vmatpush1.bf16.msra.mxu0 %v696
    %2382 = vmatprep.subr.bf16.mxu0 %v701
    %2383 = vmatpush1.bf16.msra.mxu0 %v700
    %2384 = vmatprep.subr.bf16.mxu0 %v705
    %2385 = vmatpush1.bf16.msra.mxu0 %v704
    %2386 = vmatprep.subr.bf16.mxu0 %v709
    %2387 = vmatpush1.bf16.msra.mxu0 %v708
    %2388 = vmatprep.subr.bf16.mxu0 %v713
    %2389 = vmatpush1.bf16.msra.mxu0 %v712
    %2390 = vmatprep.subr.bf16.mxu0 %v717
    %2391 = vmatpush1.bf16.msra.mxu0 %v716
    %2392 = vmatprep.subr.bf16.mxu0 %v721
    %2393 = vmatpush1.bf16.msra.mxu0 %v720
    %2394 = vmatprep.subr.bf16.mxu0 %v725
    %2395 = vmatpush1.bf16.msra.mxu0 %v724
    %2396 = vmatprep.mubr.bf16.mxu0 %v2322
    %2397 = vmatmul.mubr.bf16.gmra.mrb[0].mxu0 %v2321
    %v2398 = vpop.f32.mrb[0].mxu0
    %v2399 = vadd.f32 %v184, %v2398
    %v2400 = vpop.f32.mrb[0].mxu0
    %v2401 = vadd.f32 %v188, %v2400
    %v2402 = vpop.f32.mrb[0].mxu0
    %v2403 = vpop.f32.mrb[0].mxu0
    %2404 = vdwg.mxu0
    %v2405 = vxor.u32 %v2358, 2147483648
    %v2406 = vmul.f32 %v2405, 1.442695
    %v2407 = vpow.pop %v2406
    %v2408 = vadd.f32 %v2407, 1.0
    %v2409 = vrcp.pop %v2408
    %v2410 = vmul.f32 1.0, %v2409
    %v2411 = vxor.u32 %v2360, 2147483648
    %v2412 = vmul.f32 %v2411, 1.442695
    %v2413 = vpow.pop %v2412
    %v2414 = vadd.f32 %v2413, 1.0
    %v2415 = vrcp.pop %v2414
    %v2416 = vmul.f32 1.0, %v2415
    %v2417 = vtanh.pop %v2399
    %v2418 = vxor.u32 %v2401, 2147483648
    %v2419 = vmul.f32 %v2418, 1.442695
    %v2420 = vpow.pop %v2419
    %v2421 = vadd.f32 %v2420, 1.0
    %v2422 = vrcp.pop %v2421
    %v2423 = vmul.f32 1.0, %v2422
    %v2424 = vmul.f32 %v2416, %v2207
    %v2425 = vmul.f32 %v2410, %v2417
    %v2426 = vadd.f32 %v2424, %v2425
    %v2427 = vtanh.pop %v2426
    %v2428 = vmul.f32 %v2423, %v2427
    %2429 = vst [vmem:[#allocation2] sm:$0xff] %v2320
    %2430 = vst [vmem:[#allocation3] sm:$0xff] %v2318
    %2431 = vst [vmem:[#allocation4] sm:$0xff] %v2428
    %2432 = vst [vmem:[#allocation5] sm:$0xff] %v2426
    // Predicated region
    $region42: #{tpu_custom_call.1} parent=1 // pred_check
      %p2433 = pneg %p67
    $region43: #{tpu_custom_call.1} parent=1 // pred_check_branch
      %2435 = sbr.rel (%p2433) target = $region45
    $region44: #{tpu_custom_call.1} parent=1 // pred_region
      %v2436 = vpack.c.bf16 %v2428, %v2428
      %v2437 = vld [vmem:[%s4] sm:$0xf]
      %v2438 = vld [vmem:[%s4 + $0x4] sm:$0xf]
      %v2439 = vld [vmem:[%s4 + $0x8] sm:$0xf]
      %v2440 = vld [vmem:[%s4 + $0xc] sm:$0xf]
      %v2441 = vld [vmem:[%s4 + $0x10] sm:$0xf]
      %v2442 = vld [vmem:[%s4 + $0x14] sm:$0xf]
      %v2443 = vld [vmem:[%s4 + $0x18] sm:$0xf]
      %v2444 = vld [vmem:[%s4 + $0x1c] sm:$0xf]
      %v2445 = vld [vmem:[%s4 + $0x20] sm:$0xf]
      %v2446 = vld [vmem:[%s4 + $0x24] sm:$0xf]
      %v2447 = vld [vmem:[%s4 + $0x28] sm:$0xf]
      %v2448 = vld [vmem:[%s4 + $0x2c] sm:$0xf]
      %v2449 = vld [vmem:[%s4 + $0x30] sm:$0xf]
      %v2450 = vld [vmem:[%s4 + $0x34] sm:$0xf]
      %v2451 = vld [vmem:[%s4 + $0x38] sm:$0xf]
      %v2452 = vld [vmem:[%s4 + $0x3c] sm:$0xf]
      %v2453 = vld [vmem:[#allocation6] sm:$0x1]
      %v2455 = vlaneseq
      %v2456 = vshrl.u32 %v2455, 7
      %v2457 = vsub.s32 0, %v2456
      %v2458 = vrot.slane %v2453, %v2457
      %v2476 = vunpack.c.l.b16 %v2437
      %v2477 = vunpack.c.l.b16 %v2438
      %v2478 = vunpack.c.l.b16 %v2439
      %v2479 = vunpack.c.l.b16 %v2440
      %v2480 = vunpack.c.l.b16 %v2441
      %v2481 = vunpack.c.l.b16 %v2442
      %v2482 = vunpack.c.l.b16 %v2443
      %v2483 = vunpack.c.l.b16 %v2444
      %v2484 = vunpack.c.l.b16 %v2445
      %v2485 = vunpack.c.l.b16 %v2446
      %v2486 = vunpack.c.l.b16 %v2447
      %v2487 = vunpack.c.l.b16 %v2448
      %v2488 = vunpack.c.l.b16 %v2449
      %v2489 = vunpack.c.l.b16 %v2450
      %v2490 = vunpack.c.l.b16 %v2451
      %v2491 = vunpack.c.l.b16 %v2452
      %v2492 = vpack.c.b16 %v2477, %v2476
      %v2493 = vpack.c.b16 %v2479, %v2478
      %v2494 = vpack.c.b16 %v2481, %v2480
      %v2495 = vpack.c.b16 %v2483, %v2482
      %v2496 = vpack.c.b16 %v2485, %v2484
      %v2497 = vpack.c.b16 %v2487, %v2486
      %v2498 = vpack.c.b16 %v2489, %v2488
      %v2499 = vpack.c.b16 %v2491, %v2490
      %2508 = vmatprep.subr.bf16.mxu0 0
      %2509 = vmatpush1.bf16.msra.mxu0 %v2492
      %2510 = vmatprep.subr.bf16.mxu0 0
      %2511 = vmatpush1.bf16.msra.mxu0 %v2493
      %2512 = vmatprep.subr.bf16.mxu0 0
      %2513 = vmatpush1.bf16.msra.mxu0 %v2494
      %2514 = vmatprep.subr.bf16.mxu0 0
      %2515 = vmatpush1.bf16.msra.mxu0 %v2495
      %2516 = vmatprep.subr.bf16.mxu0 0
      %2517 = vmatpush1.bf16.msra.mxu0 %v2496
      %2518 = vmatprep.subr.bf16.mxu0 0
      %2519 = vmatpush1.bf16.msra.mxu0 %v2497
      %2520 = vmatprep.subr.bf16.mxu0 0
      %2521 = vmatpush1.bf16.msra.mxu0 %v2498
      %2522 = vmatprep.subr.bf16.mxu0 0
      %2523 = vmatpush1.bf16.msra.mxu0 %v2499
      %2524 = vmatprep.subr.bf16.mxu0 0
      %2525 = vmatpush1.bf16.msra.mxu0 0
      %2526 = vmatprep.subr.bf16.mxu0 0
      %2527 = vmatpush1.bf16.msra.mxu0 0
      %2528 = vmatprep.subr.bf16.mxu0 0
      %2529 = vmatpush1.bf16.msra.mxu0 0
      %2530 = vmatprep.subr.bf16.mxu0 0
      %2531 = vmatpush1.bf16.msra.mxu0 0
      %2532 = vmatprep.subr.bf16.mxu0 0
      %2533 = vmatpush1.bf16.msra.mxu0 0
      %2534 = vmatprep.subr.bf16.mxu0 0
      %2535 = vmatpush1.bf16.msra.mxu0 0
      %2536 = vmatprep.subr.bf16.mxu0 0
      %2537 = vmatpush1.bf16.msra.mxu0 0
      %2538 = vmatprep.subr.bf16.mxu0 0
      %2539 = vmatpush1.bf16.msra.mxu0 0
      %2540 = vmatprep.mubr.bf16.mxu0 0
      %2541 = vmatmul.mubr.bf16.gmra.mrb[0].mxu0 %v2436
      %v2542 = vpop.f32.mrb[0].mxu0
      %v2543 = vadd.f32 %v2458, %v2542
      %v2544 = vpop.f32.mrb[0].mxu0
      %v2545 = vpop.f32.mrb[0].mxu0
      %v2546 = vpop.f32.mrb[0].mxu0
      %2547 = vdwg.mxu0
      %v2548 = vxor.u32 %v2543, 2147483648
      %v2549 = vmul.f32 %v2548, 1.442695
      %v2550 = vpow.pop %v2549
      %v2551 = vadd.f32 %v2550, 1.0
      %v2552 = vrcp.pop %v2551
      %v2553 = vmul.f32 1.0, %v2552
      %vm2554 = vcmask 7168
      %2555 = vst.msk [vmem:[%s6] sm:$0xff] %vm2554, %v2553
    $region45: #{tpu_custom_call.1} parent=1 // pred_fallthru
      _
    // Predicated region
    $region46: #{tpu_custom_call.1} parent=1 // pred_check
      _
    $region47: #{tpu_custom_call.1} parent=1 // pred_check_branch
      %2557 = sbr.rel (0) target = $region49
    $region48: #{tpu_custom_call.1} parent=1 // pred_region
      _
    $region49: #{tpu_custom_call.1} parent=1 // pred_fallthru
      _
    // Predicated region
    $region50: #{tpu_custom_call.1} parent=1 // pred_check
      _
    $region51: #{tpu_custom_call.1} parent=1 // pred_check_branch
      %2559 = sbr.rel (0) target = $region53
    $region52: #{tpu_custom_call.1} parent=1 // pred_region
      _
    $region53: #{tpu_custom_call.1} parent=1 // pred_fallthru
      _
    %2560 = vsyncpa [#allocation8], 1
    %2561 = vsyncpa [#allocation10], 1

</llo_original>
